<compile_context>
chip_gen: v7x
topology: tpu7x:2x2x1
jax: 0.10.0
libtpu: 0.0.40
codegen_flags: <defaults>
</compile_context>

<pallas_src>
import jax
import jax.numpy as jnp
from jax import lax
from jax.experimental import pallas as pl
from jax.experimental.pallas import tpu as pltpu


def _fold_kx(rows):
    """(R, W, C) -> (R, W, 3C): [kx=0 | kx=1 | kx=2] taps with zero column pad."""
    w = rows.shape[1]
    zero_col = jnp.zeros_like(rows[:, :1, :])
    left = jnp.concatenate([zero_col, rows[:, :w - 1, :]], axis=1)   # col w-1
    right = jnp.concatenate([rows[:, 1:, :], zero_col], axis=1)      # col w+1
    return jnp.concatenate([left, rows, right], axis=-1)


def _rpn_head_kernel(xm_ref, xt_ref, xb_ref, w3_ref, b3_ref, wh_ref, bh_ref,
                     cls_ref, box_ref, xs_ref):
    # xm_ref : (1, TH, W, C)   band rows of the *unpadded* NHWC input
    # xt_ref : (1, 1,  W, C)   row above the band (clamped; zeroed on band 0)
    # xb_ref : (1, 1,  W, C)   row below the band (clamped; zeroed on last band)
    # w3_ref : (9C, C) or (3, 3C, C)  3x3 conv weights, taps folded into K
    # b3_ref : (1, C)
    # wh_ref : (5A, C)         fused cls (first A rows) + bbox (last 4A rows)
    # bh_ref : (5A, 1)
    # cls_ref: (1, A,  TH, W)  NCHW logits block
    # box_ref: (1, 4A, TH, W)  NCHW bbox block
    # xs_ref : (TH+2, W, 3C)   VMEM scratch: kx-folded, column-padded band
    A = cls_ref.shape[1]
    TH = cls_ref.shape[2]
    W = cls_ref.shape[3]
    C = xm_ref.shape[3]
    band = pl.program_id(1)
    last_band = pl.num_programs(1) - 1

    # ---- assemble the kx-folded band in VMEM scratch (in-kernel zero pad) ---
    xs_ref[1:TH + 1] = _fold_kx(xm_ref[0])

    @pl.when(band == 0)                      # top conv zero-pad row
    def _():
        xs_ref[0:1] = jnp.zeros((1, W, 3 * C), jnp.float32)

    @pl.when(band > 0)                       # real row above the band
    def _():
        xs_ref[0:1] = _fold_kx(xt_ref[0])

    @pl.when(band == last_band)              # bottom conv zero-pad row
    def _():
        xs_ref[TH + 1:TH + 2] = jnp.zeros((1, W, 3 * C), jnp.float32)

    @pl.when(band < last_band)               # real row below the band
    def _():
        xs_ref[TH + 1:TH + 2] = _fold_kx(xb_ref[0])

    # ---- 3x3 conv on the MXU (taps folded into the contraction dim) --------
    if w3_ref.ndim == 2:
        # Small C: one K = 9C matmul fills the MXU contraction depth.
        patch = jnp.concatenate(
            [xs_ref[ky:ky + TH] for ky in range(3)], axis=-1,
        ).reshape(TH * W, 9 * C)
        acc = jnp.dot(patch, w3_ref[...], preferred_element_type=jnp.float32)
    else:
        # Large C: three K = 3C matmuls; LHS is a leading-dim slice of scratch.
        acc = jnp.dot(xs_ref[0:TH].reshape(TH * W, 3 * C), w3_ref[0],
                      preferred_element_type=jnp.float32)
        for ky in (1, 2):
            acc = acc + jnp.dot(xs_ref[ky:ky + TH].reshape(TH * W, 3 * C),
                                w3_ref[ky], preferred_element_type=jnp.float32)

    hidden = jnp.maximum(acc + b3_ref[...], 0.0)          # (TH*W, C), ReLU

    # ---- fused 1x1 heads, channel-major result -> lane-dense NCHW stores ---
    # Contract over C on both operands (a @ b.T form) so y is (5A, TH*W);
    # the lane dim stays spatial and the NCHW blocks are stored directly.
    y = lax.dot_general(wh_ref[...], hidden, (((1,), (1,)), ((), ())),
                        preferred_element_type=jnp.float32) + bh_ref[...]

    for t in range(TH):                                   # static unroll
        row = y[:, t * W:(t + 1) * W]                     # (5A, W)
        cls_ref[0, :, t, :] = row[:A].astype(cls_ref.dtype)
        box_ref[0, :, t, :] = row[A:].astype(box_ref.dtype)


@jax.jit
def rpn_head_forward(x_nchw, w3, b3, wc, bc, wb, bb):
    """RPNHead forward.

    Args:
      x_nchw: (N, Cin, H, W) float32 (PyTorch NCHW).
      w3: (Cin, Cin, 3, 3) conv weight (OIHW).   b3: (Cin,)
      wc: (A, Cin, 1, 1)   cls_logits weight.    bc: (A,)
      wb: (4A, Cin, 1, 1)  bbox_pred weight.     bb: (4A,)

    Returns:
      (logits, bbox_reg) in NCHW: (N, A, H, W), (N, 4A, H, W).
    """
    N, C, H, W = x_nchw.shape
    A = wc.shape[0]
    A4 = wb.shape[0]
    A5 = A + A4

    # Row-band height.  TH = 16 is a good all-generation default (v5e/v6e want
    # 16-32, v7x 8-16 under its 64 MiB VMEM); fall back to 8, then to a single
    # full-H band (always a legal block) for odd FPN levels like H = 25, 13.
    # v7x note: with N >= 2 the (batch, band) grid keeps both TensorCores busy.
    if H % 16 == 0 and H > 16:
        TH = 16
    elif H % 8 == 0 and H > 8:
        TH = 8
    else:
        TH = H
    n_bands = H // TH

    # NCHW -> NHWC so the conv contraction runs over the lane dim.
    # TODO(synk): fold this transpose into the kernel's input DMA to remove
    # the last wrapper-side HBM pass.
    x_nhwc = jnp.transpose(x_nchw, (0, 2, 3, 1))

    # Weight layouts: conv taps folded into the contraction dim; heads fused
    # and kept (5A, C) so the head matmul contracts over C on both operands.
    w3_t = jnp.transpose(w3, (2, 3, 1, 0))                 # (ky, kx, cin, cout)
    fold_all_taps = C < 128                                # K = 9C vs 3 x (K=3C)
    w3_k = w3_t.reshape(9 * C, C) if fold_all_taps else w3_t.reshape(3, 3 * C, C)
    b3_k = b3.reshape(1, C)
    wh_k = jnp.concatenate([wc.reshape(A, C), wb.reshape(A4, C)], axis=0)
    bh_k = jnp.concatenate([bc, bb]).reshape(A5, 1)

    w3_block_idx = (0,) * w3_k.ndim

    grid_spec = pltpu.PrefetchScalarGridSpec(
        num_scalar_prefetch=0,
        grid=(N, n_bands),
        in_specs=[
            # Band rows [b*TH, (b+1)*TH) of the unpadded input.
            pl.BlockSpec((1, TH, W, C), lambda n, b: (n, b, 0, 0)),
            # 1-row top halo (row b*TH - 1, clamped; zeroed in-kernel on band 0).
            pl.BlockSpec((1, 1, W, C),
                         lambda n, b: (n, jnp.maximum(b * TH - 1, 0), 0, 0)),
            # 1-row bottom halo (row (b+1)*TH, clamped; zeroed on last band).
            pl.BlockSpec((1, 1, W, C),
                         lambda n, b: (n, jnp.minimum((b + 1) * TH, H - 1), 0, 0)),
            # Weights / biases: constant index maps (stay resident in VMEM).
            # TODO(synk): pin these to a single buffer (pl.Buffered(1)) on v7x
            # if Mosaic double-buffers constant-index blocks.
            pl.BlockSpec(w3_k.shape, lambda n, b: w3_block_idx),
            pl.BlockSpec((1, C), lambda n, b: (0, 0)),
            pl.BlockSpec((A5, C), lambda n, b: (0, 0)),
            pl.BlockSpec((A5, 1), lambda n, b: (0, 0)),
        ],
        out_specs=[
            # NCHW outputs written directly by the kernel (lane dim = W).
            pl.BlockSpec((1, A, TH, W), lambda n, b: (n, 0, b, 0)),
            pl.BlockSpec((1, A4, TH, W), lambda n, b: (n, 0, b, 0)),
        ],
        scratch_shapes=[pltpu.VMEM((TH + 2, W, 3 * C), jnp.float32)],
    )

    # Explicit scoped-VMEM budget from the per-band working set (the default
    # 16/32 MiB scoped limits are too small at real FPN sizes); capped at
    # 64 MiB so the same budget stays legal on v7x.
    elt = 4
    k_dim = 9 * C if fold_all_taps else 3 * C
    block_bytes = elt * (TH * W * C + 2 * W * C              # band + halos
                         + 9 * C * C + A5 * C + C + A5       # weights + biases
                         + A5 * TH * W)                      # output blocks
    scratch_bytes = elt * (TH + 2) * W * 3 * C
    live_bytes = elt * (TH * W * k_dim + 2 * TH * W * C + 2 * A5 * TH * W)
    vmem_limit = int(min(max(2 * (2 * block_bytes + scratch_bytes + live_bytes),
                             32 << 20), 64 << 20))

    flops = 2 * N * H * W * C * (9 * C + A5)
    bytes_accessed = int(elt * (N * H * W * C * (TH + 2) / TH   # input + halo
                                + N * H * W * A5                # NCHW outputs
                                + 9 * C * C + A5 * C + C + A5)) # weights

    # Numerics policy: keep f32 inputs at the default TPU matmul precision
    # (same default as the lax.conv reference).  Cast patch/hidden + weights
    # to bf16 here for ~3-8x MXU throughput if the numerics contract allows,
    # or pass precision=HIGHEST for exact f32.
    logits, bbox_reg = pl.pallas_call(
        _rpn_head_kernel,
        out_shape=(jax.ShapeDtypeStruct((N, A, H, W), jnp.float32),
                   jax.ShapeDtypeStruct((N, A4, H, W), jnp.float32)),
        grid_spec=grid_spec,
        compiler_params=pltpu.CompilerParams(
            dimension_semantics=("parallel", "parallel"),
            vmem_limit_bytes=vmem_limit),
        cost_estimate=pl.CostEstimate(flops=flops, transcendentals=0,
                                      bytes_accessed=bytes_accessed),
    )(x_nhwc, x_nhwc, x_nhwc, w3_k, b3_k, wh_k, bh_k)
    return logits, bbox_reg


def _reference_forward(x_nchw, w3, b3, wc, bc, wb, bb):
    """Pure-JAX reference (lax conv, NCHW) mirroring the PyTorch module."""
    dn = jax.lax.conv_dimension_numbers(x_nchw.shape, w3.shape,
                                        ("NCHW", "OIHW", "NCHW"))
    h = jax.lax.conv_general_dilated(x_nchw, w3, (1, 1), ((1, 1), (1, 1)),
                                     dimension_numbers=dn)
    h = jax.nn.relu(h + b3.reshape(1, -1, 1, 1))
    dn1 = jax.lax.conv_dimension_numbers(h.shape, wc.shape,
                                         ("NCHW", "OIHW", "NCHW"))
    logits = jax.lax.conv_general_dilated(h, wc, (1, 1), ((0, 0), (0, 0)),
                                          dimension_numbers=dn1)
    logits = logits + bc.reshape(1, -1, 1, 1)
    dn2 = jax.lax.conv_dimension_numbers(h.shape, wb.shape,
                                         ("NCHW", "OIHW", "NCHW"))
    bbox = jax.lax.conv_general_dilated(h, wb, (1, 1), ((0, 0), (0, 0)),
                                        dimension_numbers=dn2)
    bbox = bbox + bb.reshape(1, -1, 1, 1)
    return logits, bbox


def _run_case(key, n, c, h, w, a, atol, rtol):
    keys = jax.random.split(key, 7)
    x = jax.random.normal(keys[0], (n, c, h, w), dtype=jnp.float32)
    # nn.init.normal_(weight, std=0.01); biases randomized here (instead of the
    # module's zero init) to actually exercise the bias paths.
    w3 = 0.01 * jax.random.normal(keys[1], (c, c, 3, 3), dtype=jnp.float32)
    b3 = 0.1 * jax.random.normal(keys[2], (c,), dtype=jnp.float32)
    wc = 0.01 * jax.random.normal(keys[3], (a, c, 1, 1), dtype=jnp.float32)
    bc = 0.1 * jax.random.normal(keys[4], (a,), dtype=jnp.float32)
    wb = 0.01 * jax.random.normal(keys[5], (4 * a, c, 1, 1), dtype=jnp.float32)
    bb = 0.1 * jax.random.normal(keys[6], (4 * a,), dtype=jnp.float32)

    logits, bbox_reg = rpn_head_forward(x, w3, b3, wc, bc, wb, bb)
    jax.block_until_ready((logits, bbox_reg))
    assert logits.shape == (n, a, h, w), logits.shape
    assert bbox_reg.shape == (n, 4 * a, h, w), bbox_reg.shape

    ref_logits, ref_bbox = _reference_forward(x, w3, b3, wc, bc, wb, bb)
    assert jnp.allclose(logits, ref_logits, atol=atol, rtol=rtol)
    assert jnp.allclose(bbox_reg, ref_bbox, atol=atol, rtol=rtol)


if __name__ == "__main__":
    key = jax.random.PRNGKey(0)
    k1, k2 = jax.random.split(key)
    # Small config (C < 128 -> single K=9C conv matmul), 2 row-bands + halos.
    _run_case(k1, n=2, c=32, h=32, w=16, a=3, atol=1e-4, rtol=1e-4)
    # C = 128 exercises the 3 x (K=3C) matmul path used by real backbones
    # (looser tolerance: wider accumulation at default matmul precision).
    _run_case(k2, n=1, c=128, h=16, w=16, a=3, atol=1e-3, rtol=1e-3)
    print("KERNEL_OK")
</pallas_src>

<mosaic_0001>
module attributes {stable_mosaic.version = 11 : i64} {
  func.func @_rpn_head_kernel(%arg0: i32, %arg1: i32, %arg2: memref<1x16x16x32xf32, #tpu.memory_space<vmem>>, %arg3: memref<1x1x16x32xf32, #tpu.memory_space<vmem>>, %arg4: memref<1x1x16x32xf32, #tpu.memory_space<vmem>>, %arg5: memref<288x32xf32, #tpu.memory_space<vmem>>, %arg6: memref<1x32xf32, #tpu.memory_space<vmem>>, %arg7: memref<15x32xf32, #tpu.memory_space<vmem>>, %arg8: memref<15x1xf32, #tpu.memory_space<vmem>>, %arg9: memref<1x3x16x16xf32, #tpu.memory_space<vmem>>, %arg10: memref<1x12x16x16xf32, #tpu.memory_space<vmem>>, %arg11: memref<18x16x96xf32, #tpu.memory_space<vmem>>) attributes {dimension_semantics = [#tpu.dimension_semantics<parallel>, #tpu.dimension_semantics<parallel>], iteration_bounds = array<i64: 2, 2>, scalar_prefetch = 0 : i64, scratch_operands = 1 : i64, tpu.core_type = #tpu.core_type<tc>, window_params = [{transform_indices = @transform_0, window_bounds = array<i64: 1, 16, 16, 32>}, {transform_indices = @transform_1, window_bounds = array<i64: 1, 1, 16, 32>}, {transform_indices = @transform_2, window_bounds = array<i64: 1, 1, 16, 32>}, {pipeline_mode = #tpu.pipeline_mode<synchronous>, transform_indices = @transform_3, window_bounds = array<i64: 288, 32>}, {pipeline_mode = #tpu.pipeline_mode<synchronous>, transform_indices = @transform_4, window_bounds = array<i64: 1, 32>}, {pipeline_mode = #tpu.pipeline_mode<synchronous>, transform_indices = @transform_5, window_bounds = array<i64: 15, 32>}, {pipeline_mode = #tpu.pipeline_mode<synchronous>, transform_indices = @transform_6, window_bounds = array<i64: 15, 1>}, {transform_indices = @transform_7, window_bounds = array<i64: 1, 3, 16, 16>}, {transform_indices = @transform_8, window_bounds = array<i64: 1, 12, 16, 16>}]} {
    %c0 = arith.constant 0 : index
    %c0_0 = arith.constant 0 : index
    %c0_1 = arith.constant 0 : index
    %c0_2 = arith.constant 0 : index
    %0 = vector.load %arg2[%c0, %c0_0, %c0_1, %c0_2] : memref<1x16x16x32xf32, #tpu.memory_space<vmem>>, vector<1x16x16x32xf32>
    %1 = vector.shape_cast %0 : vector<1x16x16x32xf32> to vector<16x16x32xf32>
    %cst = arith.constant 0.000000e+00 : f32
    %2 = vector.broadcast %cst : f32 to vector<16x1x32xf32>
    %3 = vector.extract_strided_slice %1 {offsets = [0, 0, 0], sizes = [16, 15, 32], strides = [1, 1, 1]} : vector<16x16x32xf32> to vector<16x15x32xf32>
    %4 = tpu.concatenate %2, %3 in 1 : vector<16x1x32xf32>, vector<16x15x32xf32> -> vector<16x16x32xf32>
    %5 = vector.extract_strided_slice %1 {offsets = [0, 1, 0], sizes = [16, 15, 32], strides = [1, 1, 1]} : vector<16x16x32xf32> to vector<16x15x32xf32>
    %6 = tpu.concatenate %5, %2 in 1 : vector<16x15x32xf32>, vector<16x1x32xf32> -> vector<16x16x32xf32>
    %7 = tpu.concatenate %4, %1, %6 in 2 : vector<16x16x32xf32>, vector<16x16x32xf32>, vector<16x16x32xf32> -> vector<16x16x96xf32>
    %c1 = arith.constant 1 : index
    %c0_3 = arith.constant 0 : index
    %c0_4 = arith.constant 0 : index
    %8 = vector.load %arg11[%c1, %c0_3, %c0_4] : memref<18x16x96xf32, #tpu.memory_space<vmem>>, vector<16x16x96xf32>
    tpu.vector_store %arg11[%c1, %c0_3, %c0_4], %7 {strides = array<i32>} : memref<18x16x96xf32, #tpu.memory_space<vmem>>, vector<16x16x96xf32>,
    %c0_i32 = arith.constant 0 : i32
    %9 = arith.cmpi eq, %arg1, %c0_i32 : i32
    %10 = arith.extui %9 : i1 to i32
    %c0_i32_5 = arith.constant 0 : i32
    %11 = arith.cmpi ne, %10, %c0_i32_5 : i32
    scf.if %11 {
      %cst_145 = arith.constant 0.000000e+00 : f32
      %182 = vector.broadcast %cst_145 : f32 to vector<1x16x96xf32>
      %c0_146 = arith.constant 0 : index
      %c0_147 = arith.constant 0 : index
      %c0_148 = arith.constant 0 : index
      %183 = vector.load %arg11[%c0_146, %c0_147, %c0_148] : memref<18x16x96xf32, #tpu.memory_space<vmem>>, vector<1x16x96xf32>
      tpu.vector_store %arg11[%c0_146, %c0_147, %c0_148], %182 {strides = array<i32>} : memref<18x16x96xf32, #tpu.memory_space<vmem>>, vector<1x16x96xf32>,
    } else {
    }
    %c0_i32_6 = arith.constant 0 : i32
    %12 = arith.cmpi sgt, %arg1, %c0_i32_6 : i32
    %13 = arith.extui %12 : i1 to i32
    %c0_i32_7 = arith.constant 0 : i32
    %14 = arith.cmpi ne, %13, %c0_i32_7 : i32
    scf.if %14 {
      %c0_145 = arith.constant 0 : index
      %c0_146 = arith.constant 0 : index
      %c0_147 = arith.constant 0 : index
      %c0_148 = arith.constant 0 : index
      %182 = vector.load %arg3[%c0_145, %c0_146, %c0_147, %c0_148] : memref<1x1x16x32xf32, #tpu.memory_space<vmem>>, vector<1x1x16x32xf32>
      %183 = vector.shape_cast %182 : vector<1x1x16x32xf32> to vector<1x16x32xf32>
      %cst_149 = arith.constant 0.000000e+00 : f32
      %184 = vector.broadcast %cst_149 : f32 to vector<1x1x32xf32>
      %185 = vector.extract_strided_slice %183 {offsets = [0, 0, 0], sizes = [1, 15, 32], strides = [1, 1, 1]} : vector<1x16x32xf32> to vector<1x15x32xf32>
      %186 = tpu.concatenate %184, %185 in 1 : vector<1x1x32xf32>, vector<1x15x32xf32> -> vector<1x16x32xf32>
      %187 = vector.extract_strided_slice %183 {offsets = [0, 1, 0], sizes = [1, 15, 32], strides = [1, 1, 1]} : vector<1x16x32xf32> to vector<1x15x32xf32>
      %188 = tpu.concatenate %187, %184 in 1 : vector<1x15x32xf32>, vector<1x1x32xf32> -> vector<1x16x32xf32>
      %189 = tpu.concatenate %186, %183, %188 in 2 : vector<1x16x32xf32>, vector<1x16x32xf32>, vector<1x16x32xf32> -> vector<1x16x96xf32>
      %c0_150 = arith.constant 0 : index
      %c0_151 = arith.constant 0 : index
      %c0_152 = arith.constant 0 : index
      %190 = vector.load %arg11[%c0_150, %c0_151, %c0_152] : memref<18x16x96xf32, #tpu.memory_space<vmem>>, vector<1x16x96xf32>
      tpu.vector_store %arg11[%c0_150, %c0_151, %c0_152], %189 {strides = array<i32>} : memref<18x16x96xf32, #tpu.memory_space<vmem>>, vector<1x16x96xf32>,
    } else {
    }
    %c1_i32 = arith.constant 1 : i32
    %15 = arith.cmpi eq, %arg1, %c1_i32 : i32
    %16 = arith.extui %15 : i1 to i32
    %c0_i32_8 = arith.constant 0 : i32
    %17 = arith.cmpi ne, %16, %c0_i32_8 : i32
    scf.if %17 {
      %cst_145 = arith.constant 0.000000e+00 : f32
      %182 = vector.broadcast %cst_145 : f32 to vector<1x16x96xf32>
      %c17 = arith.constant 17 : index
      %c0_146 = arith.constant 0 : index
      %c0_147 = arith.constant 0 : index
      %183 = vector.load %arg11[%c17, %c0_146, %c0_147] : memref<18x16x96xf32, #tpu.memory_space<vmem>>, vector<1x16x96xf32>
      tpu.vector_store %arg11[%c17, %c0_146, %c0_147], %182 {strides = array<i32>} : memref<18x16x96xf32, #tpu.memory_space<vmem>>, vector<1x16x96xf32>,
    } else {
    }
    %c1_i32_9 = arith.constant 1 : i32
    %18 = arith.cmpi slt, %arg1, %c1_i32_9 : i32
    %19 = arith.extui %18 : i1 to i32
    %c0_i32_10 = arith.constant 0 : i32
    %20 = arith.cmpi ne, %19, %c0_i32_10 : i32
    scf.if %20 {
      %c0_145 = arith.constant 0 : index
      %c0_146 = arith.constant 0 : index
      %c0_147 = arith.constant 0 : index
      %c0_148 = arith.constant 0 : index
      %182 = vector.load %arg4[%c0_145, %c0_146, %c0_147, %c0_148] : memref<1x1x16x32xf32, #tpu.memory_space<vmem>>, vector<1x1x16x32xf32>
      %183 = vector.shape_cast %182 : vector<1x1x16x32xf32> to vector<1x16x32xf32>
      %cst_149 = arith.constant 0.000000e+00 : f32
      %184 = vector.broadcast %cst_149 : f32 to vector<1x1x32xf32>
      %185 = vector.extract_strided_slice %183 {offsets = [0, 0, 0], sizes = [1, 15, 32], strides = [1, 1, 1]} : vector<1x16x32xf32> to vector<1x15x32xf32>
      %186 = tpu.concatenate %184, %185 in 1 : vector<1x1x32xf32>, vector<1x15x32xf32> -> vector<1x16x32xf32>
      %187 = vector.extract_strided_slice %183 {offsets = [0, 1, 0], sizes = [1, 15, 32], strides = [1, 1, 1]} : vector<1x16x32xf32> to vector<1x15x32xf32>
      %188 = tpu.concatenate %187, %184 in 1 : vector<1x15x32xf32>, vector<1x1x32xf32> -> vector<1x16x32xf32>
      %189 = tpu.concatenate %186, %183, %188 in 2 : vector<1x16x32xf32>, vector<1x16x32xf32>, vector<1x16x32xf32> -> vector<1x16x96xf32>
      %c17 = arith.constant 17 : index
      %c0_150 = arith.constant 0 : index
      %c0_151 = arith.constant 0 : index
      %190 = vector.load %arg11[%c17, %c0_150, %c0_151] : memref<18x16x96xf32, #tpu.memory_space<vmem>>, vector<1x16x96xf32>
      tpu.vector_store %arg11[%c17, %c0_150, %c0_151], %189 {strides = array<i32>} : memref<18x16x96xf32, #tpu.memory_space<vmem>>, vector<1x16x96xf32>,
    } else {
    }
    %c0_11 = arith.constant 0 : index
    %c0_12 = arith.constant 0 : index
    %c0_13 = arith.constant 0 : index
    %21 = vector.load %arg11[%c0_11, %c0_12, %c0_13] : memref<18x16x96xf32, #tpu.memory_space<vmem>>, vector<16x16x96xf32>
    %c1_14 = arith.constant 1 : index
    %c0_15 = arith.constant 0 : index
    %c0_16 = arith.constant 0 : index
    %22 = vector.load %arg11[%c1_14, %c0_15, %c0_16] : memref<18x16x96xf32, #tpu.memory_space<vmem>>, vector<16x16x96xf32>
    %c2 = arith.constant 2 : index
    %c0_17 = arith.constant 0 : index
    %c0_18 = arith.constant 0 : index
    %23 = vector.load %arg11[%c2, %c0_17, %c0_18] : memref<18x16x96xf32, #tpu.memory_space<vmem>>, vector<16x16x96xf32>
    %24 = tpu.concatenate %21, %22, %23 in 2 : vector<16x16x96xf32>, vector<16x16x96xf32>, vector<16x16x96xf32> -> vector<16x16x288xf32>
    %25 = vector.shape_cast %24 : vector<16x16x288xf32> to vector<256x288xf32>
    %c0_19 = arith.constant 0 : index
    %c0_20 = arith.constant 0 : index
    %26 = vector.load %arg5[%c0_19, %c0_20] : memref<288x32xf32, #tpu.memory_space<vmem>>, vector<288x32xf32>
    %cst_21 = arith.constant dense<0.000000e+00> : vector<256x32xf32>
    %27 = tpu.matmul %25, %26, %cst_21 {dimension_numbers = #tpu.dot_dimension_numbers<[1], [0], [0], [1], [0, 0, 1, 1], [], []>} : vector<256x288xf32>, vector<288x32xf32>, vector<256x32xf32> -> vector<256x32xf32>
    %c0_22 = arith.constant 0 : index
    %c0_23 = arith.constant 0 : index
    %28 = vector.load %arg6[%c0_22, %c0_23] : memref<1x32xf32, #tpu.memory_space<vmem>>, vector<1x32xf32>
    %29 = vector.broadcast %28 : vector<1x32xf32> to vector<256x32xf32>
    %30 = arith.addf %27, %29 : vector<256x32xf32>
    %cst_24 = arith.constant 0.000000e+00 : f32
    %31 = vector.broadcast %cst_24 : f32 to vector<256x32xf32>
    %32 = arith.maximumf %30, %31 : vector<256x32xf32>
    %c0_25 = arith.constant 0 : index
    %c0_26 = arith.constant 0 : index
    %33 = vector.load %arg7[%c0_25, %c0_26] : memref<15x32xf32, #tpu.memory_space<vmem>>, vector<15x32xf32>
    %cst_27 = arith.constant dense<0.000000e+00> : vector<15x256xf32>
    %34 = tpu.matmul %33, %32, %cst_27 {dimension_numbers = #tpu.dot_dimension_numbers<[1], [1], [0], [0], [0, 0, 1, 0], [], []>} : vector<15x32xf32>, vector<256x32xf32>, vector<15x256xf32> -> vector<15x256xf32>
    %c0_28 = arith.constant 0 : index
    %c0_29 = arith.constant 0 : index
    %35 = vector.load %arg8[%c0_28, %c0_29] : memref<15x1xf32, #tpu.memory_space<vmem>>, vector<15x1xf32>
    %36 = vector.broadcast %35 : vector<15x1xf32> to vector<15x256xf32>
    %37 = arith.addf %34, %36 : vector<15x256xf32>
    %38 = vector.extract_strided_slice %37 {offsets = [0, 0], sizes = [15, 16], strides = [1, 1]} : vector<15x256xf32> to vector<15x16xf32>
    %39 = vector.extract_strided_slice %38 {offsets = [0, 0], sizes = [3, 16], strides = [1, 1]} : vector<15x16xf32> to vector<3x16xf32>
    %c0_30 = arith.constant 0 : index
    %c0_31 = arith.constant 0 : index
    %c0_32 = arith.constant 0 : index
    %c0_33 = arith.constant 0 : index
    %40 = vector.load %arg9[%c0_30, %c0_31, %c0_32, %c0_33] : memref<1x3x16x16xf32, #tpu.memory_space<vmem>>, vector<1x3x1x16xf32>
    %41 = vector.shape_cast %40 : vector<1x3x1x16xf32> to vector<3x16xf32>
    %42 = vector.shape_cast %39 : vector<3x16xf32> to vector<1x3x1x16xf32>
    tpu.vector_store %arg9[%c0_30, %c0_31, %c0_32, %c0_33], %42 {strides = array<i32>} : memref<1x3x16x16xf32, #tpu.memory_space<vmem>>, vector<1x3x1x16xf32>,
    %43 = vector.extract_strided_slice %38 {offsets = [3, 0], sizes = [12, 16], strides = [1, 1]} : vector<15x16xf32> to vector<12x16xf32>
    %c0_34 = arith.constant 0 : index
    %c0_35 = arith.constant 0 : index
    %c0_36 = arith.constant 0 : index
    %c0_37 = arith.constant 0 : index
    %44 = vector.load %arg10[%c0_34, %c0_35, %c0_36, %c0_37] : memref<1x12x16x16xf32, #tpu.memory_space<vmem>>, vector<1x12x1x16xf32>
    %45 = vector.shape_cast %44 : vector<1x12x1x16xf32> to vector<12x16xf32>
    %46 = vector.shape_cast %43 : vector<12x16xf32> to vector<1x12x1x16xf32>
    tpu.vector_store %arg10[%c0_34, %c0_35, %c0_36, %c0_37], %46 {strides = array<i32>} : memref<1x12x16x16xf32, #tpu.memory_space<vmem>>, vector<1x12x1x16xf32>,
    %47 = vector.extract_strided_slice %37 {offsets = [0, 16], sizes = [15, 16], strides = [1, 1]} : vector<15x256xf32> to vector<15x16xf32>
    %48 = vector.extract_strided_slice %47 {offsets = [0, 0], sizes = [3, 16], strides = [1, 1]} : vector<15x16xf32> to vector<3x16xf32>
    %c0_38 = arith.constant 0 : index
    %c0_39 = arith.constant 0 : index
    %c1_40 = arith.constant 1 : index
    %c0_41 = arith.constant 0 : index
    %49 = vector.load %arg9[%c0_38, %c0_39, %c1_40, %c0_41] : memref<1x3x16x16xf32, #tpu.memory_space<vmem>>, vector<1x3x1x16xf32>
    %50 = vector.shape_cast %49 : vector<1x3x1x16xf32> to vector<3x16xf32>
    %51 = vector.shape_cast %48 : vector<3x16xf32> to vector<1x3x1x16xf32>
    tpu.vector_store %arg9[%c0_38, %c0_39, %c1_40, %c0_41], %51 {strides = array<i32>} : memref<1x3x16x16xf32, #tpu.memory_space<vmem>>, vector<1x3x1x16xf32>,
    %52 = vector.extract_strided_slice %47 {offsets = [3, 0], sizes = [12, 16], strides = [1, 1]} : vector<15x16xf32> to vector<12x16xf32>
    %c0_42 = arith.constant 0 : index
    %c0_43 = arith.constant 0 : index
    %c1_44 = arith.constant 1 : index
    %c0_45 = arith.constant 0 : index
    %53 = vector.load %arg10[%c0_42, %c0_43, %c1_44, %c0_45] : memref<1x12x16x16xf32, #tpu.memory_space<vmem>>, vector<1x12x1x16xf32>
    %54 = vector.shape_cast %53 : vector<1x12x1x16xf32> to vector<12x16xf32>
    %55 = vector.shape_cast %52 : vector<12x16xf32> to vector<1x12x1x16xf32>
    tpu.vector_store %arg10[%c0_42, %c0_43, %c1_44, %c0_45], %55 {strides = array<i32>} : memref<1x12x16x16xf32, #tpu.memory_space<vmem>>, vector<1x12x1x16xf32>,
    %56 = vector.extract_strided_slice %37 {offsets = [0, 32], sizes = [15, 16], strides = [1, 1]} : vector<15x256xf32> to vector<15x16xf32>
    %57 = vector.extract_strided_slice %56 {offsets = [0, 0], sizes = [3, 16], strides = [1, 1]} : vector<15x16xf32> to vector<3x16xf32>
    %c0_46 = arith.constant 0 : index
    %c0_47 = arith.constant 0 : index
    %c2_48 = arith.constant 2 : index
    %c0_49 = arith.constant 0 : index
    %58 = vector.load %arg9[%c0_46, %c0_47, %c2_48, %c0_49] : memref<1x3x16x16xf32, #tpu.memory_space<vmem>>, vector<1x3x1x16xf32>
    %59 = vector.shape_cast %58 : vector<1x3x1x16xf32> to vector<3x16xf32>
    %60 = vector.shape_cast %57 : vector<3x16xf32> to vector<1x3x1x16xf32>
    tpu.vector_store %arg9[%c0_46, %c0_47, %c2_48, %c0_49], %60 {strides = array<i32>} : memref<1x3x16x16xf32, #tpu.memory_space<vmem>>, vector<1x3x1x16xf32>,
    %61 = vector.extract_strided_slice %56 {offsets = [3, 0], sizes = [12, 16], strides = [1, 1]} : vector<15x16xf32> to vector<12x16xf32>
    %c0_50 = arith.constant 0 : index
    %c0_51 = arith.constant 0 : index
    %c2_52 = arith.constant 2 : index
    %c0_53 = arith.constant 0 : index
    %62 = vector.load %arg10[%c0_50, %c0_51, %c2_52, %c0_53] : memref<1x12x16x16xf32, #tpu.memory_space<vmem>>, vector<1x12x1x16xf32>
    %63 = vector.shape_cast %62 : vector<1x12x1x16xf32> to vector<12x16xf32>
    %64 = vector.shape_cast %61 : vector<12x16xf32> to vector<1x12x1x16xf32>
    tpu.vector_store %arg10[%c0_50, %c0_51, %c2_52, %c0_53], %64 {strides = array<i32>} : memref<1x12x16x16xf32, #tpu.memory_space<vmem>>, vector<1x12x1x16xf32>,
    %65 = vector.extract_strided_slice %37 {offsets = [0, 48], sizes = [15, 16], strides = [1, 1]} : vector<15x256xf32> to vector<15x16xf32>
    %66 = vector.extract_strided_slice %65 {offsets = [0, 0], sizes = [3, 16], strides = [1, 1]} : vector<15x16xf32> to vector<3x16xf32>
    %c0_54 = arith.constant 0 : index
    %c0_55 = arith.constant 0 : index
    %c3 = arith.constant 3 : index
    %c0_56 = arith.constant 0 : index
    %67 = vector.load %arg9[%c0_54, %c0_55, %c3, %c0_56] : memref<1x3x16x16xf32, #tpu.memory_space<vmem>>, vector<1x3x1x16xf32>
    %68 = vector.shape_cast %67 : vector<1x3x1x16xf32> to vector<3x16xf32>
    %69 = vector.shape_cast %66 : vector<3x16xf32> to vector<1x3x1x16xf32>
    tpu.vector_store %arg9[%c0_54, %c0_55, %c3, %c0_56], %69 {strides = array<i32>} : memref<1x3x16x16xf32, #tpu.memory_space<vmem>>, vector<1x3x1x16xf32>,
    %70 = vector.extract_strided_slice %65 {offsets = [3, 0], sizes = [12, 16], strides = [1, 1]} : vector<15x16xf32> to vector<12x16xf32>
    %c0_57 = arith.constant 0 : index
    %c0_58 = arith.constant 0 : index
    %c3_59 = arith.constant 3 : index
    %c0_60 = arith.constant 0 : index
    %71 = vector.load %arg10[%c0_57, %c0_58, %c3_59, %c0_60] : memref<1x12x16x16xf32, #tpu.memory_space<vmem>>, vector<1x12x1x16xf32>
    %72 = vector.shape_cast %71 : vector<1x12x1x16xf32> to vector<12x16xf32>
    %73 = vector.shape_cast %70 : vector<12x16xf32> to vector<1x12x1x16xf32>
    tpu.vector_store %arg10[%c0_57, %c0_58, %c3_59, %c0_60], %73 {strides = array<i32>} : memref<1x12x16x16xf32, #tpu.memory_space<vmem>>, vector<1x12x1x16xf32>,
    %74 = vector.extract_strided_slice %37 {offsets = [0, 64], sizes = [15, 16], strides = [1, 1]} : vector<15x256xf32> to vector<15x16xf32>
    %75 = vector.extract_strided_slice %74 {offsets = [0, 0], sizes = [3, 16], strides = [1, 1]} : vector<15x16xf32> to vector<3x16xf32>
    %c0_61 = arith.constant 0 : index
    %c0_62 = arith.constant 0 : index
    %c4 = arith.constant 4 : index
    %c0_63 = arith.constant 0 : index
    %76 = vector.load %arg9[%c0_61, %c0_62, %c4, %c0_63] : memref<1x3x16x16xf32, #tpu.memory_space<vmem>>, vector<1x3x1x16xf32>
    %77 = vector.shape_cast %76 : vector<1x3x1x16xf32> to vector<3x16xf32>
    %78 = vector.shape_cast %75 : vector<3x16xf32> to vector<1x3x1x16xf32>
    tpu.vector_store %arg9[%c0_61, %c0_62, %c4, %c0_63], %78 {strides = array<i32>} : memref<1x3x16x16xf32, #tpu.memory_space<vmem>>, vector<1x3x1x16xf32>,
    %79 = vector.extract_strided_slice %74 {offsets = [3, 0], sizes = [12, 16], strides = [1, 1]} : vector<15x16xf32> to vector<12x16xf32>
    %c0_64 = arith.constant 0 : index
    %c0_65 = arith.constant 0 : index
    %c4_66 = arith.constant 4 : index
    %c0_67 = arith.constant 0 : index
    %80 = vector.load %arg10[%c0_64, %c0_65, %c4_66, %c0_67] : memref<1x12x16x16xf32, #tpu.memory_space<vmem>>, vector<1x12x1x16xf32>
    %81 = vector.shape_cast %80 : vector<1x12x1x16xf32> to vector<12x16xf32>
    %82 = vector.shape_cast %79 : vector<12x16xf32> to vector<1x12x1x16xf32>
    tpu.vector_store %arg10[%c0_64, %c0_65, %c4_66, %c0_67], %82 {strides = array<i32>} : memref<1x12x16x16xf32, #tpu.memory_space<vmem>>, vector<1x12x1x16xf32>,
    %83 = vector.extract_strided_slice %37 {offsets = [0, 80], sizes = [15, 16], strides = [1, 1]} : vector<15x256xf32> to vector<15x16xf32>
    %84 = vector.extract_strided_slice %83 {offsets = [0, 0], sizes = [3, 16], strides = [1, 1]} : vector<15x16xf32> to vector<3x16xf32>
    %c0_68 = arith.constant 0 : index
    %c0_69 = arith.constant 0 : index
    %c5 = arith.constant 5 : index
    %c0_70 = arith.constant 0 : index
    %85 = vector.load %arg9[%c0_68, %c0_69, %c5, %c0_70] : memref<1x3x16x16xf32, #tpu.memory_space<vmem>>, vector<1x3x1x16xf32>
    %86 = vector.shape_cast %85 : vector<1x3x1x16xf32> to vector<3x16xf32>
    %87 = vector.shape_cast %84 : vector<3x16xf32> to vector<1x3x1x16xf32>
    tpu.vector_store %arg9[%c0_68, %c0_69, %c5, %c0_70], %87 {strides = array<i32>} : memref<1x3x16x16xf32, #tpu.memory_space<vmem>>, vector<1x3x1x16xf32>,
    %88 = vector.extract_strided_slice %83 {offsets = [3, 0], sizes = [12, 16], strides = [1, 1]} : vector<15x16xf32> to vector<12x16xf32>
    %c0_71 = arith.constant 0 : index
    %c0_72 = arith.constant 0 : index
    %c5_73 = arith.constant 5 : index
    %c0_74 = arith.constant 0 : index
    %89 = vector.load %arg10[%c0_71, %c0_72, %c5_73, %c0_74] : memref<1x12x16x16xf32, #tpu.memory_space<vmem>>, vector<1x12x1x16xf32>
    %90 = vector.shape_cast %89 : vector<1x12x1x16xf32> to vector<12x16xf32>
    %91 = vector.shape_cast %88 : vector<12x16xf32> to vector<1x12x1x16xf32>
    tpu.vector_store %arg10[%c0_71, %c0_72, %c5_73, %c0_74], %91 {strides = array<i32>} : memref<1x12x16x16xf32, #tpu.memory_space<vmem>>, vector<1x12x1x16xf32>,
    %92 = vector.extract_strided_slice %37 {offsets = [0, 96], sizes = [15, 16], strides = [1, 1]} : vector<15x256xf32> to vector<15x16xf32>
    %93 = vector.extract_strided_slice %92 {offsets = [0, 0], sizes = [3, 16], strides = [1, 1]} : vector<15x16xf32> to vector<3x16xf32>
    %c0_75 = arith.constant 0 : index
    %c0_76 = arith.constant 0 : index
    %c6 = arith.constant 6 : index
    %c0_77 = arith.constant 0 : index
    %94 = vector.load %arg9[%c0_75, %c0_76, %c6, %c0_77] : memref<1x3x16x16xf32, #tpu.memory_space<vmem>>, vector<1x3x1x16xf32>
    %95 = vector.shape_cast %94 : vector<1x3x1x16xf32> to vector<3x16xf32>
    %96 = vector.shape_cast %93 : vector<3x16xf32> to vector<1x3x1x16xf32>
    tpu.vector_store %arg9[%c0_75, %c0_76, %c6, %c0_77], %96 {strides = array<i32>} : memref<1x3x16x16xf32, #tpu.memory_space<vmem>>, vector<1x3x1x16xf32>,
    %97 = vector.extract_strided_slice %92 {offsets = [3, 0], sizes = [12, 16], strides = [1, 1]} : vector<15x16xf32> to vector<12x16xf32>
    %c0_78 = arith.constant 0 : index
    %c0_79 = arith.constant 0 : index
    %c6_80 = arith.constant 6 : index
    %c0_81 = arith.constant 0 : index
    %98 = vector.load %arg10[%c0_78, %c0_79, %c6_80, %c0_81] : memref<1x12x16x16xf32, #tpu.memory_space<vmem>>, vector<1x12x1x16xf32>
    %99 = vector.shape_cast %98 : vector<1x12x1x16xf32> to vector<12x16xf32>
    %100 = vector.shape_cast %97 : vector<12x16xf32> to vector<1x12x1x16xf32>
    tpu.vector_store %arg10[%c0_78, %c0_79, %c6_80, %c0_81], %100 {strides = array<i32>} : memref<1x12x16x16xf32, #tpu.memory_space<vmem>>, vector<1x12x1x16xf32>,
    %101 = vector.extract_strided_slice %37 {offsets = [0, 112], sizes = [15, 16], strides = [1, 1]} : vector<15x256xf32> to vector<15x16xf32>
    %102 = vector.extract_strided_slice %101 {offsets = [0, 0], sizes = [3, 16], strides = [1, 1]} : vector<15x16xf32> to vector<3x16xf32>
    %c0_82 = arith.constant 0 : index
    %c0_83 = arith.constant 0 : index
    %c7 = arith.constant 7 : index
    %c0_84 = arith.constant 0 : index
    %103 = vector.load %arg9[%c0_82, %c0_83, %c7, %c0_84] : memref<1x3x16x16xf32, #tpu.memory_space<vmem>>, vector<1x3x1x16xf32>
    %104 = vector.shape_cast %103 : vector<1x3x1x16xf32> to vector<3x16xf32>
    %105 = vector.shape_cast %102 : vector<3x16xf32> to vector<1x3x1x16xf32>
    tpu.vector_store %arg9[%c0_82, %c0_83, %c7, %c0_84], %105 {strides = array<i32>} : memref<1x3x16x16xf32, #tpu.memory_space<vmem>>, vector<1x3x1x16xf32>,
    %106 = vector.extract_strided_slice %101 {offsets = [3, 0], sizes = [12, 16], strides = [1, 1]} : vector<15x16xf32> to vector<12x16xf32>
    %c0_85 = arith.constant 0 : index
    %c0_86 = arith.constant 0 : index
    %c7_87 = arith.constant 7 : index
    %c0_88 = arith.constant 0 : index
    %107 = vector.load %arg10[%c0_85, %c0_86, %c7_87, %c0_88] : memref<1x12x16x16xf32, #tpu.memory_space<vmem>>, vector<1x12x1x16xf32>
    %108 = vector.shape_cast %107 : vector<1x12x1x16xf32> to vector<12x16xf32>
    %109 = vector.shape_cast %106 : vector<12x16xf32> to vector<1x12x1x16xf32>
    tpu.vector_store %arg10[%c0_85, %c0_86, %c7_87, %c0_88], %109 {strides = array<i32>} : memref<1x12x16x16xf32, #tpu.memory_space<vmem>>, vector<1x12x1x16xf32>,
    %110 = vector.extract_strided_slice %37 {offsets = [0, 128], sizes = [15, 16], strides = [1, 1]} : vector<15x256xf32> to vector<15x16xf32>
    %111 = vector.extract_strided_slice %110 {offsets = [0, 0], sizes = [3, 16], strides = [1, 1]} : vector<15x16xf32> to vector<3x16xf32>
    %c0_89 = arith.constant 0 : index
    %c0_90 = arith.constant 0 : index
    %c8 = arith.constant 8 : index
    %c0_91 = arith.constant 0 : index
    %112 = vector.load %arg9[%c0_89, %c0_90, %c8, %c0_91] : memref<1x3x16x16xf32, #tpu.memory_space<vmem>>, vector<1x3x1x16xf32>
    %113 = vector.shape_cast %112 : vector<1x3x1x16xf32> to vector<3x16xf32>
    %114 = vector.shape_cast %111 : vector<3x16xf32> to vector<1x3x1x16xf32>
    tpu.vector_store %arg9[%c0_89, %c0_90, %c8, %c0_91], %114 {strides = array<i32>} : memref<1x3x16x16xf32, #tpu.memory_space<vmem>>, vector<1x3x1x16xf32>,
    %115 = vector.extract_strided_slice %110 {offsets = [3, 0], sizes = [12, 16], strides = [1, 1]} : vector<15x16xf32> to vector<12x16xf32>
    %c0_92 = arith.constant 0 : index
    %c0_93 = arith.constant 0 : index
    %c8_94 = arith.constant 8 : index
    %c0_95 = arith.constant 0 : index
    %116 = vector.load %arg10[%c0_92, %c0_93, %c8_94, %c0_95] : memref<1x12x16x16xf32, #tpu.memory_space<vmem>>, vector<1x12x1x16xf32>
    %117 = vector.shape_cast %116 : vector<1x12x1x16xf32> to vector<12x16xf32>
    %118 = vector.shape_cast %115 : vector<12x16xf32> to vector<1x12x1x16xf32>
    tpu.vector_store %arg10[%c0_92, %c0_93, %c8_94, %c0_95], %118 {strides = array<i32>} : memref<1x12x16x16xf32, #tpu.memory_space<vmem>>, vector<1x12x1x16xf32>,
    %119 = vector.extract_strided_slice %37 {offsets = [0, 144], sizes = [15, 16], strides = [1, 1]} : vector<15x256xf32> to vector<15x16xf32>
    %120 = vector.extract_strided_slice %119 {offsets = [0, 0], sizes = [3, 16], strides = [1, 1]} : vector<15x16xf32> to vector<3x16xf32>
    %c0_96 = arith.constant 0 : index
    %c0_97 = arith.constant 0 : index
    %c9 = arith.constant 9 : index
    %c0_98 = arith.constant 0 : index
    %121 = vector.load %arg9[%c0_96, %c0_97, %c9, %c0_98] : memref<1x3x16x16xf32, #tpu.memory_space<vmem>>, vector<1x3x1x16xf32>
    %122 = vector.shape_cast %121 : vector<1x3x1x16xf32> to vector<3x16xf32>
    %123 = vector.shape_cast %120 : vector<3x16xf32> to vector<1x3x1x16xf32>
    tpu.vector_store %arg9[%c0_96, %c0_97, %c9, %c0_98], %123 {strides = array<i32>} : memref<1x3x16x16xf32, #tpu.memory_space<vmem>>, vector<1x3x1x16xf32>,
    %124 = vector.extract_strided_slice %119 {offsets = [3, 0], sizes = [12, 16], strides = [1, 1]} : vector<15x16xf32> to vector<12x16xf32>
    %c0_99 = arith.constant 0 : index
    %c0_100 = arith.constant 0 : index
    %c9_101 = arith.constant 9 : index
    %c0_102 = arith.constant 0 : index
    %125 = vector.load %arg10[%c0_99, %c0_100, %c9_101, %c0_102] : memref<1x12x16x16xf32, #tpu.memory_space<vmem>>, vector<1x12x1x16xf32>
    %126 = vector.shape_cast %125 : vector<1x12x1x16xf32> to vector<12x16xf32>
    %127 = vector.shape_cast %124 : vector<12x16xf32> to vector<1x12x1x16xf32>
    tpu.vector_store %arg10[%c0_99, %c0_100, %c9_101, %c0_102], %127 {strides = array<i32>} : memref<1x12x16x16xf32, #tpu.memory_space<vmem>>, vector<1x12x1x16xf32>,
    %128 = vector.extract_strided_slice %37 {offsets = [0, 160], sizes = [15, 16], strides = [1, 1]} : vector<15x256xf32> to vector<15x16xf32>
    %129 = vector.extract_strided_slice %128 {offsets = [0, 0], sizes = [3, 16], strides = [1, 1]} : vector<15x16xf32> to vector<3x16xf32>
    %c0_103 = arith.constant 0 : index
    %c0_104 = arith.constant 0 : index
    %c10 = arith.constant 10 : index
    %c0_105 = arith.constant 0 : index
    %130 = vector.load %arg9[%c0_103, %c0_104, %c10, %c0_105] : memref<1x3x16x16xf32, #tpu.memory_space<vmem>>, vector<1x3x1x16xf32>
    %131 = vector.shape_cast %130 : vector<1x3x1x16xf32> to vector<3x16xf32>
    %132 = vector.shape_cast %129 : vector<3x16xf32> to vector<1x3x1x16xf32>
    tpu.vector_store %arg9[%c0_103, %c0_104, %c10, %c0_105], %132 {strides = array<i32>} : memref<1x3x16x16xf32, #tpu.memory_space<vmem>>, vector<1x3x1x16xf32>,
    %133 = vector.extract_strided_slice %128 {offsets = [3, 0], sizes = [12, 16], strides = [1, 1]} : vector<15x16xf32> to vector<12x16xf32>
    %c0_106 = arith.constant 0 : index
    %c0_107 = arith.constant 0 : index
    %c10_108 = arith.constant 10 : index
    %c0_109 = arith.constant 0 : index
    %134 = vector.load %arg10[%c0_106, %c0_107, %c10_108, %c0_109] : memref<1x12x16x16xf32, #tpu.memory_space<vmem>>, vector<1x12x1x16xf32>
    %135 = vector.shape_cast %134 : vector<1x12x1x16xf32> to vector<12x16xf32>
    %136 = vector.shape_cast %133 : vector<12x16xf32> to vector<1x12x1x16xf32>
    tpu.vector_store %arg10[%c0_106, %c0_107, %c10_108, %c0_109], %136 {strides = array<i32>} : memref<1x12x16x16xf32, #tpu.memory_space<vmem>>, vector<1x12x1x16xf32>,
    %137 = vector.extract_strided_slice %37 {offsets = [0, 176], sizes = [15, 16], strides = [1, 1]} : vector<15x256xf32> to vector<15x16xf32>
    %138 = vector.extract_strided_slice %137 {offsets = [0, 0], sizes = [3, 16], strides = [1, 1]} : vector<15x16xf32> to vector<3x16xf32>
    %c0_110 = arith.constant 0 : index
    %c0_111 = arith.constant 0 : index
    %c11 = arith.constant 11 : index
    %c0_112 = arith.constant 0 : index
    %139 = vector.load %arg9[%c0_110, %c0_111, %c11, %c0_112] : memref<1x3x16x16xf32, #tpu.memory_space<vmem>>, vector<1x3x1x16xf32>
    %140 = vector.shape_cast %139 : vector<1x3x1x16xf32> to vector<3x16xf32>
    %141 = vector.shape_cast %138 : vector<3x16xf32> to vector<1x3x1x16xf32>
    tpu.vector_store %arg9[%c0_110, %c0_111, %c11, %c0_112], %141 {strides = array<i32>} : memref<1x3x16x16xf32, #tpu.memory_space<vmem>>, vector<1x3x1x16xf32>,
    %142 = vector.extract_strided_slice %137 {offsets = [3, 0], sizes = [12, 16], strides = [1, 1]} : vector<15x16xf32> to vector<12x16xf32>
    %c0_113 = arith.constant 0 : index
    %c0_114 = arith.constant 0 : index
    %c11_115 = arith.constant 11 : index
    %c0_116 = arith.constant 0 : index
    %143 = vector.load %arg10[%c0_113, %c0_114, %c11_115, %c0_116] : memref<1x12x16x16xf32, #tpu.memory_space<vmem>>, vector<1x12x1x16xf32>
    %144 = vector.shape_cast %143 : vector<1x12x1x16xf32> to vector<12x16xf32>
    %145 = vector.shape_cast %142 : vector<12x16xf32> to vector<1x12x1x16xf32>
    tpu.vector_store %arg10[%c0_113, %c0_114, %c11_115, %c0_116], %145 {strides = array<i32>} : memref<1x12x16x16xf32, #tpu.memory_space<vmem>>, vector<1x12x1x16xf32>,
    %146 = vector.extract_strided_slice %37 {offsets = [0, 192], sizes = [15, 16], strides = [1, 1]} : vector<15x256xf32> to vector<15x16xf32>
    %147 = vector.extract_strided_slice %146 {offsets = [0, 0], sizes = [3, 16], strides = [1, 1]} : vector<15x16xf32> to vector<3x16xf32>
    %c0_117 = arith.constant 0 : index
    %c0_118 = arith.constant 0 : index
    %c12 = arith.constant 12 : index
    %c0_119 = arith.constant 0 : index
    %148 = vector.load %arg9[%c0_117, %c0_118, %c12, %c0_119] : memref<1x3x16x16xf32, #tpu.memory_space<vmem>>, vector<1x3x1x16xf32>
    %149 = vector.shape_cast %148 : vector<1x3x1x16xf32> to vector<3x16xf32>
    %150 = vector.shape_cast %147 : vector<3x16xf32> to vector<1x3x1x16xf32>
    tpu.vector_store %arg9[%c0_117, %c0_118, %c12, %c0_119], %150 {strides = array<i32>} : memref<1x3x16x16xf32, #tpu.memory_space<vmem>>, vector<1x3x1x16xf32>,
    %151 = vector.extract_strided_slice %146 {offsets = [3, 0], sizes = [12, 16], strides = [1, 1]} : vector<15x16xf32> to vector<12x16xf32>
    %c0_120 = arith.constant 0 : index
    %c0_121 = arith.constant 0 : index
    %c12_122 = arith.constant 12 : index
    %c0_123 = arith.constant 0 : index
    %152 = vector.load %arg10[%c0_120, %c0_121, %c12_122, %c0_123] : memref<1x12x16x16xf32, #tpu.memory_space<vmem>>, vector<1x12x1x16xf32>
    %153 = vector.shape_cast %152 : vector<1x12x1x16xf32> to vector<12x16xf32>
    %154 = vector.shape_cast %151 : vector<12x16xf32> to vector<1x12x1x16xf32>
    tpu.vector_store %arg10[%c0_120, %c0_121, %c12_122, %c0_123], %154 {strides = array<i32>} : memref<1x12x16x16xf32, #tpu.memory_space<vmem>>, vector<1x12x1x16xf32>,
    %155 = vector.extract_strided_slice %37 {offsets = [0, 208], sizes = [15, 16], strides = [1, 1]} : vector<15x256xf32> to vector<15x16xf32>
    %156 = vector.extract_strided_slice %155 {offsets = [0, 0], sizes = [3, 16], strides = [1, 1]} : vector<15x16xf32> to vector<3x16xf32>
    %c0_124 = arith.constant 0 : index
    %c0_125 = arith.constant 0 : index
    %c13 = arith.constant 13 : index
    %c0_126 = arith.constant 0 : index
    %157 = vector.load %arg9[%c0_124, %c0_125, %c13, %c0_126] : memref<1x3x16x16xf32, #tpu.memory_space<vmem>>, vector<1x3x1x16xf32>
    %158 = vector.shape_cast %157 : vector<1x3x1x16xf32> to vector<3x16xf32>
    %159 = vector.shape_cast %156 : vector<3x16xf32> to vector<1x3x1x16xf32>
    tpu.vector_store %arg9[%c0_124, %c0_125, %c13, %c0_126], %159 {strides = array<i32>} : memref<1x3x16x16xf32, #tpu.memory_space<vmem>>, vector<1x3x1x16xf32>,
    %160 = vector.extract_strided_slice %155 {offsets = [3, 0], sizes = [12, 16], strides = [1, 1]} : vector<15x16xf32> to vector<12x16xf32>
    %c0_127 = arith.constant 0 : index
    %c0_128 = arith.constant 0 : index
    %c13_129 = arith.constant 13 : index
    %c0_130 = arith.constant 0 : index
    %161 = vector.load %arg10[%c0_127, %c0_128, %c13_129, %c0_130] : memref<1x12x16x16xf32, #tpu.memory_space<vmem>>, vector<1x12x1x16xf32>
    %162 = vector.shape_cast %161 : vector<1x12x1x16xf32> to vector<12x16xf32>
    %163 = vector.shape_cast %160 : vector<12x16xf32> to vector<1x12x1x16xf32>
    tpu.vector_store %arg10[%c0_127, %c0_128, %c13_129, %c0_130], %163 {strides = array<i32>} : memref<1x12x16x16xf32, #tpu.memory_space<vmem>>, vector<1x12x1x16xf32>,
    %164 = vector.extract_strided_slice %37 {offsets = [0, 224], sizes = [15, 16], strides = [1, 1]} : vector<15x256xf32> to vector<15x16xf32>
    %165 = vector.extract_strided_slice %164 {offsets = [0, 0], sizes = [3, 16], strides = [1, 1]} : vector<15x16xf32> to vector<3x16xf32>
    %c0_131 = arith.constant 0 : index
    %c0_132 = arith.constant 0 : index
    %c14 = arith.constant 14 : index
    %c0_133 = arith.constant 0 : index
    %166 = vector.load %arg9[%c0_131, %c0_132, %c14, %c0_133] : memref<1x3x16x16xf32, #tpu.memory_space<vmem>>, vector<1x3x1x16xf32>
    %167 = vector.shape_cast %166 : vector<1x3x1x16xf32> to vector<3x16xf32>
    %168 = vector.shape_cast %165 : vector<3x16xf32> to vector<1x3x1x16xf32>
    tpu.vector_store %arg9[%c0_131, %c0_132, %c14, %c0_133], %168 {strides = array<i32>} : memref<1x3x16x16xf32, #tpu.memory_space<vmem>>, vector<1x3x1x16xf32>,
    %169 = vector.extract_strided_slice %164 {offsets = [3, 0], sizes = [12, 16], strides = [1, 1]} : vector<15x16xf32> to vector<12x16xf32>
    %c0_134 = arith.constant 0 : index
    %c0_135 = arith.constant 0 : index
    %c14_136 = arith.constant 14 : index
    %c0_137 = arith.constant 0 : index
    %170 = vector.load %arg10[%c0_134, %c0_135, %c14_136, %c0_137] : memref<1x12x16x16xf32, #tpu.memory_space<vmem>>, vector<1x12x1x16xf32>
    %171 = vector.shape_cast %170 : vector<1x12x1x16xf32> to vector<12x16xf32>
    %172 = vector.shape_cast %169 : vector<12x16xf32> to vector<1x12x1x16xf32>
    tpu.vector_store %arg10[%c0_134, %c0_135, %c14_136, %c0_137], %172 {strides = array<i32>} : memref<1x12x16x16xf32, #tpu.memory_space<vmem>>, vector<1x12x1x16xf32>,
    %173 = vector.extract_strided_slice %37 {offsets = [0, 240], sizes = [15, 16], strides = [1, 1]} : vector<15x256xf32> to vector<15x16xf32>
    %174 = vector.extract_strided_slice %173 {offsets = [0, 0], sizes = [3, 16], strides = [1, 1]} : vector<15x16xf32> to vector<3x16xf32>
    %c0_138 = arith.constant 0 : index
    %c0_139 = arith.constant 0 : index
    %c15 = arith.constant 15 : index
    %c0_140 = arith.constant 0 : index
    %175 = vector.load %arg9[%c0_138, %c0_139, %c15, %c0_140] : memref<1x3x16x16xf32, #tpu.memory_space<vmem>>, vector<1x3x1x16xf32>
    %176 = vector.shape_cast %175 : vector<1x3x1x16xf32> to vector<3x16xf32>
    %177 = vector.shape_cast %174 : vector<3x16xf32> to vector<1x3x1x16xf32>
    tpu.vector_store %arg9[%c0_138, %c0_139, %c15, %c0_140], %177 {strides = array<i32>} : memref<1x3x16x16xf32, #tpu.memory_space<vmem>>, vector<1x3x1x16xf32>,
    %178 = vector.extract_strided_slice %173 {offsets = [3, 0], sizes = [12, 16], strides = [1, 1]} : vector<15x16xf32> to vector<12x16xf32>
    %c0_141 = arith.constant 0 : index
    %c0_142 = arith.constant 0 : index
    %c15_143 = arith.constant 15 : index
    %c0_144 = arith.constant 0 : index
    %179 = vector.load %arg10[%c0_141, %c0_142, %c15_143, %c0_144] : memref<1x12x16x16xf32, #tpu.memory_space<vmem>>, vector<1x12x1x16xf32>
    %180 = vector.shape_cast %179 : vector<1x12x1x16xf32> to vector<12x16xf32>
    %181 = vector.shape_cast %178 : vector<12x16xf32> to vector<1x12x1x16xf32>
    tpu.vector_store %arg10[%c0_141, %c0_142, %c15_143, %c0_144], %181 {strides = array<i32>} : memref<1x12x16x16xf32, #tpu.memory_space<vmem>>, vector<1x12x1x16xf32>,
    return
  }
  func.func @transform_0(%arg0: i32, %arg1: i32) -> (i32, i32, i32, i32) {
    %c0_i32 = arith.constant 0 : i32
    %c0_i32_0 = arith.constant 0 : i32
    %c0_i32_1 = arith.constant 0 : i32
    return %arg0, %arg1, %c0_i32, %c0_i32_0 : i32, i32, i32, i32
  }
  func.func @transform_1(%arg0: i32, %arg1: i32) -> (i32, i32, i32, i32) {
    %c16_i32 = arith.constant 16 : i32
    %0 = arith.muli %arg1, %c16_i32 : i32
    %c1_i32 = arith.constant 1 : i32
    %1 = arith.subi %0, %c1_i32 : i32
    %c0_i32 = arith.constant 0 : i32
    %2 = arith.maxsi %1, %c0_i32 : i32
    %c0_i32_0 = arith.constant 0 : i32
    %c0_i32_1 = arith.constant 0 : i32
    %c0_i32_2 = arith.constant 0 : i32
    return %arg0, %2, %c0_i32_0, %c0_i32_1 : i32, i32, i32, i32
  }
  func.func @transform_2(%arg0: i32, %arg1: i32) -> (i32, i32, i32, i32) {
    %c1_i32 = arith.constant 1 : i32
    %0 = arith.addi %arg1, %c1_i32 : i32
    %c16_i32 = arith.constant 16 : i32
    %1 = arith.muli %0, %c16_i32 : i32
    %c31_i32 = arith.constant 31 : i32
    %2 = arith.minsi %1, %c31_i32 : i32
    %c0_i32 = arith.constant 0 : i32
    %c0_i32_0 = arith.constant 0 : i32
    %c0_i32_1 = arith.constant 0 : i32
    return %arg0, %2, %c0_i32, %c0_i32_0 : i32, i32, i32, i32
  }
  func.func @transform_3(%arg0: i32, %arg1: i32) -> (i32, i32) {
    %c0_i32 = arith.constant 0 : i32
    %c0_i32_0 = arith.constant 0 : i32
    %c0_i32_1 = arith.constant 0 : i32
    return %c0_i32, %c0_i32_0 : i32, i32
  }
  func.func @transform_4(%arg0: i32, %arg1: i32) -> (i32, i32) {
    %c0_i32 = arith.constant 0 : i32
    %c0_i32_0 = arith.constant 0 : i32
    %c0_i32_1 = arith.constant 0 : i32
    return %c0_i32, %c0_i32_0 : i32, i32
  }
  func.func @transform_5(%arg0: i32, %arg1: i32) -> (i32, i32) {
    %c0_i32 = arith.constant 0 : i32
    %c0_i32_0 = arith.constant 0 : i32
    %c0_i32_1 = arith.constant 0 : i32
    return %c0_i32, %c0_i32_0 : i32, i32
  }
  func.func @transform_6(%arg0: i32, %arg1: i32) -> (i32, i32) {
    %c0_i32 = arith.constant 0 : i32
    %c0_i32_0 = arith.constant 0 : i32
    %c0_i32_1 = arith.constant 0 : i32
    return %c0_i32, %c0_i32_0 : i32, i32
  }
  func.func @transform_7(%arg0: i32, %arg1: i32) -> (i32, i32, i32, i32) {
    %c0_i32 = arith.constant 0 : i32
    %c0_i32_0 = arith.constant 0 : i32
    %c0_i32_1 = arith.constant 0 : i32
    return %arg0, %c0_i32, %arg1, %c0_i32_0 : i32, i32, i32, i32
  }
  func.func @transform_8(%arg0: i32, %arg1: i32) -> (i32, i32, i32, i32) {
    %c0_i32 = arith.constant 0 : i32
    %c0_i32_0 = arith.constant 0 : i32
    %c0_i32_1 = arith.constant 0 : i32
    return %arg0, %c0_i32, %arg1, %c0_i32_0 : i32, i32, i32, i32
  }
}

</mosaic_0001>

<llo_original>
// kernel: rpn_head_forward.1
$region0: #{rpn_head_forward.1}
  #allocation0 [shape = 'u32[]', space=smem, size = 0x4, offset = 0x4, fixed_abs, tag = 'smem constant byte address 0x4 - core index']
  #allocation1 [shape = 'u32[144,128]{1,0:T(1,128)}', space=vmem, size = 0x12000, scoped, tag = 'internal scratch']
  #allocation2 [shape = 'f32[18,16,96]{2,1,0:T(8,128)}', space=vmem, size = 0x24000, scoped, tag = 'scratch operand']
  %s0 = inlined_call_operand.vmem [shape: f32[2,32,16,32], index: 0, kind: input, shape index: {}, may-alias: {0,1,2}]
  %s1 = inlined_call_operand.vmem [shape: f32[2,32,16,32], index: 1, kind: input, shape index: {}, may-alias: {0,1,2}]
  %s2 = inlined_call_operand.vmem [shape: f32[2,32,16,32], index: 2, kind: input, shape index: {}, may-alias: {0,1,2}]
  %s3 = inlined_call_operand.vmem [shape: f32[288,32], index: 3, kind: input, shape index: {}]
  %s4 = inlined_call_operand.vmem [shape: f32[1,32], index: 4, kind: input, shape index: {}]
  %s5 = inlined_call_operand.vmem [shape: f32[15,32], index: 5, kind: input, shape index: {}]
  %s6 = inlined_call_operand.vmem [shape: f32[15,1], index: 6, kind: input, shape index: {}]
  %s7 = inlined_call_operand.vmem [shape: f32[2,3,32,16], index: 7, kind: output, shape index: {0}]
  %s8 = inlined_call_operand.vmem [shape: f32[2,12,32,16], index: 8, kind: output, shape index: {1}]
  %9 = xla_tuple %s7, %s8
  %s10 = sld [smem:[#allocation0]]
  $region153: #{rpn_head_forward.1} parent=0
    _
  %s12 = ssub.s32 1, %s10
  %s13 = scalar_select 0, %s12, %s10
  $region1: #{rpn_head_forward.1} parent=0
    #allocation3 [shape = 'u8[49152]{0}', space=vmem, size = 0xc000, scoped, tag = 'output window, operand 0']
    #allocation4 [shape = 'u8[196608]{0}', space=vmem, size = 0x30000, scoped, tag = 'output window, operand 1']
    loop: start=0, step=1, limit=6
    $region2: #{rpn_head_forward.1} parent=1 // loop_pre_header
      _
    $region3: #{rpn_head_forward.1} parent=1 // loop_header
      %s15 = sphi 0, %s19
      %p16 = scmp.ge.s32.totalorder %s15, 6
      %s22 = sphi 0, %s34
      %s23 = sphi 0, %s30
      %s24 = sphi 0, %s22
      %s25 = sphi 0, %s23
      %s26 = sphi 0, %s24
      %s27 = sphi 0, %s25
      %s39 = sphi 0, %s41
      %s42 = sphi 0, %s39
      %s43 = sphi 0, %s42
      %s59 = sphi 0, %s43
      %s75 = sphi 0, %s77
      %s78 = sphi 0, %s75
      %s79 = sphi 0, %s78
      %s95 = sphi 0, %s79
      %s111 = sphi 0, %s113
      %s114 = sphi 0, %s111
      %s115 = sphi 0, %s114
      %s131 = sphi 0, %s115
      %s135 = sphi 0, %s135
      %s137 = sphi 0, %s135
      %s138 = sphi 0, %s137
      %s152 = sphi 0, %s138
      %s156 = sphi 0, %s156
      %s158 = sphi 0, %s156
      %s159 = sphi 0, %s158
      %s173 = sphi 0, %s159
      %s177 = sphi 0, %s177
      %s179 = sphi 0, %s177
      %s180 = sphi 0, %s179
      %s194 = sphi 0, %s180
      %s198 = sphi 0, %s198
      %s200 = sphi 0, %s198
      %s201 = sphi 0, %s200
      %s215 = sphi 0, %s201
      %s223 = sphi 0, %s225
      %s226 = sphi 0, %s223
      %s227 = sphi 0, %s226
      %s243 = sphi 0, %s227
      %s251 = sphi 0, %s253
      %s254 = sphi 0, %s251
      %s255 = sphi 0, %s254
      %s271 = sphi 0, %s255
    $region4: #{rpn_head_forward.1} parent=1 // loop_header_branch
      %18 = sbr.rel (%p16) target = $region8
    $region5: #{rpn_head_forward.1} parent=1 // loop_body
      %s20 = ssub.s32 %s15, 1
      %s21 = ssub.s32 %s15, 2
      %s28 = sadd.s32 1, %s23
      %p29 = scmp.ge.s32.totalorder %s28, 2
      %s30 = scalar_select %p29, 0, %s28
      %s31 = sadd.s32 1, %s22
      %s32 = scalar_select %p29, %s31, %s22
      %p33 = scmp.ge.s32.totalorder %s32, 2
      %s34 = scalar_select %p33, 0, %s32
      %s35 = ssub.s32 %s22, %s34
      %s36 = ssub.s32 %s23, %s30
      %s37 = sor.u32 %s35, %s36
      %p38 = scmp.eq.s32.totalorder %s37, 0
      %s40 = sadd.s32 %s39, 1
      %s41 = scalar_select %p38, %s39, %s40
      %p44 = pneg %p38
      %p45 = scmp.eq.s32.totalorder %s15, 3
      %p46 = por %p44, %p45
      %p47 = scmp.ne.s32.totalorder %s39, %s42
      %p48 = scmp.eq.s32.totalorder %s15, 0
      %p49 = por %p47, %p48
      %p50 = scmp.ne.s32.totalorder %s39, %s42
      %p51 = scmp.eq.s32.totalorder %s20, 3
      %p52 = por %p50, %p51
      %p53 = scmp.ne.s32.totalorder %s42, %s43
      %p54 = scmp.eq.s32.totalorder %s20, 0
      %p55 = por %p53, %p54
      %p56 = scmp.ne.s32.totalorder %s42, %s43
      %p57 = scmp.eq.s32.totalorder %s21, 3
      %p58 = por %p56, %p57
      %p60 = scmp.ne.s32.totalorder %s43, %s59
      %p61 = scmp.eq.s32.totalorder %s21, 0
      %p62 = por %p60, %p61
      %s63 = smul.u32 %s23, 16
      %s64 = ssub.s32 %s63, 1
      %p65 = scmp.gt.s32.totalorder %s64, 0
      %s66 = scalar_select %p65, %s64, 0
      %s67 = smul.u32 %s30, 16
      %s68 = ssub.s32 %s67, 1
      %p69 = scmp.gt.s32.totalorder %s68, 0
      %s70 = scalar_select %p69, %s68, 0
      %s71 = ssub.s32 %s22, %s34
      %s72 = ssub.s32 %s66, %s70
      %s73 = sor.u32 %s71, %s72
      %p74 = scmp.eq.s32.totalorder %s73, 0
      %s76 = sadd.s32 %s75, 1
      %s77 = scalar_select %p74, %s75, %s76
      %p80 = pneg %p74
      %p81 = scmp.eq.s32.totalorder %s15, 3
      %p82 = por %p80, %p81
      %p83 = scmp.ne.s32.totalorder %s75, %s78
      %p84 = scmp.eq.s32.totalorder %s15, 0
      %p85 = por %p83, %p84
      %p86 = scmp.ne.s32.totalorder %s75, %s78
      %p87 = scmp.eq.s32.totalorder %s20, 3
      %p88 = por %p86, %p87
      %p89 = scmp.ne.s32.totalorder %s78, %s79
      %p90 = scmp.eq.s32.totalorder %s20, 0
      %p91 = por %p89, %p90
      %p92 = scmp.ne.s32.totalorder %s78, %s79
      %p93 = scmp.eq.s32.totalorder %s21, 3
      %p94 = por %p92, %p93
      %p96 = scmp.ne.s32.totalorder %s79, %s95
      %p97 = scmp.eq.s32.totalorder %s21, 0
      %p98 = por %p96, %p97
      %s99 = sadd.s32 %s23, 1
      %s100 = smul.u32 %s99, 16
      %p101 = scmp.lt.s32.totalorder %s100, 31
      %s102 = scalar_select %p101, %s100, 31
      %s103 = sadd.s32 %s30, 1
      %s104 = smul.u32 %s103, 16
      %p105 = scmp.lt.s32.totalorder %s104, 31
      %s106 = scalar_select %p105, %s104, 31
      %s107 = ssub.s32 %s22, %s34
      %s108 = ssub.s32 %s102, %s106
      %s109 = sor.u32 %s107, %s108
      %p110 = scmp.eq.s32.totalorder %s109, 0
      %s112 = sadd.s32 %s111, 1
      %s113 = scalar_select %p110, %s111, %s112
      %p116 = pneg %p110
      %p117 = scmp.eq.s32.totalorder %s15, 3
      %p118 = por %p116, %p117
      %p119 = scmp.ne.s32.totalorder %s111, %s114
      %p120 = scmp.eq.s32.totalorder %s15, 0
      %p121 = por %p119, %p120
      %p122 = scmp.ne.s32.totalorder %s111, %s114
      %p123 = scmp.eq.s32.totalorder %s20, 3
      %p124 = por %p122, %p123
      %p125 = scmp.ne.s32.totalorder %s114, %s115
      %p126 = scmp.eq.s32.totalorder %s20, 0
      %p127 = por %p125, %p126
      %p128 = scmp.ne.s32.totalorder %s114, %s115
      %p129 = scmp.eq.s32.totalorder %s21, 3
      %p130 = por %p128, %p129
      %p132 = scmp.ne.s32.totalorder %s115, %s131
      %p133 = scmp.eq.s32.totalorder %s21, 0
      %p134 = por %p132, %p133
      %s136 = sadd.s32 %s135, 1
      %p139 = scmp.eq.s32.totalorder %s15, 3
      %p140 = scmp.ne.s32.totalorder %s135, %s137
      %p141 = scmp.eq.s32.totalorder %s15, 0
      %p142 = por %p140, %p141
      %p143 = scmp.ne.s32.totalorder %s135, %s137
      %p144 = scmp.eq.s32.totalorder %s20, 3
      %p145 = por %p143, %p144
      %p146 = scmp.ne.s32.totalorder %s137, %s138
      %p147 = scmp.eq.s32.totalorder %s20, 0
      %p148 = por %p146, %p147
      %p149 = scmp.ne.s32.totalorder %s137, %s138
      %p150 = scmp.eq.s32.totalorder %s21, 3
      %p151 = por %p149, %p150
      %p153 = scmp.ne.s32.totalorder %s138, %s152
      %p154 = scmp.eq.s32.totalorder %s21, 0
      %p155 = por %p153, %p154
      %s157 = sadd.s32 %s156, 1
      %p160 = scmp.eq.s32.totalorder %s15, 3
      %p161 = scmp.ne.s32.totalorder %s156, %s158
      %p162 = scmp.eq.s32.totalorder %s15, 0
      %p163 = por %p161, %p162
      %p164 = scmp.ne.s32.totalorder %s156, %s158
      %p165 = scmp.eq.s32.totalorder %s20, 3
      %p166 = por %p164, %p165
      %p167 = scmp.ne.s32.totalorder %s158, %s159
      %p168 = scmp.eq.s32.totalorder %s20, 0
      %p169 = por %p167, %p168
      %p170 = scmp.ne.s32.totalorder %s158, %s159
      %p171 = scmp.eq.s32.totalorder %s21, 3
      %p172 = por %p170, %p171
      %p174 = scmp.ne.s32.totalorder %s159, %s173
      %p175 = scmp.eq.s32.totalorder %s21, 0
      %p176 = por %p174, %p175
      %s178 = sadd.s32 %s177, 1
      %p181 = scmp.eq.s32.totalorder %s15, 3
      %p182 = scmp.ne.s32.totalorder %s177, %s179
      %p183 = scmp.eq.s32.totalorder %s15, 0
      %p184 = por %p182, %p183
      %p185 = scmp.ne.s32.totalorder %s177, %s179
      %p186 = scmp.eq.s32.totalorder %s20, 3
      %p187 = por %p185, %p186
      %p188 = scmp.ne.s32.totalorder %s179, %s180
      %p189 = scmp.eq.s32.totalorder %s20, 0
      %p190 = por %p188, %p189
      %p191 = scmp.ne.s32.totalorder %s179, %s180
      %p192 = scmp.eq.s32.totalorder %s21, 3
      %p193 = por %p191, %p192
      %p195 = scmp.ne.s32.totalorder %s180, %s194
      %p196 = scmp.eq.s32.totalorder %s21, 0
      %p197 = por %p195, %p196
      %s199 = sadd.s32 %s198, 1
      %p202 = scmp.eq.s32.totalorder %s15, 3
      %p203 = scmp.ne.s32.totalorder %s198, %s200
      %p204 = scmp.eq.s32.totalorder %s15, 0
      %p205 = por %p203, %p204
      %p206 = scmp.ne.s32.totalorder %s198, %s200
      %p207 = scmp.eq.s32.totalorder %s20, 3
      %p208 = por %p206, %p207
      %p209 = scmp.ne.s32.totalorder %s200, %s201
      %p210 = scmp.eq.s32.totalorder %s20, 0
      %p211 = por %p209, %p210
      %p212 = scmp.ne.s32.totalorder %s200, %s201
      %p213 = scmp.eq.s32.totalorder %s21, 3
      %p214 = por %p212, %p213
      %p216 = scmp.ne.s32.totalorder %s201, %s215
      %p217 = scmp.eq.s32.totalorder %s21, 0
      %p218 = por %p216, %p217
      %s219 = ssub.s32 %s22, %s34
      %s220 = ssub.s32 %s23, %s30
      %s221 = sor.u32 %s219, %s220
      %p222 = scmp.eq.s32.totalorder %s221, 0
      %s224 = sadd.s32 %s223, 1
      %s225 = scalar_select %p222, %s223, %s224
      %p228 = pneg %p222
      %p229 = scmp.eq.s32.totalorder %s15, 3
      %p230 = por %p228, %p229
      %p231 = scmp.ne.s32.totalorder %s223, %s226
      %p232 = scmp.eq.s32.totalorder %s15, 0
      %p233 = por %p231, %p232
      %p234 = scmp.ne.s32.totalorder %s223, %s226
      %p235 = scmp.eq.s32.totalorder %s20, 3
      %p236 = por %p234, %p235
      %p237 = scmp.ne.s32.totalorder %s226, %s227
      %p238 = scmp.eq.s32.totalorder %s20, 0
      %p239 = por %p237, %p238
      %p240 = scmp.ne.s32.totalorder %s226, %s227
      %p241 = scmp.eq.s32.totalorder %s21, 3
      %p242 = por %p240, %p241
      %p244 = scmp.ne.s32.totalorder %s227, %s243
      %p245 = scmp.eq.s32.totalorder %s21, 0
      %p246 = por %p244, %p245
      %s247 = ssub.s32 %s22, %s34
      %s248 = ssub.s32 %s23, %s30
      %s249 = sor.u32 %s247, %s248
      %p250 = scmp.eq.s32.totalorder %s249, 0
      %s252 = sadd.s32 %s251, 1
      %s253 = scalar_select %p250, %s251, %s252
      %p256 = pneg %p250
      %p257 = scmp.eq.s32.totalorder %s15, 3
      %p258 = por %p256, %p257
      %p259 = scmp.ne.s32.totalorder %s251, %s254
      %p260 = scmp.eq.s32.totalorder %s15, 0
      %p261 = por %p259, %p260
      %p262 = scmp.ne.s32.totalorder %s251, %s254
      %p263 = scmp.eq.s32.totalorder %s20, 3
      %p264 = por %p262, %p263
      %p265 = scmp.ne.s32.totalorder %s254, %s255
      %p266 = scmp.eq.s32.totalorder %s20, 0
      %p267 = por %p265, %p266
      %p268 = scmp.ne.s32.totalorder %s254, %s255
      %p269 = scmp.eq.s32.totalorder %s21, 3
      %p270 = por %p268, %p269
      %p272 = scmp.ne.s32.totalorder %s255, %s271
      %p273 = scmp.eq.s32.totalorder %s21, 0
      %p274 = por %p272, %p273
      %p275 = scmp.le.s32.totalorder 1, %s15
      %p276 = scmp.lt.s32.totalorder %s15, 5
      %p277 = pnand %p275, %p276
      %p278 = pneg %p277
      // Predicated region
      $region9: #{rpn_head_forward.1} parent=5 // pred_check
        _
      $region10: #{rpn_head_forward.1} parent=5 // pred_check_branch
        %280 = sbr.rel (%p277) target = $region12
      $region11: #{rpn_head_forward.1} parent=5 // pred_region
        %s281 = ssub.s32 %s15, 1
        // Predicated region
        $region13: #{rpn_head_forward.1} parent=11 // pred_check
          %p282 = pneg %p148
        $region14: #{rpn_head_forward.1} parent=11 // pred_check_branch
          %284 = sbr.rel (%p282) target = $region16
        $region15: #{rpn_head_forward.1} parent=11 // pred_region
          _
        $region16: #{rpn_head_forward.1} parent=11 // pred_fallthru
          _
        // Predicated region
        $region17: #{rpn_head_forward.1} parent=11 // pred_check
          %p285 = pneg %p169
        $region18: #{rpn_head_forward.1} parent=11 // pred_check_branch
          %287 = sbr.rel (%p285) target = $region20
        $region19: #{rpn_head_forward.1} parent=11 // pred_region
          _
        $region20: #{rpn_head_forward.1} parent=11 // pred_fallthru
          _
        // Predicated region
        $region21: #{rpn_head_forward.1} parent=11 // pred_check
          %p288 = pneg %p190
        $region22: #{rpn_head_forward.1} parent=11 // pred_check_branch
          %290 = sbr.rel (%p288) target = $region24
        $region23: #{rpn_head_forward.1} parent=11 // pred_region
          _
        $region24: #{rpn_head_forward.1} parent=11 // pred_fallthru
          _
        // Predicated region
        $region25: #{rpn_head_forward.1} parent=11 // pred_check
          %p291 = pneg %p211
        $region26: #{rpn_head_forward.1} parent=11 // pred_check_branch
          %293 = sbr.rel (%p291) target = $region28
        $region27: #{rpn_head_forward.1} parent=11 // pred_region
          _
        $region28: #{rpn_head_forward.1} parent=11 // pred_fallthru
          _
      $region12: #{rpn_head_forward.1} parent=5 // pred_fallthru
        _
      %p294 = scmp.lt.s32.totalorder %s15, 4
      // Predicated region
      $region29: #{rpn_head_forward.1} parent=5 // pred_check
        %p295 = pneg %p294
      $region30: #{rpn_head_forward.1} parent=5 // pred_check_branch
        %297 = sbr.rel (%p295) target = $region32
      $region31: #{rpn_head_forward.1} parent=5 // pred_region
        // Predicated region
        $region33: #{rpn_head_forward.1} parent=31 // pred_check
          %p298 = pneg %p49
        $region34: #{rpn_head_forward.1} parent=31 // pred_check_branch
          %300 = sbr.rel (%p298) target = $region36
        $region35: #{rpn_head_forward.1} parent=31 // pred_region
          %s301 = smul.u32 16, %s23
          %p302 = scmp.lt.s32.totalorder %s22, 1
          %s303 = scalar_select %p302, %s22, 1
          %p304 = scmp.lt.s32.totalorder %s301, 31
          %s305 = scalar_select %p304, %s301, 31
          %s306 = smul.addr %s305, 2
          %s307 = smul.addr %s303, 64
          %s308 = sadd.s32 %s306, %s307
          %s309 = smul.addr %s308, 8
          %s310 = scalar_lea.vmem %s0, %s309
          %s311 = smul.u32 16, %s23
        $region36: #{rpn_head_forward.1} parent=31 // pred_fallthru
          _
        // Predicated region
        $region37: #{rpn_head_forward.1} parent=31 // pred_check
          %p312 = pneg %p85
        $region38: #{rpn_head_forward.1} parent=31 // pred_check_branch
          %314 = sbr.rel (%p312) target = $region40
        $region39: #{rpn_head_forward.1} parent=31 // pred_region
          %s315 = smul.u32 %s23, 16
          %s316 = ssub.s32 %s315, 1
          %p317 = scmp.gt.s32.totalorder %s316, 0
          %s318 = scalar_select %p317, %s316, 0
          %p319 = scmp.lt.s32.totalorder %s22, 1
          %s320 = scalar_select %p319, %s22, 1
          %p321 = scmp.lt.s32.totalorder %s318, 31
          %s322 = scalar_select %p321, %s318, 31
          %s323 = smul.addr %s322, 2
          %s324 = smul.addr %s320, 64
          %s325 = sadd.s32 %s323, %s324
          %s326 = smul.addr %s325, 8
          %s327 = scalar_lea.vmem %s1, %s326
          %s328 = smul.u32 %s23, 16
          %s329 = ssub.s32 %s328, 1
          %p330 = scmp.gt.s32.totalorder %s329, 0
          %s331 = scalar_select %p330, %s329, 0
        $region40: #{rpn_head_forward.1} parent=31 // pred_fallthru
          _
        // Predicated region
        $region41: #{rpn_head_forward.1} parent=31 // pred_check
          %p332 = pneg %p121
        $region42: #{rpn_head_forward.1} parent=31 // pred_check_branch
          %334 = sbr.rel (%p332) target = $region44
        $region43: #{rpn_head_forward.1} parent=31 // pred_region
          %s335 = sadd.s32 %s23, 1
          %s336 = smul.u32 %s335, 16
          %p337 = scmp.lt.s32.totalorder %s336, 31
          %s338 = scalar_select %p337, %s336, 31
          %p339 = scmp.lt.s32.totalorder %s22, 1
          %s340 = scalar_select %p339, %s22, 1
          %p341 = scmp.lt.s32.totalorder %s338, 31
          %s342 = scalar_select %p341, %s338, 31
          %s343 = smul.addr %s342, 2
          %s344 = smul.addr %s340, 64
          %s345 = sadd.s32 %s343, %s344
          %s346 = smul.addr %s345, 8
          %s347 = scalar_lea.vmem %s2, %s346
          %s348 = sadd.s32 %s23, 1
          %s349 = smul.u32 %s348, 16
          %p350 = scmp.lt.s32.totalorder %s349, 31
          %s351 = scalar_select %p350, %s349, 31
        $region44: #{rpn_head_forward.1} parent=31 // pred_fallthru
          _
      $region32: #{rpn_head_forward.1} parent=5 // pred_fallthru
        _
      %p352 = scmp.le.s32.totalorder 1, %s15
      %p353 = scmp.lt.s32.totalorder %s15, 5
      %p354 = pnand %p352, %p353
      %p355 = pneg %p354
      // Predicated region
      $region45: #{rpn_head_forward.1} parent=5 // pred_check
        _
      $region46: #{rpn_head_forward.1} parent=5 // pred_check_branch
        %357 = sbr.rel (%p354) target = $region48
      $region47: #{rpn_head_forward.1} parent=5 // pred_region
        %s358 = ssub.s32 %s15, 1
        %s359 = smul.u32 16, %s25
        %p360 = scmp.lt.s32.totalorder %s24, 1
        %s361 = scalar_select %p360, %s24, 1
        %p362 = scmp.lt.s32.totalorder %s359, 31
        %s363 = scalar_select %p362, %s359, 31
        %s364 = smul.addr %s363, 2
        %s365 = smul.addr %s361, 64
        %s366 = sadd.s32 %s364, %s365
        %s367 = smul.addr %s366, 8
        %s368 = scalar_lea.vmem %s0, %s367
        %p369 = pneg %p55
        %p370 = pneg %p52
        %s371 = smul.u32 %s25, 16
        %s372 = ssub.s32 %s371, 1
        %p373 = scmp.gt.s32.totalorder %s372, 0
        %s374 = scalar_select %p373, %s372, 0
        %p375 = scmp.lt.s32.totalorder %s24, 1
        %s376 = scalar_select %p375, %s24, 1
        %p377 = scmp.lt.s32.totalorder %s374, 31
        %s378 = scalar_select %p377, %s374, 31
        %s379 = smul.addr %s378, 2
        %s380 = smul.addr %s376, 64
        %s381 = sadd.s32 %s379, %s380
        %s382 = smul.addr %s381, 8
        %s383 = scalar_lea.vmem %s1, %s382
        %p384 = pneg %p91
        %p385 = pneg %p88
        %s386 = sadd.s32 %s25, 1
        %s387 = smul.u32 %s386, 16
        %p388 = scmp.lt.s32.totalorder %s387, 31
        %s389 = scalar_select %p388, %s387, 31
        %p390 = scmp.lt.s32.totalorder %s24, 1
        %s391 = scalar_select %p390, %s24, 1
        %p392 = scmp.lt.s32.totalorder %s389, 31
        %s393 = scalar_select %p392, %s389, 31
        %s394 = smul.addr %s393, 2
        %s395 = smul.addr %s391, 64
        %s396 = sadd.s32 %s394, %s395
        %s397 = smul.addr %s396, 8
        %s398 = scalar_lea.vmem %s2, %s397
        %p399 = pneg %p127
        %p400 = pneg %p124
        %p401 = pneg %p148
        %p402 = pneg %p145
        %p403 = pneg %p169
        %p404 = pneg %p166
        %p405 = pneg %p190
        %p406 = pneg %p187
        %p407 = pneg %p211
        %p408 = pneg %p208
        %p409 = pneg %p239
        %p410 = pneg %p236
        %s411 = sand.u32 %s226, 1
        %s412 = sand.u32 %s226, 1
        %s413 = smul.addr %s412, 48
        %s414 = scalar_lea.vmem [#allocation3], %s413
        %p415 = pneg %p267
        %p416 = pneg %p264
        %s417 = sand.u32 %s254, 1
        %s418 = sand.u32 %s254, 1
        %s419 = smul.addr %s418, 192
        %s420 = scalar_lea.vmem [#allocation4], %s419
        %s421 = smul.u32 16, %s25
        %p422 = scmp.lt.s32.totalorder %s24, 1
        %s423 = scalar_select %p422, %s24, 1
        %p424 = scmp.lt.s32.totalorder %s421, 31
        %s425 = scalar_select %p424, %s421, 31
        %s426 = smul.addr %s425, 2
        %s427 = smul.addr %s423, 64
        %s428 = sadd.s32 %s426, %s427
        %s429 = smul.addr %s428, 8
        %s430 = scalar_lea.vmem %s0, %s429
        %s431 = smul.u32 16, %s25
        %s432 = smul.u32 %s25, 16
        %s433 = ssub.s32 %s432, 1
        %p434 = scmp.gt.s32.totalorder %s433, 0
        %s435 = scalar_select %p434, %s433, 0
        %p436 = scmp.lt.s32.totalorder %s24, 1
        %s437 = scalar_select %p436, %s24, 1
        %p438 = scmp.lt.s32.totalorder %s435, 31
        %s439 = scalar_select %p438, %s435, 31
        %s440 = smul.addr %s439, 2
        %s441 = smul.addr %s437, 64
        %s442 = sadd.s32 %s440, %s441
        %s443 = smul.addr %s442, 8
        %s444 = scalar_lea.vmem %s1, %s443
        %s445 = smul.u32 %s25, 16
        %s446 = ssub.s32 %s445, 1
        %p447 = scmp.gt.s32.totalorder %s446, 0
        %s448 = scalar_select %p447, %s446, 0
        %s449 = sadd.s32 %s25, 1
        %s450 = smul.u32 %s449, 16
        %p451 = scmp.lt.s32.totalorder %s450, 31
        %s452 = scalar_select %p451, %s450, 31
        %p453 = scmp.lt.s32.totalorder %s24, 1
        %s454 = scalar_select %p453, %s24, 1
        %p455 = scmp.lt.s32.totalorder %s452, 31
        %s456 = scalar_select %p455, %s452, 31
        %s457 = smul.addr %s456, 2
        %s458 = smul.addr %s454, 64
        %s459 = sadd.s32 %s457, %s458
        %s460 = smul.addr %s459, 8
        %s461 = scalar_lea.vmem %s2, %s460
        %s462 = sadd.s32 %s25, 1
        %s463 = smul.u32 %s462, 16
        %p464 = scmp.lt.s32.totalorder %s463, 31
        %s465 = scalar_select %p464, %s463, 31
        %s466 = smul.u32 2, %s25
        %s467 = smul.u32 2, %s25
        %v468 = vld [vmem:[%s430] sm:$0xff]
        %v469 = vld [vmem:[%s430 + $0x8] sm:$0xff]
        %v470 = vld [vmem:[%s430 + $0x10] sm:$0xff]
        %v471 = vld [vmem:[%s430 + $0x18] sm:$0xff]
        %v472 = vld [vmem:[%s430 + $0x20] sm:$0xff]
        %v473 = vld [vmem:[%s430 + $0x28] sm:$0xff]
        %v474 = vld [vmem:[%s430 + $0x30] sm:$0xff]
        %v475 = vld [vmem:[%s430 + $0x38] sm:$0xff]
        %v476 = vld [vmem:[%s430 + $0x40] sm:$0xff]
        %v477 = vld [vmem:[%s430 + $0x48] sm:$0xff]
        %v478 = vld [vmem:[%s430 + $0x50] sm:$0xff]
        %v479 = vld [vmem:[%s430 + $0x58] sm:$0xff]
        %v480 = vld [vmem:[%s430 + $0x60] sm:$0xff]
        %v481 = vld [vmem:[%s430 + $0x68] sm:$0xff]
        %v482 = vld [vmem:[%s430 + $0x70] sm:$0xff]
        %v483 = vld [vmem:[%s430 + $0x78] sm:$0xff]
        %v484 = vld [vmem:[%s430 + $0x80] sm:$0xff]
        %v485 = vld [vmem:[%s430 + $0x88] sm:$0xff]
        %v486 = vld [vmem:[%s430 + $0x90] sm:$0xff]
        %v487 = vld [vmem:[%s430 + $0x98] sm:$0xff]
        %v488 = vld [vmem:[%s430 + $0xa0] sm:$0xff]
        %v489 = vld [vmem:[%s430 + $0xa8] sm:$0xff]
        %v490 = vld [vmem:[%s430 + $0xb0] sm:$0xff]
        %v491 = vld [vmem:[%s430 + $0xb8] sm:$0xff]
        %v492 = vld [vmem:[%s430 + $0xc0] sm:$0xff]
        %v493 = vld [vmem:[%s430 + $0xc8] sm:$0xff]
        %v494 = vld [vmem:[%s430 + $0xd0] sm:$0xff]
        %v495 = vld [vmem:[%s430 + $0xd8] sm:$0xff]
        %v496 = vld [vmem:[%s430 + $0xe0] sm:$0xff]
        %v497 = vld [vmem:[%s430 + $0xe8] sm:$0xff]
        %v498 = vld [vmem:[%s430 + $0xf0] sm:$0xff]
        %v499 = vld [vmem:[%s430 + $0xf8] sm:$0xff]
        %vm532 = vcmask 1040384
        %v533 = vrot.slane %v468, 7
        %v534 = vrot.slane %v469, 7
        %v535 = vsel %vm532, %v533, %v534
        %v536 = vrot.slane %v470, 7
        %v537 = vrot.slane %v471, 7
        %v538 = vsel %vm532, %v536, %v537
        %v539 = vrot.slane %v472, 7
        %v540 = vrot.slane %v473, 7
        %v541 = vsel %vm532, %v539, %v540
        %v542 = vrot.slane %v474, 7
        %v543 = vrot.slane %v475, 7
        %v544 = vsel %vm532, %v542, %v543
        %v545 = vrot.slane %v476, 7
        %v546 = vrot.slane %v477, 7
        %v547 = vsel %vm532, %v545, %v546
        %v548 = vrot.slane %v478, 7
        %v549 = vrot.slane %v479, 7
        %v550 = vsel %vm532, %v548, %v549
        %v551 = vrot.slane %v480, 7
        %v552 = vrot.slane %v481, 7
        %v553 = vsel %vm532, %v551, %v552
        %v554 = vrot.slane %v482, 7
        %v555 = vrot.slane %v483, 7
        %v556 = vsel %vm532, %v554, %v555
        %v557 = vrot.slane %v484, 7
        %v558 = vrot.slane %v485, 7
        %v559 = vsel %vm532, %v557, %v558
        %v560 = vrot.slane %v486, 7
        %v561 = vrot.slane %v487, 7
        %v562 = vsel %vm532, %v560, %v561
        %v563 = vrot.slane %v488, 7
        %v564 = vrot.slane %v489, 7
        %v565 = vsel %vm532, %v563, %v564
        %v566 = vrot.slane %v490, 7
        %v567 = vrot.slane %v491, 7
        %v568 = vsel %vm532, %v566, %v567
        %v569 = vrot.slane %v492, 7
        %v570 = vrot.slane %v493, 7
        %v571 = vsel %vm532, %v569, %v570
        %v572 = vrot.slane %v494, 7
        %v573 = vrot.slane %v495, 7
        %v574 = vsel %vm532, %v572, %v573
        %v575 = vrot.slane %v496, 7
        %v576 = vrot.slane %v497, 7
        %v577 = vsel %vm532, %v575, %v576
        %v578 = vrot.slane %v498, 7
        %v579 = vrot.slane %v499, 7
        %v580 = vsel %vm532, %v578, %v579
        %v613 = vsel %vm532, 0.0, %v533
        %v614 = vsel %vm532, 0.0, %v536
        %v615 = vsel %vm532, 0.0, %v539
        %v616 = vsel %vm532, 0.0, %v542
        %v617 = vsel %vm532, 0.0, %v545
        %v618 = vsel %vm532, 0.0, %v548
        %v619 = vsel %vm532, 0.0, %v551
        %v620 = vsel %vm532, 0.0, %v554
        %v621 = vsel %vm532, 0.0, %v557
        %v622 = vsel %vm532, 0.0, %v560
        %v623 = vsel %vm532, 0.0, %v563
        %v624 = vsel %vm532, 0.0, %v566
        %v625 = vsel %vm532, 0.0, %v569
        %v626 = vsel %vm532, 0.0, %v572
        %v627 = vsel %vm532, 0.0, %v575
        %v628 = vsel %vm532, 0.0, %v578
        %vm629 = vcmask 1046528
        %v630 = vrot.slane %v468, 1
        %v631 = vrot.slane %v469, 1
        %v632 = vsel %vm629, %v630, %v631
        %v633 = vrot.slane %v470, 1
        %v634 = vrot.slane %v471, 1
        %v635 = vsel %vm629, %v633, %v634
        %v636 = vrot.slane %v472, 1
        %v637 = vrot.slane %v473, 1
        %v638 = vsel %vm629, %v636, %v637
        %v639 = vrot.slane %v474, 1
        %v640 = vrot.slane %v475, 1
        %v641 = vsel %vm629, %v639, %v640
        %v642 = vrot.slane %v476, 1
        %v643 = vrot.slane %v477, 1
        %v644 = vsel %vm629, %v642, %v643
        %v645 = vrot.slane %v478, 1
        %v646 = vrot.slane %v479, 1
        %v647 = vsel %vm629, %v645, %v646
        %v648 = vrot.slane %v480, 1
        %v649 = vrot.slane %v481, 1
        %v650 = vsel %vm629, %v648, %v649
        %v651 = vrot.slane %v482, 1
        %v652 = vrot.slane %v483, 1
        %v653 = vsel %vm629, %v651, %v652
        %v654 = vrot.slane %v484, 1
        %v655 = vrot.slane %v485, 1
        %v656 = vsel %vm629, %v654, %v655
        %v657 = vrot.slane %v486, 1
        %v658 = vrot.slane %v487, 1
        %v659 = vsel %vm629, %v657, %v658
        %v660 = vrot.slane %v488, 1
        %v661 = vrot.slane %v489, 1
        %v662 = vsel %vm629, %v660, %v661
        %v663 = vrot.slane %v490, 1
        %v664 = vrot.slane %v491, 1
        %v665 = vsel %vm629, %v663, %v664
        %v666 = vrot.slane %v492, 1
        %v667 = vrot.slane %v493, 1
        %v668 = vsel %vm629, %v666, %v667
        %v669 = vrot.slane %v494, 1
        %v670 = vrot.slane %v495, 1
        %v671 = vsel %vm629, %v669, %v670
        %v672 = vrot.slane %v496, 1
        %v673 = vrot.slane %v497, 1
        %v674 = vsel %vm629, %v672, %v673
        %v675 = vrot.slane %v498, 1
        %v676 = vrot.slane %v499, 1
        %v677 = vsel %vm629, %v675, %v676
        %v694 = vsel %vm629, %v631, 0.0
        %v695 = vsel %vm629, %v634, 0.0
        %v696 = vsel %vm629, %v637, 0.0
        %v697 = vsel %vm629, %v640, 0.0
        %v698 = vsel %vm629, %v643, 0.0
        %v699 = vsel %vm629, %v646, 0.0
        %v700 = vsel %vm629, %v649, 0.0
        %v701 = vsel %vm629, %v652, 0.0
        %v702 = vsel %vm629, %v655, 0.0
        %v703 = vsel %vm629, %v658, 0.0
        %v704 = vsel %vm629, %v661, 0.0
        %v705 = vsel %vm629, %v664, 0.0
        %v706 = vsel %vm629, %v667, 0.0
        %v707 = vsel %vm629, %v670, 0.0
        %v708 = vsel %vm629, %v673, 0.0
        %v709 = vsel %vm629, %v676, 0.0
        %710 = vrot.lane.b32.xlu0 %v468, 32
        %v711 = vpop.permute.xlu0 %710
        %712 = vrot.lane.b32.xlu0 %v469, 32
        %v713 = vpop.permute.xlu0 %712
        %714 = vrot.lane.b32.xlu0 %v470, 32
        %v715 = vpop.permute.xlu0 %714
        %716 = vrot.lane.b32.xlu0 %v471, 32
        %v717 = vpop.permute.xlu0 %716
        %718 = vrot.lane.b32.xlu0 %v472, 32
        %v719 = vpop.permute.xlu0 %718
        %720 = vrot.lane.b32.xlu0 %v473, 32
        %v721 = vpop.permute.xlu0 %720
        %722 = vrot.lane.b32.xlu0 %v474, 32
        %v723 = vpop.permute.xlu0 %722
        %724 = vrot.lane.b32.xlu0 %v475, 32
        %v725 = vpop.permute.xlu0 %724
        %726 = vrot.lane.b32.xlu0 %v476, 32
        %v727 = vpop.permute.xlu0 %726
        %728 = vrot.lane.b32.xlu0 %v477, 32
        %v729 = vpop.permute.xlu0 %728
        %730 = vrot.lane.b32.xlu0 %v478, 32
        %v731 = vpop.permute.xlu0 %730
        %732 = vrot.lane.b32.xlu0 %v479, 32
        %v733 = vpop.permute.xlu0 %732
        %734 = vrot.lane.b32.xlu0 %v480, 32
        %v735 = vpop.permute.xlu0 %734
        %736 = vrot.lane.b32.xlu0 %v481, 32
        %v737 = vpop.permute.xlu0 %736
        %738 = vrot.lane.b32.xlu0 %v482, 32
        %v739 = vpop.permute.xlu0 %738
        %740 = vrot.lane.b32.xlu0 %v483, 32
        %v741 = vpop.permute.xlu0 %740
        %742 = vrot.lane.b32.xlu0 %v484, 32
        %v743 = vpop.permute.xlu0 %742
        %744 = vrot.lane.b32.xlu0 %v485, 32
        %v745 = vpop.permute.xlu0 %744
        %746 = vrot.lane.b32.xlu0 %v486, 32
        %v747 = vpop.permute.xlu0 %746
        %748 = vrot.lane.b32.xlu0 %v487, 32
        %v749 = vpop.permute.xlu0 %748
        %750 = vrot.lane.b32.xlu0 %v488, 32
        %v751 = vpop.permute.xlu0 %750
        %752 = vrot.lane.b32.xlu0 %v489, 32
        %v753 = vpop.permute.xlu0 %752
        %754 = vrot.lane.b32.xlu0 %v490, 32
        %v755 = vpop.permute.xlu0 %754
        %756 = vrot.lane.b32.xlu0 %v491, 32
        %v757 = vpop.permute.xlu0 %756
        %758 = vrot.lane.b32.xlu0 %v492, 32
        %v759 = vpop.permute.xlu0 %758
        %760 = vrot.lane.b32.xlu0 %v493, 32
        %v761 = vpop.permute.xlu0 %760
        %762 = vrot.lane.b32.xlu0 %v494, 32
        %v763 = vpop.permute.xlu0 %762
        %764 = vrot.lane.b32.xlu0 %v495, 32
        %v765 = vpop.permute.xlu0 %764
        %766 = vrot.lane.b32.xlu0 %v496, 32
        %v767 = vpop.permute.xlu0 %766
        %768 = vrot.lane.b32.xlu0 %v497, 32
        %v769 = vpop.permute.xlu0 %768
        %770 = vrot.lane.b32.xlu0 %v498, 32
        %v771 = vpop.permute.xlu0 %770
        %772 = vrot.lane.b32.xlu0 %v499, 32
        %v773 = vpop.permute.xlu0 %772
        %822 = vrot.lane.b32.xlu0 %v632, 64
        %v823 = vpop.permute.xlu0 %822
        %824 = vrot.lane.b32.xlu0 %v694, 64
        %v825 = vpop.permute.xlu0 %824
        %826 = vrot.lane.b32.xlu0 %v635, 64
        %v827 = vpop.permute.xlu0 %826
        %828 = vrot.lane.b32.xlu0 %v695, 64
        %v829 = vpop.permute.xlu0 %828
        %830 = vrot.lane.b32.xlu0 %v638, 64
        %v831 = vpop.permute.xlu0 %830
        %832 = vrot.lane.b32.xlu0 %v696, 64
        %v833 = vpop.permute.xlu0 %832
        %834 = vrot.lane.b32.xlu0 %v641, 64
        %v835 = vpop.permute.xlu0 %834
        %836 = vrot.lane.b32.xlu0 %v697, 64
        %v837 = vpop.permute.xlu0 %836
        %838 = vrot.lane.b32.xlu0 %v644, 64
        %v839 = vpop.permute.xlu0 %838
        %840 = vrot.lane.b32.xlu0 %v698, 64
        %v841 = vpop.permute.xlu0 %840
        %842 = vrot.lane.b32.xlu0 %v647, 64
        %v843 = vpop.permute.xlu0 %842
        %844 = vrot.lane.b32.xlu0 %v699, 64
        %v845 = vpop.permute.xlu0 %844
        %846 = vrot.lane.b32.xlu0 %v650, 64
        %v847 = vpop.permute.xlu0 %846
        %848 = vrot.lane.b32.xlu0 %v700, 64
        %v849 = vpop.permute.xlu0 %848
        %850 = vrot.lane.b32.xlu0 %v653, 64
        %v851 = vpop.permute.xlu0 %850
        %852 = vrot.lane.b32.xlu0 %v701, 64
        %v853 = vpop.permute.xlu0 %852
        %854 = vrot.lane.b32.xlu0 %v656, 64
        %v855 = vpop.permute.xlu0 %854
        %856 = vrot.lane.b32.xlu0 %v702, 64
        %v857 = vpop.permute.xlu0 %856
        %858 = vrot.lane.b32.xlu0 %v659, 64
        %v859 = vpop.permute.xlu0 %858
        %860 = vrot.lane.b32.xlu0 %v703, 64
        %v861 = vpop.permute.xlu0 %860
        %862 = vrot.lane.b32.xlu0 %v662, 64
        %v863 = vpop.permute.xlu0 %862
        %864 = vrot.lane.b32.xlu0 %v704, 64
        %v865 = vpop.permute.xlu0 %864
        %866 = vrot.lane.b32.xlu0 %v665, 64
        %v867 = vpop.permute.xlu0 %866
        %868 = vrot.lane.b32.xlu0 %v705, 64
        %v869 = vpop.permute.xlu0 %868
        %870 = vrot.lane.b32.xlu0 %v668, 64
        %v871 = vpop.permute.xlu0 %870
        %872 = vrot.lane.b32.xlu0 %v706, 64
        %v873 = vpop.permute.xlu0 %872
        %874 = vrot.lane.b32.xlu0 %v671, 64
        %v875 = vpop.permute.xlu0 %874
        %876 = vrot.lane.b32.xlu0 %v707, 64
        %v877 = vpop.permute.xlu0 %876
        %878 = vrot.lane.b32.xlu0 %v674, 64
        %v879 = vpop.permute.xlu0 %878
        %880 = vrot.lane.b32.xlu0 %v708, 64
        %v881 = vpop.permute.xlu0 %880
        %882 = vrot.lane.b32.xlu0 %v677, 64
        %v883 = vpop.permute.xlu0 %882
        %884 = vrot.lane.b32.xlu0 %v709, 64
        %v885 = vpop.permute.xlu0 %884
        %vm918 = vcmask 261120
        %v919 = vsel %vm918, %v613, %v711
        %v920 = vsel %vm918, %v535, %v713
        %v921 = vsel %vm918, %v614, %v715
        %v922 = vsel %vm918, %v538, %v717
        %v923 = vsel %vm918, %v615, %v719
        %v924 = vsel %vm918, %v541, %v721
        %v925 = vsel %vm918, %v616, %v723
        %v926 = vsel %vm918, %v544, %v725
        %v927 = vsel %vm918, %v617, %v727
        %v928 = vsel %vm918, %v547, %v729
        %v929 = vsel %vm918, %v618, %v731
        %v930 = vsel %vm918, %v550, %v733
        %v931 = vsel %vm918, %v619, %v735
        %v932 = vsel %vm918, %v553, %v737
        %v933 = vsel %vm918, %v620, %v739
        %v934 = vsel %vm918, %v556, %v741
        %v935 = vsel %vm918, %v621, %v743
        %v936 = vsel %vm918, %v559, %v745
        %v937 = vsel %vm918, %v622, %v747
        %v938 = vsel %vm918, %v562, %v749
        %v939 = vsel %vm918, %v623, %v751
        %v940 = vsel %vm918, %v565, %v753
        %v941 = vsel %vm918, %v624, %v755
        %v942 = vsel %vm918, %v568, %v757
        %v943 = vsel %vm918, %v625, %v759
        %v944 = vsel %vm918, %v571, %v761
        %v945 = vsel %vm918, %v626, %v763
        %v946 = vsel %vm918, %v574, %v765
        %v947 = vsel %vm918, %v627, %v767
        %v948 = vsel %vm918, %v577, %v769
        %v949 = vsel %vm918, %v628, %v771
        %v950 = vsel %vm918, %v580, %v773
        %vm951 = vcmask 523264
        %v952 = vsel %vm951, %v919, %v823
        %v953 = vsel %vm951, %v920, %v825
        %v954 = vsel %vm951, %v921, %v827
        %v955 = vsel %vm951, %v922, %v829
        %v956 = vsel %vm951, %v923, %v831
        %v957 = vsel %vm951, %v924, %v833
        %v958 = vsel %vm951, %v925, %v835
        %v959 = vsel %vm951, %v926, %v837
        %v960 = vsel %vm951, %v927, %v839
        %v961 = vsel %vm951, %v928, %v841
        %v962 = vsel %vm951, %v929, %v843
        %v963 = vsel %vm951, %v930, %v845
        %v964 = vsel %vm951, %v931, %v847
        %v965 = vsel %vm951, %v932, %v849
        %v966 = vsel %vm951, %v933, %v851
        %v967 = vsel %vm951, %v934, %v853
        %v968 = vsel %vm951, %v935, %v855
        %v969 = vsel %vm951, %v936, %v857
        %v970 = vsel %vm951, %v937, %v859
        %v971 = vsel %vm951, %v938, %v861
        %v972 = vsel %vm951, %v939, %v863
        %v973 = vsel %vm951, %v940, %v865
        %v974 = vsel %vm951, %v941, %v867
        %v975 = vsel %vm951, %v942, %v869
        %v976 = vsel %vm951, %v943, %v871
        %v977 = vsel %vm951, %v944, %v873
        %v978 = vsel %vm951, %v945, %v875
        %v979 = vsel %vm951, %v946, %v877
        %v980 = vsel %vm951, %v947, %v879
        %v981 = vsel %vm951, %v948, %v881
        %v982 = vsel %vm951, %v949, %v883
        %v983 = vsel %vm951, %v950, %v885
        %s984 = scalar_lea.vmem [#allocation2], 16
        %vm985 = vcmask 785408
        %986 = vst.msk [vmem:[%s984] sm:$0xff] %vm985, %v952
        %987 = vst.msk [vmem:[%s984 + $0x8] sm:$0xff] %vm985, %v953
        %988 = vst.msk [vmem:[%s984 + $0x10] sm:$0xff] %vm985, %v954
        %989 = vst.msk [vmem:[%s984 + $0x18] sm:$0xff] %vm985, %v955
        %990 = vst.msk [vmem:[%s984 + $0x20] sm:$0xff] %vm985, %v956
        %991 = vst.msk [vmem:[%s984 + $0x28] sm:$0xff] %vm985, %v957
        %992 = vst.msk [vmem:[%s984 + $0x30] sm:$0xff] %vm985, %v958
        %993 = vst.msk [vmem:[%s984 + $0x38] sm:$0xff] %vm985, %v959
        %994 = vst.msk [vmem:[%s984 + $0x40] sm:$0xff] %vm985, %v960
        %995 = vst.msk [vmem:[%s984 + $0x48] sm:$0xff] %vm985, %v961
        %996 = vst.msk [vmem:[%s984 + $0x50] sm:$0xff] %vm985, %v962
        %997 = vst.msk [vmem:[%s984 + $0x58] sm:$0xff] %vm985, %v963
        %998 = vst.msk [vmem:[%s984 + $0x60] sm:$0xff] %vm985, %v964
        %999 = vst.msk [vmem:[%s984 + $0x68] sm:$0xff] %vm985, %v965
        %1000 = vst.msk [vmem:[%s984 + $0x70] sm:$0xff] %vm985, %v966
        %1001 = vst.msk [vmem:[%s984 + $0x78] sm:$0xff] %vm985, %v967
        %1002 = vst.msk [vmem:[%s984 + $0x80] sm:$0xff] %vm985, %v968
        %1003 = vst.msk [vmem:[%s984 + $0x88] sm:$0xff] %vm985, %v969
        %1004 = vst.msk [vmem:[%s984 + $0x90] sm:$0xff] %vm985, %v970
        %1005 = vst.msk [vmem:[%s984 + $0x98] sm:$0xff] %vm985, %v971
        %1006 = vst.msk [vmem:[%s984 + $0xa0] sm:$0xff] %vm985, %v972
        %1007 = vst.msk [vmem:[%s984 + $0xa8] sm:$0xff] %vm985, %v973
        %1008 = vst.msk [vmem:[%s984 + $0xb0] sm:$0xff] %vm985, %v974
        %1009 = vst.msk [vmem:[%s984 + $0xb8] sm:$0xff] %vm985, %v975
        %1010 = vst.msk [vmem:[%s984 + $0xc0] sm:$0xff] %vm985, %v976
        %1011 = vst.msk [vmem:[%s984 + $0xc8] sm:$0xff] %vm985, %v977
        %1012 = vst.msk [vmem:[%s984 + $0xd0] sm:$0xff] %vm985, %v978
        %1013 = vst.msk [vmem:[%s984 + $0xd8] sm:$0xff] %vm985, %v979
        %1014 = vst.msk [vmem:[%s984 + $0xe0] sm:$0xff] %vm985, %v980
        %1015 = vst.msk [vmem:[%s984 + $0xe8] sm:$0xff] %vm985, %v981
        %1016 = vst.msk [vmem:[%s984 + $0xf0] sm:$0xff] %vm985, %v982
        %1017 = vst.msk [vmem:[%s984 + $0xf8] sm:$0xff] %vm985, %v983
        %p1018 = scmp.eq.s32.totalorder %s25, 0
        // Predicated region
        $region49: #{rpn_head_forward.1} parent=47 // pred_check
          %p1019 = pneg %p1018
        $region50: #{rpn_head_forward.1} parent=47 // pred_check_branch
          %1021 = sbr.rel (%p1019) target = $region52
        $region51: #{rpn_head_forward.1} parent=47 // pred_region
          %1022 = vst.msk [vmem:[#allocation2] sm:$0xff] %vm985, 0.0
          %1023 = vst.msk [vmem:[#allocation2 + $0x8] sm:$0xff] %vm985, 0.0
        $region52: #{rpn_head_forward.1} parent=47 // pred_fallthru
          _
        %p1024 = scmp.gt.s32.totalorder %s25, 0
        // Predicated region
        $region53: #{rpn_head_forward.1} parent=47 // pred_check
          %p1025 = pneg %p1024
        $region54: #{rpn_head_forward.1} parent=47 // pred_check_branch
          %1027 = sbr.rel (%p1025) target = $region56
        $region55: #{rpn_head_forward.1} parent=47 // pred_region
          %v1028 = vld [vmem:[%s444] sm:$0xff]
          %v1029 = vld [vmem:[%s444 + $0x8] sm:$0xff]
          %v1032 = vrot.slane %v1028, 7
          %v1033 = vrot.slane %v1029, 7
          %v1034 = vsel %vm532, %v1032, %v1033
          %v1037 = vsel %vm532, 0.0, %v1032
          %v1038 = vrot.slane %v1028, 1
          %v1039 = vrot.slane %v1029, 1
          %v1040 = vsel %vm629, %v1038, %v1039
          %v1042 = vsel %vm629, %v1039, 0.0
          %1043 = vrot.lane.b32.xlu0 %v1028, 32
          %v1044 = vpop.permute.xlu0 %1043
          %1045 = vrot.lane.b32.xlu0 %v1029, 32
          %v1046 = vpop.permute.xlu0 %1045
          %1050 = vrot.lane.b32.xlu0 %v1040, 64
          %v1051 = vpop.permute.xlu0 %1050
          %1052 = vrot.lane.b32.xlu0 %v1042, 64
          %v1053 = vpop.permute.xlu0 %1052
          %v1056 = vsel %vm918, %v1037, %v1044
          %v1057 = vsel %vm918, %v1034, %v1046
          %v1058 = vsel %vm951, %v1056, %v1051
          %v1059 = vsel %vm951, %v1057, %v1053
          %1060 = vst.msk [vmem:[#allocation2] sm:$0xff] %vm985, %v1058
          %1061 = vst.msk [vmem:[#allocation2 + $0x8] sm:$0xff] %vm985, %v1059
        $region56: #{rpn_head_forward.1} parent=47 // pred_fallthru
          _
        %p1062 = scmp.eq.s32.totalorder %s25, 1
        // Predicated region
        $region57: #{rpn_head_forward.1} parent=47 // pred_check
          %p1063 = pneg %p1062
        $region58: #{rpn_head_forward.1} parent=47 // pred_check_branch
          %1065 = sbr.rel (%p1063) target = $region60
        $region59: #{rpn_head_forward.1} parent=47 // pred_region
          %s1066 = scalar_lea.vmem [#allocation2], 272
          %1067 = vst.msk [vmem:[%s1066] sm:$0xff] %vm985, 0.0
          %1068 = vst.msk [vmem:[%s1066 + $0x8] sm:$0xff] %vm985, 0.0
        $region60: #{rpn_head_forward.1} parent=47 // pred_fallthru
          _
        %p1069 = scmp.lt.s32.totalorder %s25, 1
        // Predicated region
        $region61: #{rpn_head_forward.1} parent=47 // pred_check
          %p1070 = pneg %p1069
        $region62: #{rpn_head_forward.1} parent=47 // pred_check_branch
          %1072 = sbr.rel (%p1070) target = $region64
        $region63: #{rpn_head_forward.1} parent=47 // pred_region
          %v1073 = vld [vmem:[%s461] sm:$0xff]
          %v1074 = vld [vmem:[%s461 + $0x8] sm:$0xff]
          %v1077 = vrot.slane %v1073, 7
          %v1078 = vrot.slane %v1074, 7
          %v1079 = vsel %vm532, %v1077, %v1078
          %v1082 = vsel %vm532, 0.0, %v1077
          %v1083 = vrot.slane %v1073, 1
          %v1084 = vrot.slane %v1074, 1
          %v1085 = vsel %vm629, %v1083, %v1084
          %v1087 = vsel %vm629, %v1084, 0.0
          %1088 = vrot.lane.b32.xlu0 %v1073, 32
          %v1089 = vpop.permute.xlu0 %1088
          %1090 = vrot.lane.b32.xlu0 %v1074, 32
          %v1091 = vpop.permute.xlu0 %1090
          %1095 = vrot.lane.b32.xlu0 %v1085, 64
          %v1096 = vpop.permute.xlu0 %1095
          %1097 = vrot.lane.b32.xlu0 %v1087, 64
          %v1098 = vpop.permute.xlu0 %1097
          %v1101 = vsel %vm918, %v1082, %v1089
          %v1102 = vsel %vm918, %v1079, %v1091
          %v1103 = vsel %vm951, %v1101, %v1096
          %v1104 = vsel %vm951, %v1102, %v1098
          %s1105 = scalar_lea.vmem [#allocation2], 272
          %1106 = vst.msk [vmem:[%s1105] sm:$0xff] %vm985, %v1103
          %1107 = vst.msk [vmem:[%s1105 + $0x8] sm:$0xff] %vm985, %v1104
        $region64: #{rpn_head_forward.1} parent=47 // pred_fallthru
          _
        %v1108 = vld [vmem:[#allocation2] sm:$0xff]
        %v1109 = vld [vmem:[#allocation2 + $0x8] sm:$0xff]
        %v1110 = vld [vmem:[#allocation2 + $0x10] sm:$0xff]
        %v1111 = vld [vmem:[#allocation2 + $0x18] sm:$0xff]
        %v1112 = vld [vmem:[#allocation2 + $0x20] sm:$0xff]
        %v1113 = vld [vmem:[#allocation2 + $0x28] sm:$0xff]
        %v1114 = vld [vmem:[#allocation2 + $0x30] sm:$0xff]
        %v1115 = vld [vmem:[#allocation2 + $0x38] sm:$0xff]
        %v1116 = vld [vmem:[#allocation2 + $0x40] sm:$0xff]
        %v1117 = vld [vmem:[#allocation2 + $0x48] sm:$0xff]
        %v1118 = vld [vmem:[#allocation2 + $0x50] sm:$0xff]
        %v1119 = vld [vmem:[#allocation2 + $0x58] sm:$0xff]
        %v1120 = vld [vmem:[#allocation2 + $0x60] sm:$0xff]
        %v1121 = vld [vmem:[#allocation2 + $0x68] sm:$0xff]
        %v1122 = vld [vmem:[#allocation2 + $0x70] sm:$0xff]
        %v1123 = vld [vmem:[#allocation2 + $0x78] sm:$0xff]
        %v1124 = vld [vmem:[#allocation2 + $0x80] sm:$0xff]
        %v1125 = vld [vmem:[#allocation2 + $0x88] sm:$0xff]
        %v1126 = vld [vmem:[#allocation2 + $0x90] sm:$0xff]
        %v1127 = vld [vmem:[#allocation2 + $0x98] sm:$0xff]
        %v1128 = vld [vmem:[#allocation2 + $0xa0] sm:$0xff]
        %v1129 = vld [vmem:[#allocation2 + $0xa8] sm:$0xff]
        %v1130 = vld [vmem:[#allocation2 + $0xb0] sm:$0xff]
        %v1131 = vld [vmem:[#allocation2 + $0xb8] sm:$0xff]
        %v1132 = vld [vmem:[#allocation2 + $0xc0] sm:$0xff]
        %v1133 = vld [vmem:[#allocation2 + $0xc8] sm:$0xff]
        %v1134 = vld [vmem:[#allocation2 + $0xd0] sm:$0xff]
        %v1135 = vld [vmem:[#allocation2 + $0xd8] sm:$0xff]
        %v1136 = vld [vmem:[#allocation2 + $0xe0] sm:$0xff]
        %v1137 = vld [vmem:[#allocation2 + $0xe8] sm:$0xff]
        %v1138 = vld [vmem:[#allocation2 + $0xf0] sm:$0xff]
        %v1139 = vld [vmem:[#allocation2 + $0xf8] sm:$0xff]
        %v1140 = vld [vmem:[%s984] sm:$0xff]
        %v1141 = vld [vmem:[%s984 + $0x8] sm:$0xff]
        %v1142 = vld [vmem:[%s984 + $0x10] sm:$0xff]
        %v1143 = vld [vmem:[%s984 + $0x18] sm:$0xff]
        %v1144 = vld [vmem:[%s984 + $0x20] sm:$0xff]
        %v1145 = vld [vmem:[%s984 + $0x28] sm:$0xff]
        %v1146 = vld [vmem:[%s984 + $0x30] sm:$0xff]
        %v1147 = vld [vmem:[%s984 + $0x38] sm:$0xff]
        %v1148 = vld [vmem:[%s984 + $0x40] sm:$0xff]
        %v1149 = vld [vmem:[%s984 + $0x48] sm:$0xff]
        %v1150 = vld [vmem:[%s984 + $0x50] sm:$0xff]
        %v1151 = vld [vmem:[%s984 + $0x58] sm:$0xff]
        %v1152 = vld [vmem:[%s984 + $0x60] sm:$0xff]
        %v1153 = vld [vmem:[%s984 + $0x68] sm:$0xff]
        %v1154 = vld [vmem:[%s984 + $0x70] sm:$0xff]
        %v1155 = vld [vmem:[%s984 + $0x78] sm:$0xff]
        %v1156 = vld [vmem:[%s984 + $0x80] sm:$0xff]
        %v1157 = vld [vmem:[%s984 + $0x88] sm:$0xff]
        %v1158 = vld [vmem:[%s984 + $0x90] sm:$0xff]
        %v1159 = vld [vmem:[%s984 + $0x98] sm:$0xff]
        %v1160 = vld [vmem:[%s984 + $0xa0] sm:$0xff]
        %v1161 = vld [vmem:[%s984 + $0xa8] sm:$0xff]
        %v1162 = vld [vmem:[%s984 + $0xb0] sm:$0xff]
        %v1163 = vld [vmem:[%s984 + $0xb8] sm:$0xff]
        %v1164 = vld [vmem:[%s984 + $0xc0] sm:$0xff]
        %v1165 = vld [vmem:[%s984 + $0xc8] sm:$0xff]
        %v1166 = vld [vmem:[%s984 + $0xd0] sm:$0xff]
        %v1167 = vld [vmem:[%s984 + $0xd8] sm:$0xff]
        %v1168 = vld [vmem:[%s984 + $0xe0] sm:$0xff]
        %v1169 = vld [vmem:[%s984 + $0xe8] sm:$0xff]
        %v1170 = vld [vmem:[%s984 + $0xf0] sm:$0xff]
        %v1171 = vld [vmem:[%s984 + $0xf8] sm:$0xff]
        %s1172 = scalar_lea.vmem [#allocation2], 32
        %v1173 = vld [vmem:[%s1172] sm:$0xff]
        %v1174 = vld [vmem:[%s1172 + $0x8] sm:$0xff]
        %v1175 = vld [vmem:[%s1172 + $0x10] sm:$0xff]
        %v1176 = vld [vmem:[%s1172 + $0x18] sm:$0xff]
        %v1177 = vld [vmem:[%s1172 + $0x20] sm:$0xff]
        %v1178 = vld [vmem:[%s1172 + $0x28] sm:$0xff]
        %v1179 = vld [vmem:[%s1172 + $0x30] sm:$0xff]
        %v1180 = vld [vmem:[%s1172 + $0x38] sm:$0xff]
        %v1181 = vld [vmem:[%s1172 + $0x40] sm:$0xff]
        %v1182 = vld [vmem:[%s1172 + $0x48] sm:$0xff]
        %v1183 = vld [vmem:[%s1172 + $0x50] sm:$0xff]
        %v1184 = vld [vmem:[%s1172 + $0x58] sm:$0xff]
        %v1185 = vld [vmem:[%s1172 + $0x60] sm:$0xff]
        %v1186 = vld [vmem:[%s1172 + $0x68] sm:$0xff]
        %v1187 = vld [vmem:[%s1172 + $0x70] sm:$0xff]
        %v1188 = vld [vmem:[%s1172 + $0x78] sm:$0xff]
        %v1189 = vld [vmem:[%s1172 + $0x80] sm:$0xff]
        %v1190 = vld [vmem:[%s1172 + $0x88] sm:$0xff]
        %v1191 = vld [vmem:[%s1172 + $0x90] sm:$0xff]
        %v1192 = vld [vmem:[%s1172 + $0x98] sm:$0xff]
        %v1193 = vld [vmem:[%s1172 + $0xa0] sm:$0xff]
        %v1194 = vld [vmem:[%s1172 + $0xa8] sm:$0xff]
        %v1195 = vld [vmem:[%s1172 + $0xb0] sm:$0xff]
        %v1196 = vld [vmem:[%s1172 + $0xb8] sm:$0xff]
        %v1197 = vld [vmem:[%s1172 + $0xc0] sm:$0xff]
        %v1198 = vld [vmem:[%s1172 + $0xc8] sm:$0xff]
        %v1199 = vld [vmem:[%s1172 + $0xd0] sm:$0xff]
        %v1200 = vld [vmem:[%s1172 + $0xd8] sm:$0xff]
        %v1201 = vld [vmem:[%s1172 + $0xe0] sm:$0xff]
        %v1202 = vld [vmem:[%s1172 + $0xe8] sm:$0xff]
        %v1203 = vld [vmem:[%s1172 + $0xf0] sm:$0xff]
        %v1204 = vld [vmem:[%s1172 + $0xf8] sm:$0xff]
        %1237 = vrot.lane.b32.xlu0 %v1140, 96
        %v1238 = vpop.permute.xlu0 %1237
        %1239 = vrot.lane.b32.xlu0 %v1141, 96
        %v1240 = vpop.permute.xlu0 %1239
        %1241 = vrot.lane.b32.xlu0 %v1142, 96
        %v1242 = vpop.permute.xlu0 %1241
        %1243 = vrot.lane.b32.xlu0 %v1143, 96
        %v1244 = vpop.permute.xlu0 %1243
        %1245 = vrot.lane.b32.xlu0 %v1144, 96
        %v1246 = vpop.permute.xlu0 %1245
        %1247 = vrot.lane.b32.xlu0 %v1145, 96
        %v1248 = vpop.permute.xlu0 %1247
        %1249 = vrot.lane.b32.xlu0 %v1146, 96
        %v1250 = vpop.permute.xlu0 %1249
        %1251 = vrot.lane.b32.xlu0 %v1147, 96
        %v1252 = vpop.permute.xlu0 %1251
        %1253 = vrot.lane.b32.xlu0 %v1148, 96
        %v1254 = vpop.permute.xlu0 %1253
        %1255 = vrot.lane.b32.xlu0 %v1149, 96
        %v1256 = vpop.permute.xlu0 %1255
        %1257 = vrot.lane.b32.xlu0 %v1150, 96
        %v1258 = vpop.permute.xlu0 %1257
        %1259 = vrot.lane.b32.xlu0 %v1151, 96
        %v1260 = vpop.permute.xlu0 %1259
        %1261 = vrot.lane.b32.xlu0 %v1152, 96
        %v1262 = vpop.permute.xlu0 %1261
        %1263 = vrot.lane.b32.xlu0 %v1153, 96
        %v1264 = vpop.permute.xlu0 %1263
        %1265 = vrot.lane.b32.xlu0 %v1154, 96
        %v1266 = vpop.permute.xlu0 %1265
        %1267 = vrot.lane.b32.xlu0 %v1155, 96
        %v1268 = vpop.permute.xlu0 %1267
        %1269 = vrot.lane.b32.xlu0 %v1156, 96
        %v1270 = vpop.permute.xlu0 %1269
        %1271 = vrot.lane.b32.xlu0 %v1157, 96
        %v1272 = vpop.permute.xlu0 %1271
        %1273 = vrot.lane.b32.xlu0 %v1158, 96
        %v1274 = vpop.permute.xlu0 %1273
        %1275 = vrot.lane.b32.xlu0 %v1159, 96
        %v1276 = vpop.permute.xlu0 %1275
        %1277 = vrot.lane.b32.xlu0 %v1160, 96
        %v1278 = vpop.permute.xlu0 %1277
        %1279 = vrot.lane.b32.xlu0 %v1161, 96
        %v1280 = vpop.permute.xlu0 %1279
        %1281 = vrot.lane.b32.xlu0 %v1162, 96
        %v1282 = vpop.permute.xlu0 %1281
        %1283 = vrot.lane.b32.xlu0 %v1163, 96
        %v1284 = vpop.permute.xlu0 %1283
        %1285 = vrot.lane.b32.xlu0 %v1164, 96
        %v1286 = vpop.permute.xlu0 %1285
        %1287 = vrot.lane.b32.xlu0 %v1165, 96
        %v1288 = vpop.permute.xlu0 %1287
        %1289 = vrot.lane.b32.xlu0 %v1166, 96
        %v1290 = vpop.permute.xlu0 %1289
        %1291 = vrot.lane.b32.xlu0 %v1167, 96
        %v1292 = vpop.permute.xlu0 %1291
        %1293 = vrot.lane.b32.xlu0 %v1168, 96
        %v1294 = vpop.permute.xlu0 %1293
        %1295 = vrot.lane.b32.xlu0 %v1169, 96
        %v1296 = vpop.permute.xlu0 %1295
        %1297 = vrot.lane.b32.xlu0 %v1170, 96
        %v1298 = vpop.permute.xlu0 %1297
        %1299 = vrot.lane.b32.xlu0 %v1171, 96
        %v1300 = vpop.permute.xlu0 %1299
        %1365 = vrot.lane.b32.xlu0 %v1173, 64
        %v1366 = vpop.permute.xlu0 %1365
        %1367 = vrot.lane.b32.xlu0 %v1174, 64
        %v1368 = vpop.permute.xlu0 %1367
        %1369 = vrot.lane.b32.xlu0 %v1175, 64
        %v1370 = vpop.permute.xlu0 %1369
        %1371 = vrot.lane.b32.xlu0 %v1176, 64
        %v1372 = vpop.permute.xlu0 %1371
        %1373 = vrot.lane.b32.xlu0 %v1177, 64
        %v1374 = vpop.permute.xlu0 %1373
        %1375 = vrot.lane.b32.xlu0 %v1178, 64
        %v1376 = vpop.permute.xlu0 %1375
        %1377 = vrot.lane.b32.xlu0 %v1179, 64
        %v1378 = vpop.permute.xlu0 %1377
        %1379 = vrot.lane.b32.xlu0 %v1180, 64
        %v1380 = vpop.permute.xlu0 %1379
        %1381 = vrot.lane.b32.xlu0 %v1181, 64
        %v1382 = vpop.permute.xlu0 %1381
        %1383 = vrot.lane.b32.xlu0 %v1182, 64
        %v1384 = vpop.permute.xlu0 %1383
        %1385 = vrot.lane.b32.xlu0 %v1183, 64
        %v1386 = vpop.permute.xlu0 %1385
        %1387 = vrot.lane.b32.xlu0 %v1184, 64
        %v1388 = vpop.permute.xlu0 %1387
        %1389 = vrot.lane.b32.xlu0 %v1185, 64
        %v1390 = vpop.permute.xlu0 %1389
        %1391 = vrot.lane.b32.xlu0 %v1186, 64
        %v1392 = vpop.permute.xlu0 %1391
        %1393 = vrot.lane.b32.xlu0 %v1187, 64
        %v1394 = vpop.permute.xlu0 %1393
        %1395 = vrot.lane.b32.xlu0 %v1188, 64
        %v1396 = vpop.permute.xlu0 %1395
        %1397 = vrot.lane.b32.xlu0 %v1189, 64
        %v1398 = vpop.permute.xlu0 %1397
        %1399 = vrot.lane.b32.xlu0 %v1190, 64
        %v1400 = vpop.permute.xlu0 %1399
        %1401 = vrot.lane.b32.xlu0 %v1191, 64
        %v1402 = vpop.permute.xlu0 %1401
        %1403 = vrot.lane.b32.xlu0 %v1192, 64
        %v1404 = vpop.permute.xlu0 %1403
        %1405 = vrot.lane.b32.xlu0 %v1193, 64
        %v1406 = vpop.permute.xlu0 %1405
        %1407 = vrot.lane.b32.xlu0 %v1194, 64
        %v1408 = vpop.permute.xlu0 %1407
        %1409 = vrot.lane.b32.xlu0 %v1195, 64
        %v1410 = vpop.permute.xlu0 %1409
        %1411 = vrot.lane.b32.xlu0 %v1196, 64
        %v1412 = vpop.permute.xlu0 %1411
        %1413 = vrot.lane.b32.xlu0 %v1197, 64
        %v1414 = vpop.permute.xlu0 %1413
        %1415 = vrot.lane.b32.xlu0 %v1198, 64
        %v1416 = vpop.permute.xlu0 %1415
        %1417 = vrot.lane.b32.xlu0 %v1199, 64
        %v1418 = vpop.permute.xlu0 %1417
        %1419 = vrot.lane.b32.xlu0 %v1200, 64
        %v1420 = vpop.permute.xlu0 %1419
        %1421 = vrot.lane.b32.xlu0 %v1201, 64
        %v1422 = vpop.permute.xlu0 %1421
        %1423 = vrot.lane.b32.xlu0 %v1202, 64
        %v1424 = vpop.permute.xlu0 %1423
        %1425 = vrot.lane.b32.xlu0 %v1203, 64
        %v1426 = vpop.permute.xlu0 %1425
        %1427 = vrot.lane.b32.xlu0 %v1204, 64
        %v1428 = vpop.permute.xlu0 %1427
        %v1461 = vsel %vm985, %v1108, %v1238
        %v1462 = vsel %vm985, %v1109, %v1240
        %v1463 = vsel %vm985, %v1110, %v1242
        %v1464 = vsel %vm985, %v1111, %v1244
        %v1465 = vsel %vm985, %v1112, %v1246
        %v1466 = vsel %vm985, %v1113, %v1248
        %v1467 = vsel %vm985, %v1114, %v1250
        %v1468 = vsel %vm985, %v1115, %v1252
        %v1469 = vsel %vm985, %v1116, %v1254
        %v1470 = vsel %vm985, %v1117, %v1256
        %v1471 = vsel %vm985, %v1118, %v1258
        %v1472 = vsel %vm985, %v1119, %v1260
        %v1473 = vsel %vm985, %v1120, %v1262
        %v1474 = vsel %vm985, %v1121, %v1264
        %v1475 = vsel %vm985, %v1122, %v1266
        %v1476 = vsel %vm985, %v1123, %v1268
        %v1477 = vsel %vm985, %v1124, %v1270
        %v1478 = vsel %vm985, %v1125, %v1272
        %v1479 = vsel %vm985, %v1126, %v1274
        %v1480 = vsel %vm985, %v1127, %v1276
        %v1481 = vsel %vm985, %v1128, %v1278
        %v1482 = vsel %vm985, %v1129, %v1280
        %v1483 = vsel %vm985, %v1130, %v1282
        %v1484 = vsel %vm985, %v1131, %v1284
        %v1485 = vsel %vm985, %v1132, %v1286
        %v1486 = vsel %vm985, %v1133, %v1288
        %v1487 = vsel %vm985, %v1134, %v1290
        %v1488 = vsel %vm985, %v1135, %v1292
        %v1489 = vsel %vm985, %v1136, %v1294
        %v1490 = vsel %vm985, %v1137, %v1296
        %v1491 = vsel %vm985, %v1138, %v1298
        %v1492 = vsel %vm985, %v1139, %v1300
        %v1493 = vsel %vm951, %v1238, %v1366
        %v1494 = vsel %vm951, %v1240, %v1368
        %v1495 = vsel %vm951, %v1242, %v1370
        %v1496 = vsel %vm951, %v1244, %v1372
        %v1497 = vsel %vm951, %v1246, %v1374
        %v1498 = vsel %vm951, %v1248, %v1376
        %v1499 = vsel %vm951, %v1250, %v1378
        %v1500 = vsel %vm951, %v1252, %v1380
        %v1501 = vsel %vm951, %v1254, %v1382
        %v1502 = vsel %vm951, %v1256, %v1384
        %v1503 = vsel %vm951, %v1258, %v1386
        %v1504 = vsel %vm951, %v1260, %v1388
        %v1505 = vsel %vm951, %v1262, %v1390
        %v1506 = vsel %vm951, %v1264, %v1392
        %v1507 = vsel %vm951, %v1266, %v1394
        %v1508 = vsel %vm951, %v1268, %v1396
        %v1509 = vsel %vm951, %v1270, %v1398
        %v1510 = vsel %vm951, %v1272, %v1400
        %v1511 = vsel %vm951, %v1274, %v1402
        %v1512 = vsel %vm951, %v1276, %v1404
        %v1513 = vsel %vm951, %v1278, %v1406
        %v1514 = vsel %vm951, %v1280, %v1408
        %v1515 = vsel %vm951, %v1282, %v1410
        %v1516 = vsel %vm951, %v1284, %v1412
        %v1517 = vsel %vm951, %v1286, %v1414
        %v1518 = vsel %vm951, %v1288, %v1416
        %v1519 = vsel %vm951, %v1290, %v1418
        %v1520 = vsel %vm951, %v1292, %v1420
        %v1521 = vsel %vm951, %v1294, %v1422
        %v1522 = vsel %vm951, %v1296, %v1424
        %v1523 = vsel %vm951, %v1298, %v1426
        %v1524 = vsel %vm951, %v1300, %v1428
        %v1525 = vld [vmem:[%s3] sm:$0xff]
        %v1526 = vld [vmem:[%s3 + $0x8] sm:$0xff]
        %v1527 = vld [vmem:[%s3 + $0x10] sm:$0xff]
        %v1528 = vld [vmem:[%s3 + $0x18] sm:$0xff]
        %v1529 = vld [vmem:[%s3 + $0x20] sm:$0xff]
        %v1530 = vld [vmem:[%s3 + $0x28] sm:$0xff]
        %v1531 = vld [vmem:[%s3 + $0x30] sm:$0xff]
        %v1532 = vld [vmem:[%s3 + $0x38] sm:$0xff]
        %v1533 = vld [vmem:[%s3 + $0x40] sm:$0xff]
        %v1534 = vld [vmem:[%s3 + $0x48] sm:$0xff]
        %v1535 = vld [vmem:[%s3 + $0x50] sm:$0xff]
        %v1536 = vld [vmem:[%s3 + $0x58] sm:$0xff]
        %v1537 = vld [vmem:[%s3 + $0x60] sm:$0xff]
        %v1538 = vld [vmem:[%s3 + $0x68] sm:$0xff]
        %v1539 = vld [vmem:[%s3 + $0x70] sm:$0xff]
        %v1540 = vld [vmem:[%s3 + $0x78] sm:$0xff]
        %v1541 = vld [vmem:[%s3 + $0x80] sm:$0xff]
        %v1542 = vld [vmem:[%s3 + $0x88] sm:$0xff]
        %v1543 = vld [vmem:[%s3 + $0x90] sm:$0xff]
        %v1544 = vld [vmem:[%s3 + $0x98] sm:$0xff]
        %v1545 = vld [vmem:[%s3 + $0xa0] sm:$0xff]
        %v1546 = vld [vmem:[%s3 + $0xa8] sm:$0xff]
        %v1547 = vld [vmem:[%s3 + $0xb0] sm:$0xff]
        %v1548 = vld [vmem:[%s3 + $0xb8] sm:$0xff]
        %v1549 = vld [vmem:[%s3 + $0xc0] sm:$0xff]
        %v1550 = vld [vmem:[%s3 + $0xc8] sm:$0xff]
        %v1551 = vld [vmem:[%s3 + $0xd0] sm:$0xff]
        %v1552 = vld [vmem:[%s3 + $0xd8] sm:$0xff]
        %v1553 = vld [vmem:[%s3 + $0xe0] sm:$0xff]
        %v1554 = vld [vmem:[%s3 + $0xe8] sm:$0xff]
        %v1555 = vld [vmem:[%s3 + $0xf0] sm:$0xff]
        %v1556 = vld [vmem:[%s3 + $0xf8] sm:$0xff]
        %v1557 = vld [vmem:[%s3 + $0x100] sm:$0xff]
        %v1558 = vld [vmem:[%s3 + $0x108] sm:$0xff]
        %v1559 = vld [vmem:[%s3 + $0x110] sm:$0xff]
        %v1560 = vld [vmem:[%s3 + $0x118] sm:$0xff]
        %v1561 = vld [vmem:[%s4] sm:$0x1]
        %v1563 = vlaneseq
        %v1564 = vshrl.u32 %v1563, 7
        %v1565 = vsub.s32 0, %v1564
        %v1566 = vrot.slane %v1561, %v1565
        %v1568 = vsel %vm918, %v1366, 0
        %v1570 = vsel %vm918, %v1368, 0
        %v1572 = vsel %vm918, %v1370, 0
        %v1574 = vsel %vm918, %v1372, 0
        %v1576 = vsel %vm918, %v1374, 0
        %v1578 = vsel %vm918, %v1376, 0
        %v1580 = vsel %vm918, %v1378, 0
        %v1582 = vsel %vm918, %v1380, 0
        %v1584 = vsel %vm918, %v1382, 0
        %v1586 = vsel %vm918, %v1384, 0
        %v1588 = vsel %vm918, %v1386, 0
        %v1590 = vsel %vm918, %v1388, 0
        %v1592 = vsel %vm918, %v1390, 0
        %v1594 = vsel %vm918, %v1392, 0
        %v1596 = vsel %vm918, %v1394, 0
        %v1598 = vsel %vm918, %v1396, 0
        %v1600 = vsel %vm918, %v1398, 0
        %v1602 = vsel %vm918, %v1400, 0
        %v1604 = vsel %vm918, %v1402, 0
        %v1606 = vsel %vm918, %v1404, 0
        %v1608 = vsel %vm918, %v1406, 0
        %v1610 = vsel %vm918, %v1408, 0
        %v1612 = vsel %vm918, %v1410, 0
        %v1614 = vsel %vm918, %v1412, 0
        %v1616 = vsel %vm918, %v1414, 0
        %v1618 = vsel %vm918, %v1416, 0
        %v1620 = vsel %vm918, %v1418, 0
        %v1622 = vsel %vm918, %v1420, 0
        %v1624 = vsel %vm918, %v1422, 0
        %v1626 = vsel %vm918, %v1424, 0
        %v1628 = vsel %vm918, %v1426, 0
        %v1630 = vsel %vm918, %v1428, 0
        %1632 = vmatprep.subr.mxu0 0.0
        %1633 = vmatpush1.msra.mxu0 %v1525
        %1634 = vmatprep.subr.mxu0 0.0
        %1635 = vmatpush1.msra.mxu0 %v1526
        %1636 = vmatprep.subr.mxu0 0.0
        %1637 = vmatpush1.msra.mxu0 %v1527
        %1638 = vmatprep.subr.mxu0 0.0
        %1639 = vmatpush1.msra.mxu0 %v1528
        %1640 = vmatprep.subr.mxu0 0.0
        %1641 = vmatpush1.msra.mxu0 %v1529
        %1642 = vmatprep.subr.mxu0 0.0
        %1643 = vmatpush1.msra.mxu0 %v1530
        %1644 = vmatprep.subr.mxu0 0.0
        %1645 = vmatpush1.msra.mxu0 %v1531
        %1646 = vmatprep.subr.mxu0 0.0
        %1647 = vmatpush1.msra.mxu0 %v1532
        %1648 = vmatprep.subr.mxu0 0.0
        %1649 = vmatpush1.msra.mxu0 %v1533
        %1650 = vmatprep.subr.mxu0 0.0
        %1651 = vmatpush1.msra.mxu0 %v1534
        %1652 = vmatprep.subr.mxu0 0.0
        %1653 = vmatpush1.msra.mxu0 %v1535
        %1654 = vmatprep.subr.mxu0 0.0
        %1655 = vmatpush1.msra.mxu0 %v1536
        %1656 = vmatprep.subr.mxu0 0.0
        %1657 = vmatpush1.msra.mxu0 %v1537
        %1658 = vmatprep.subr.mxu0 0.0
        %1659 = vmatpush1.msra.mxu0 %v1538
        %1660 = vmatprep.subr.mxu0 0.0
        %1661 = vmatpush1.msra.mxu0 %v1539
        %1662 = vmatprep.subr.mxu0 0.0
        %1663 = vmatpush1.msra.mxu0 %v1540
        %1664 = vmatprep.subr.mxu0 0.0
        %1665 = vmatpush1.msra.mxu0 %v1541
        %1666 = vmatprep.subr.mxu0 0.0
        %1667 = vmatpush1.msra.mxu0 %v1542
        %1668 = vmatprep.subr.mxu0 0.0
        %1669 = vmatpush1.msra.mxu0 %v1543
        %1670 = vmatprep.subr.mxu0 0.0
        %1671 = vmatpush1.msra.mxu0 %v1544
        %1672 = vmatprep.subr.mxu0 0.0
        %1673 = vmatpush1.msra.mxu0 %v1545
        %1674 = vmatprep.subr.mxu0 0.0
        %1675 = vmatpush1.msra.mxu0 %v1546
        %1676 = vmatprep.subr.mxu0 0.0
        %1677 = vmatpush1.msra.mxu0 %v1547
        %1678 = vmatprep.subr.mxu0 0.0
        %1679 = vmatpush1.msra.mxu0 %v1548
        %1680 = vmatprep.subr.mxu0 0.0
        %1681 = vmatpush1.msra.mxu0 %v1549
        %1682 = vmatprep.subr.mxu0 0.0
        %1683 = vmatpush1.msra.mxu0 %v1550
        %1684 = vmatprep.subr.mxu0 0.0
        %1685 = vmatpush1.msra.mxu0 %v1551
        %1686 = vmatprep.subr.mxu0 0.0
        %1687 = vmatpush1.msra.mxu0 %v1552
        %1688 = vmatprep.subr.mxu0 0.0
        %1689 = vmatpush1.msra.mxu0 %v1553
        %1690 = vmatprep.subr.mxu0 0.0
        %1691 = vmatpush1.msra.mxu0 %v1554
        %1692 = vmatprep.subr.mxu0 0.0
        %1693 = vmatpush1.msra.mxu0 %v1555
        %1694 = vmatprep.subr.mxu0 0.0
        %1695 = vmatpush1.msra.mxu0 %v1556
        %1696 = vmatprep.mubr.f32.mxu0 %v1493
        %1697 = vmatmul.mubr.f32.gmra.mrb[0].mxu0 %v1461
        %v1698 = vpop.f32.mrb[0].mxu0
        %v1699 = vadd.f32 %v1566, %v1698
        %v1700 = vpop.f32.mrb[0].mxu0
        %1701 = vmatprep.mubr.f32.mxu0 %v1494
        %1702 = vmatmul.mubr.f32.gmra.mrb[0].mxu0 %v1462
        %v1703 = vpop.f32.mrb[0].mxu0
        %v1704 = vadd.f32 %v1566, %v1703
        %v1705 = vpop.f32.mrb[0].mxu0
        %1706 = vmatprep.mubr.f32.mxu0 %v1495
        %1707 = vmatmul.mubr.f32.gmra.mrb[0].mxu0 %v1463
        %v1708 = vpop.f32.mrb[0].mxu0
        %v1709 = vadd.f32 %v1566, %v1708
        %v1710 = vpop.f32.mrb[0].mxu0
        %1711 = vmatprep.mubr.f32.mxu0 %v1496
        %1712 = vmatmul.mubr.f32.gmra.mrb[0].mxu0 %v1464
        %v1713 = vpop.f32.mrb[0].mxu0
        %v1714 = vadd.f32 %v1566, %v1713
        %v1715 = vpop.f32.mrb[0].mxu0
        %1716 = vmatprep.mubr.f32.mxu0 %v1497
        %1717 = vmatmul.mubr.f32.gmra.mrb[0].mxu0 %v1465
        %v1718 = vpop.f32.mrb[0].mxu0
        %v1719 = vadd.f32 %v1566, %v1718
        %v1720 = vpop.f32.mrb[0].mxu0
        %1721 = vmatprep.mubr.f32.mxu0 %v1498
        %1722 = vmatmul.mubr.f32.gmra.mrb[0].mxu0 %v1466
        %v1723 = vpop.f32.mrb[0].mxu0
        %v1724 = vadd.f32 %v1566, %v1723
        %v1725 = vpop.f32.mrb[0].mxu0
        %1726 = vmatprep.mubr.f32.mxu0 %v1499
        %1727 = vmatmul.mubr.f32.gmra.mrb[0].mxu0 %v1467
        %v1728 = vpop.f32.mrb[0].mxu0
        %v1729 = vadd.f32 %v1566, %v1728
        %v1730 = vpop.f32.mrb[0].mxu0
        %1731 = vmatprep.mubr.f32.mxu0 %v1500
        %1732 = vmatmul.mubr.f32.gmra.mrb[0].mxu0 %v1468
        %v1733 = vpop.f32.mrb[0].mxu0
        %v1734 = vadd.f32 %v1566, %v1733
        %v1735 = vpop.f32.mrb[0].mxu0
        %1736 = vmatprep.mubr.f32.mxu0 %v1501
        %1737 = vmatmul.mubr.f32.gmra.mrb[0].mxu0 %v1469
        %v1738 = vpop.f32.mrb[0].mxu0
        %v1739 = vadd.f32 %v1566, %v1738
        %v1740 = vpop.f32.mrb[0].mxu0
        %1741 = vmatprep.mubr.f32.mxu0 %v1502
        %1742 = vmatmul.mubr.f32.gmra.mrb[0].mxu0 %v1470
        %v1743 = vpop.f32.mrb[0].mxu0
        %v1744 = vadd.f32 %v1566, %v1743
        %v1745 = vpop.f32.mrb[0].mxu0
        %1746 = vmatprep.mubr.f32.mxu0 %v1503
        %1747 = vmatmul.mubr.f32.gmra.mrb[0].mxu0 %v1471
        %v1748 = vpop.f32.mrb[0].mxu0
        %v1749 = vadd.f32 %v1566, %v1748
        %v1750 = vpop.f32.mrb[0].mxu0
        %1751 = vmatprep.mubr.f32.mxu0 %v1504
        %1752 = vmatmul.mubr.f32.gmra.mrb[0].mxu0 %v1472
        %v1753 = vpop.f32.mrb[0].mxu0
        %v1754 = vadd.f32 %v1566, %v1753
        %v1755 = vpop.f32.mrb[0].mxu0
        %1756 = vmatprep.mubr.f32.mxu0 %v1505
        %1757 = vmatmul.mubr.f32.gmra.mrb[0].mxu0 %v1473
        %v1758 = vpop.f32.mrb[0].mxu0
        %v1759 = vadd.f32 %v1566, %v1758
        %v1760 = vpop.f32.mrb[0].mxu0
        %1761 = vmatprep.mubr.f32.mxu0 %v1506
        %1762 = vmatmul.mubr.f32.gmra.mrb[0].mxu0 %v1474
        %v1763 = vpop.f32.mrb[0].mxu0
        %v1764 = vadd.f32 %v1566, %v1763
        %v1765 = vpop.f32.mrb[0].mxu0
        %1766 = vmatprep.mubr.f32.mxu0 %v1507
        %1767 = vmatmul.mubr.f32.gmra.mrb[0].mxu0 %v1475
        %v1768 = vpop.f32.mrb[0].mxu0
        %v1769 = vadd.f32 %v1566, %v1768
        %v1770 = vpop.f32.mrb[0].mxu0
        %1771 = vmatprep.mubr.f32.mxu0 %v1508
        %1772 = vmatmul.mubr.f32.gmra.mrb[0].mxu0 %v1476
        %v1773 = vpop.f32.mrb[0].mxu0
        %v1774 = vadd.f32 %v1566, %v1773
        %v1775 = vpop.f32.mrb[0].mxu0
        %1776 = vmatprep.mubr.f32.mxu0 %v1509
        %1777 = vmatmul.mubr.f32.gmra.mrb[0].mxu0 %v1477
        %v1778 = vpop.f32.mrb[0].mxu0
        %v1779 = vadd.f32 %v1566, %v1778
        %v1780 = vpop.f32.mrb[0].mxu0
        %1781 = vmatprep.mubr.f32.mxu0 %v1510
        %1782 = vmatmul.mubr.f32.gmra.mrb[0].mxu0 %v1478
        %v1783 = vpop.f32.mrb[0].mxu0
        %v1784 = vadd.f32 %v1566, %v1783
        %v1785 = vpop.f32.mrb[0].mxu0
        %1786 = vmatprep.mubr.f32.mxu0 %v1511
        %1787 = vmatmul.mubr.f32.gmra.mrb[0].mxu0 %v1479
        %v1788 = vpop.f32.mrb[0].mxu0
        %v1789 = vadd.f32 %v1566, %v1788
        %v1790 = vpop.f32.mrb[0].mxu0
        %1791 = vmatprep.mubr.f32.mxu0 %v1512
        %1792 = vmatmul.mubr.f32.gmra.mrb[0].mxu0 %v1480
        %v1793 = vpop.f32.mrb[0].mxu0
        %v1794 = vadd.f32 %v1566, %v1793
        %v1795 = vpop.f32.mrb[0].mxu0
        %1796 = vmatprep.mubr.f32.mxu0 %v1513
        %1797 = vmatmul.mubr.f32.gmra.mrb[0].mxu0 %v1481
        %v1798 = vpop.f32.mrb[0].mxu0
        %v1799 = vadd.f32 %v1566, %v1798
        %v1800 = vpop.f32.mrb[0].mxu0
        %1801 = vmatprep.mubr.f32.mxu0 %v1514
        %1802 = vmatmul.mubr.f32.gmra.mrb[0].mxu0 %v1482
        %v1803 = vpop.f32.mrb[0].mxu0
        %v1804 = vadd.f32 %v1566, %v1803
        %v1805 = vpop.f32.mrb[0].mxu0
        %1806 = vmatprep.mubr.f32.mxu0 %v1515
        %1807 = vmatmul.mubr.f32.gmra.mrb[0].mxu0 %v1483
        %v1808 = vpop.f32.mrb[0].mxu0
        %v1809 = vadd.f32 %v1566, %v1808
        %v1810 = vpop.f32.mrb[0].mxu0
        %1811 = vmatprep.mubr.f32.mxu0 %v1516
        %1812 = vmatmul.mubr.f32.gmra.mrb[0].mxu0 %v1484
        %v1813 = vpop.f32.mrb[0].mxu0
        %v1814 = vadd.f32 %v1566, %v1813
        %v1815 = vpop.f32.mrb[0].mxu0
        %1816 = vmatprep.mubr.f32.mxu0 %v1517
        %1817 = vmatmul.mubr.f32.gmra.mrb[0].mxu0 %v1485
        %v1818 = vpop.f32.mrb[0].mxu0
        %v1819 = vadd.f32 %v1566, %v1818
        %v1820 = vpop.f32.mrb[0].mxu0
        %1821 = vmatprep.mubr.f32.mxu0 %v1518
        %1822 = vmatmul.mubr.f32.gmra.mrb[0].mxu0 %v1486
        %v1823 = vpop.f32.mrb[0].mxu0
        %v1824 = vadd.f32 %v1566, %v1823
        %v1825 = vpop.f32.mrb[0].mxu0
        %1826 = vmatprep.mubr.f32.mxu0 %v1519
        %1827 = vmatmul.mubr.f32.gmra.mrb[0].mxu0 %v1487
        %v1828 = vpop.f32.mrb[0].mxu0
        %v1829 = vadd.f32 %v1566, %v1828
        %v1830 = vpop.f32.mrb[0].mxu0
        %1831 = vmatprep.mubr.f32.mxu0 %v1520
        %1832 = vmatmul.mubr.f32.gmra.mrb[0].mxu0 %v1488
        %v1833 = vpop.f32.mrb[0].mxu0
        %v1834 = vadd.f32 %v1566, %v1833
        %v1835 = vpop.f32.mrb[0].mxu0
        %1836 = vmatprep.mubr.f32.mxu0 %v1521
        %1837 = vmatmul.mubr.f32.gmra.mrb[0].mxu0 %v1489
        %v1838 = vpop.f32.mrb[0].mxu0
        %v1839 = vadd.f32 %v1566, %v1838
        %v1840 = vpop.f32.mrb[0].mxu0
        %1841 = vmatprep.mubr.f32.mxu0 %v1522
        %1842 = vmatmul.mubr.f32.gmra.mrb[0].mxu0 %v1490
        %v1843 = vpop.f32.mrb[0].mxu0
        %v1844 = vadd.f32 %v1566, %v1843
        %v1845 = vpop.f32.mrb[0].mxu0
        %1846 = vmatprep.mubr.f32.mxu0 %v1523
        %1847 = vmatmul.mubr.f32.gmra.mrb[0].mxu0 %v1491
        %v1848 = vpop.f32.mrb[0].mxu0
        %v1849 = vadd.f32 %v1566, %v1848
        %v1850 = vpop.f32.mrb[0].mxu0
        %1851 = vmatprep.mubr.f32.mxu0 %v1524
        %1852 = vmatmul.mubr.f32.gmra.mrb[0].mxu0 %v1492
        %v1853 = vpop.f32.mrb[0].mxu0
        %v1854 = vadd.f32 %v1566, %v1853
        %v1855 = vpop.f32.mrb[0].mxu0
        %1856 = vdwg.mxu0
        %1857 = vmatprep.subr.mxu0 0.0
        %1858 = vmatpush1.msra.mxu0 %v1557
        %1859 = vmatprep.subr.mxu0 0.0
        %1860 = vmatpush1.msra.mxu0 %v1558
        %1861 = vmatprep.subr.mxu0 0.0
        %1862 = vmatpush1.msra.mxu0 %v1559
        %1863 = vmatprep.subr.mxu0 0.0
        %1864 = vmatpush1.msra.mxu0 %v1560
        %1865 = vmatprep.subr.mxu0 0.0
        %1866 = vmatpush1.msra.mxu0 0.0
        %1867 = vmatprep.subr.mxu0 0.0
        %1868 = vmatpush1.msra.mxu0 0.0
        %1869 = vmatprep.subr.mxu0 0.0
        %1870 = vmatpush1.msra.mxu0 0.0
        %1871 = vmatprep.subr.mxu0 0.0
        %1872 = vmatpush1.msra.mxu0 0.0
        %1873 = vmatprep.subr.mxu0 0.0
        %1874 = vmatpush1.msra.mxu0 0.0
        %1875 = vmatprep.subr.mxu0 0.0
        %1876 = vmatpush1.msra.mxu0 0.0
        %1877 = vmatprep.subr.mxu0 0.0
        %1878 = vmatpush1.msra.mxu0 0.0
        %1879 = vmatprep.subr.mxu0 0.0
        %1880 = vmatpush1.msra.mxu0 0.0
        %1881 = vmatprep.subr.mxu0 0.0
        %1882 = vmatpush1.msra.mxu0 0.0
        %1883 = vmatprep.subr.mxu0 0.0
        %1884 = vmatpush1.msra.mxu0 0.0
        %1885 = vmatprep.subr.mxu0 0.0
        %1886 = vmatpush1.msra.mxu0 0.0
        %1887 = vmatprep.subr.mxu0 0.0
        %1888 = vmatpush1.msra.mxu0 0.0
        %1889 = vmatprep.subr.mxu0 0.0
        %1890 = vmatpush1.msra.mxu0 0.0
        %1891 = vmatprep.subr.mxu0 0.0
        %1892 = vmatpush1.msra.mxu0 0.0
        %1893 = vmatprep.subr.mxu0 0.0
        %1894 = vmatpush1.msra.mxu0 0.0
        %1895 = vmatprep.subr.mxu0 0.0
        %1896 = vmatpush1.msra.mxu0 0.0
        %1897 = vmatprep.subr.mxu0 0.0
        %1898 = vmatpush1.msra.mxu0 0.0
        %1899 = vmatprep.subr.mxu0 0.0
        %1900 = vmatpush1.msra.mxu0 0.0
        %1901 = vmatprep.subr.mxu0 0.0
        %1902 = vmatpush1.msra.mxu0 0.0
        %1903 = vmatprep.subr.mxu0 0.0
        %1904 = vmatpush1.msra.mxu0 0.0
        %1905 = vmatprep.subr.mxu0 0.0
        %1906 = vmatpush1.msra.mxu0 0.0
        %1907 = vmatprep.subr.mxu0 0.0
        %1908 = vmatpush1.msra.mxu0 0.0
        %1909 = vmatprep.subr.mxu0 0.0
        %1910 = vmatpush1.msra.mxu0 0.0
        %1911 = vmatprep.subr.mxu0 0.0
        %1912 = vmatpush1.msra.mxu0 0.0
        %1913 = vmatprep.subr.mxu0 0.0
        %1914 = vmatpush1.msra.mxu0 0.0
        %1915 = vmatprep.subr.mxu0 0.0
        %1916 = vmatpush1.msra.mxu0 0.0
        %1917 = vmatprep.subr.mxu0 0.0
        %1918 = vmatpush1.msra.mxu0 0.0
        %1919 = vmatprep.subr.mxu0 0.0
        %1920 = vmatpush1.msra.mxu0 0.0
        %1921 = vmatprep.mubr.f32.mxu0 0.0
        %1922 = vmatmul.mubr.f32.gmra.mrb[0].mxu0 %v1568
        %v1923 = vpop.f32.mrb[0].mxu0
        %v1924 = vadd.f32 %v1699, %v1923
        %v1925 = vpop.f32.mrb[0].mxu0
        %1926 = vmatprep.mubr.f32.mxu0 0.0
        %1927 = vmatmul.mubr.f32.gmra.mrb[0].mxu0 %v1570
        %v1928 = vpop.f32.mrb[0].mxu0
        %v1929 = vadd.f32 %v1704, %v1928
        %v1930 = vpop.f32.mrb[0].mxu0
        %1931 = vmatprep.mubr.f32.mxu0 0.0
        %1932 = vmatmul.mubr.f32.gmra.mrb[0].mxu0 %v1572
        %v1933 = vpop.f32.mrb[0].mxu0
        %v1934 = vadd.f32 %v1709, %v1933
        %v1935 = vpop.f32.mrb[0].mxu0
        %1936 = vmatprep.mubr.f32.mxu0 0.0
        %1937 = vmatmul.mubr.f32.gmra.mrb[0].mxu0 %v1574
        %v1938 = vpop.f32.mrb[0].mxu0
        %v1939 = vadd.f32 %v1714, %v1938
        %v1940 = vpop.f32.mrb[0].mxu0
        %1941 = vmatprep.mubr.f32.mxu0 0.0
        %1942 = vmatmul.mubr.f32.gmra.mrb[0].mxu0 %v1576
        %v1943 = vpop.f32.mrb[0].mxu0
        %v1944 = vadd.f32 %v1719, %v1943
        %v1945 = vpop.f32.mrb[0].mxu0
        %1946 = vmatprep.mubr.f32.mxu0 0.0
        %1947 = vmatmul.mubr.f32.gmra.mrb[0].mxu0 %v1578
        %v1948 = vpop.f32.mrb[0].mxu0
        %v1949 = vadd.f32 %v1724, %v1948
        %v1950 = vpop.f32.mrb[0].mxu0
        %1951 = vmatprep.mubr.f32.mxu0 0.0
        %1952 = vmatmul.mubr.f32.gmra.mrb[0].mxu0 %v1580
        %v1953 = vpop.f32.mrb[0].mxu0
        %v1954 = vadd.f32 %v1729, %v1953
        %v1955 = vpop.f32.mrb[0].mxu0
        %1956 = vmatprep.mubr.f32.mxu0 0.0
        %1957 = vmatmul.mubr.f32.gmra.mrb[0].mxu0 %v1582
        %v1958 = vpop.f32.mrb[0].mxu0
        %v1959 = vadd.f32 %v1734, %v1958
        %v1960 = vpop.f32.mrb[0].mxu0
        %1961 = vmatprep.mubr.f32.mxu0 0.0
        %1962 = vmatmul.mubr.f32.gmra.mrb[0].mxu0 %v1584
        %v1963 = vpop.f32.mrb[0].mxu0
        %v1964 = vadd.f32 %v1739, %v1963
        %v1965 = vpop.f32.mrb[0].mxu0
        %1966 = vmatprep.mubr.f32.mxu0 0.0
        %1967 = vmatmul.mubr.f32.gmra.mrb[0].mxu0 %v1586
        %v1968 = vpop.f32.mrb[0].mxu0
        %v1969 = vadd.f32 %v1744, %v1968
        %v1970 = vpop.f32.mrb[0].mxu0
        %1971 = vmatprep.mubr.f32.mxu0 0.0
        %1972 = vmatmul.mubr.f32.gmra.mrb[0].mxu0 %v1588
        %v1973 = vpop.f32.mrb[0].mxu0
        %v1974 = vadd.f32 %v1749, %v1973
        %v1975 = vpop.f32.mrb[0].mxu0
        %1976 = vmatprep.mubr.f32.mxu0 0.0
        %1977 = vmatmul.mubr.f32.gmra.mrb[0].mxu0 %v1590
        %v1978 = vpop.f32.mrb[0].mxu0
        %v1979 = vadd.f32 %v1754, %v1978
        %v1980 = vpop.f32.mrb[0].mxu0
        %1981 = vmatprep.mubr.f32.mxu0 0.0
        %1982 = vmatmul.mubr.f32.gmra.mrb[0].mxu0 %v1592
        %v1983 = vpop.f32.mrb[0].mxu0
        %v1984 = vadd.f32 %v1759, %v1983
        %v1985 = vpop.f32.mrb[0].mxu0
        %1986 = vmatprep.mubr.f32.mxu0 0.0
        %1987 = vmatmul.mubr.f32.gmra.mrb[0].mxu0 %v1594
        %v1988 = vpop.f32.mrb[0].mxu0
        %v1989 = vadd.f32 %v1764, %v1988
        %v1990 = vpop.f32.mrb[0].mxu0
        %1991 = vmatprep.mubr.f32.mxu0 0.0
        %1992 = vmatmul.mubr.f32.gmra.mrb[0].mxu0 %v1596
        %v1993 = vpop.f32.mrb[0].mxu0
        %v1994 = vadd.f32 %v1769, %v1993
        %v1995 = vpop.f32.mrb[0].mxu0
        %1996 = vmatprep.mubr.f32.mxu0 0.0
        %1997 = vmatmul.mubr.f32.gmra.mrb[0].mxu0 %v1598
        %v1998 = vpop.f32.mrb[0].mxu0
        %v1999 = vadd.f32 %v1774, %v1998
        %v2000 = vpop.f32.mrb[0].mxu0
        %2001 = vmatprep.mubr.f32.mxu0 0.0
        %2002 = vmatmul.mubr.f32.gmra.mrb[0].mxu0 %v1600
        %v2003 = vpop.f32.mrb[0].mxu0
        %v2004 = vadd.f32 %v1779, %v2003
        %v2005 = vpop.f32.mrb[0].mxu0
        %2006 = vmatprep.mubr.f32.mxu0 0.0
        %2007 = vmatmul.mubr.f32.gmra.mrb[0].mxu0 %v1602
        %v2008 = vpop.f32.mrb[0].mxu0
        %v2009 = vadd.f32 %v1784, %v2008
        %v2010 = vpop.f32.mrb[0].mxu0
        %2011 = vmatprep.mubr.f32.mxu0 0.0
        %2012 = vmatmul.mubr.f32.gmra.mrb[0].mxu0 %v1604
        %v2013 = vpop.f32.mrb[0].mxu0
        %v2014 = vadd.f32 %v1789, %v2013
        %v2015 = vpop.f32.mrb[0].mxu0
        %2016 = vmatprep.mubr.f32.mxu0 0.0
        %2017 = vmatmul.mubr.f32.gmra.mrb[0].mxu0 %v1606
        %v2018 = vpop.f32.mrb[0].mxu0
        %v2019 = vadd.f32 %v1794, %v2018
        %v2020 = vpop.f32.mrb[0].mxu0
        %2021 = vmatprep.mubr.f32.mxu0 0.0
        %2022 = vmatmul.mubr.f32.gmra.mrb[0].mxu0 %v1608
        %v2023 = vpop.f32.mrb[0].mxu0
        %v2024 = vadd.f32 %v1799, %v2023
        %v2025 = vpop.f32.mrb[0].mxu0
        %2026 = vmatprep.mubr.f32.mxu0 0.0
        %2027 = vmatmul.mubr.f32.gmra.mrb[0].mxu0 %v1610
        %v2028 = vpop.f32.mrb[0].mxu0
        %v2029 = vadd.f32 %v1804, %v2028
        %v2030 = vpop.f32.mrb[0].mxu0
        %2031 = vmatprep.mubr.f32.mxu0 0.0
        %2032 = vmatmul.mubr.f32.gmra.mrb[0].mxu0 %v1612
        %v2033 = vpop.f32.mrb[0].mxu0
        %v2034 = vadd.f32 %v1809, %v2033
        %v2035 = vpop.f32.mrb[0].mxu0
        %2036 = vmatprep.mubr.f32.mxu0 0.0
        %2037 = vmatmul.mubr.f32.gmra.mrb[0].mxu0 %v1614
        %v2038 = vpop.f32.mrb[0].mxu0
        %v2039 = vadd.f32 %v1814, %v2038
        %v2040 = vpop.f32.mrb[0].mxu0
        %2041 = vmatprep.mubr.f32.mxu0 0.0
        %2042 = vmatmul.mubr.f32.gmra.mrb[0].mxu0 %v1616
        %v2043 = vpop.f32.mrb[0].mxu0
        %v2044 = vadd.f32 %v1819, %v2043
        %v2045 = vpop.f32.mrb[0].mxu0
        %2046 = vmatprep.mubr.f32.mxu0 0.0
        %2047 = vmatmul.mubr.f32.gmra.mrb[0].mxu0 %v1618
        %v2048 = vpop.f32.mrb[0].mxu0
        %v2049 = vadd.f32 %v1824, %v2048
        %v2050 = vpop.f32.mrb[0].mxu0
        %2051 = vmatprep.mubr.f32.mxu0 0.0
        %2052 = vmatmul.mubr.f32.gmra.mrb[0].mxu0 %v1620
        %v2053 = vpop.f32.mrb[0].mxu0
        %v2054 = vadd.f32 %v1829, %v2053
        %v2055 = vpop.f32.mrb[0].mxu0
        %2056 = vmatprep.mubr.f32.mxu0 0.0
        %2057 = vmatmul.mubr.f32.gmra.mrb[0].mxu0 %v1622
        %v2058 = vpop.f32.mrb[0].mxu0
        %v2059 = vadd.f32 %v1834, %v2058
        %v2060 = vpop.f32.mrb[0].mxu0
        %2061 = vmatprep.mubr.f32.mxu0 0.0
        %2062 = vmatmul.mubr.f32.gmra.mrb[0].mxu0 %v1624
        %v2063 = vpop.f32.mrb[0].mxu0
        %v2064 = vadd.f32 %v1839, %v2063
        %v2065 = vpop.f32.mrb[0].mxu0
        %2066 = vmatprep.mubr.f32.mxu0 0.0
        %2067 = vmatmul.mubr.f32.gmra.mrb[0].mxu0 %v1626
        %v2068 = vpop.f32.mrb[0].mxu0
        %v2069 = vadd.f32 %v1844, %v2068
        %v2070 = vpop.f32.mrb[0].mxu0
        %2071 = vmatprep.mubr.f32.mxu0 0.0
        %2072 = vmatmul.mubr.f32.gmra.mrb[0].mxu0 %v1628
        %v2073 = vpop.f32.mrb[0].mxu0
        %v2074 = vadd.f32 %v1849, %v2073
        %v2075 = vpop.f32.mrb[0].mxu0
        %2076 = vmatprep.mubr.f32.mxu0 0.0
        %2077 = vmatmul.mubr.f32.gmra.mrb[0].mxu0 %v1630
        %v2078 = vpop.f32.mrb[0].mxu0
        %v2079 = vadd.f32 %v1854, %v2078
        %v2080 = vpop.f32.mrb[0].mxu0
        %2081 = vdwg.mxu0
        %v2082 = vmax.f32 %v1924, 0.0
        %v2083 = vmax.f32 %v1929, 0.0
        %v2084 = vmax.f32 %v1934, 0.0
        %v2085 = vmax.f32 %v1939, 0.0
        %v2086 = vmax.f32 %v1944, 0.0
        %v2087 = vmax.f32 %v1949, 0.0
        %v2088 = vmax.f32 %v1954, 0.0
        %v2089 = vmax.f32 %v1959, 0.0
        %v2090 = vmax.f32 %v1964, 0.0
        %v2091 = vmax.f32 %v1969, 0.0
        %v2092 = vmax.f32 %v1974, 0.0
        %v2093 = vmax.f32 %v1979, 0.0
        %v2094 = vmax.f32 %v1984, 0.0
        %v2095 = vmax.f32 %v1989, 0.0
        %v2096 = vmax.f32 %v1994, 0.0
        %v2097 = vmax.f32 %v1999, 0.0
        %v2098 = vmax.f32 %v2004, 0.0
        %v2099 = vmax.f32 %v2009, 0.0
        %v2100 = vmax.f32 %v2014, 0.0
        %v2101 = vmax.f32 %v2019, 0.0
        %v2102 = vmax.f32 %v2024, 0.0
        %v2103 = vmax.f32 %v2029, 0.0
        %v2104 = vmax.f32 %v2034, 0.0
        %v2105 = vmax.f32 %v2039, 0.0
        %v2106 = vmax.f32 %v2044, 0.0
        %v2107 = vmax.f32 %v2049, 0.0
        %v2108 = vmax.f32 %v2054, 0.0
        %v2109 = vmax.f32 %v2059, 0.0
        %v2110 = vmax.f32 %v2064, 0.0
        %v2111 = vmax.f32 %v2069, 0.0
        %v2112 = vmax.f32 %v2074, 0.0
        %v2113 = vmax.f32 %v2079, 0.0
        %v2114 = vld [vmem:[%s5] sm:$0xff]
        %v2115 = vld [vmem:[%s5 + $0x8] sm:$0x7f]
        %v2116 = vld [vmem:[%s6] sm:$0xff]
        %v2117 = vld [vmem:[%s6 + $0x8] sm:$0x7f]
        %2119 = vset.pattern.permute.xlu0 0
        %2120 = vperm.xlu0 %2119, %v2116
        %v2121 = vpop.permute.xlu0 %2120
        %2124 = vset.pattern.permute.xlu0 0
        %2125 = vperm.xlu0 %2124, %v2117
        %v2126 = vpop.permute.xlu0 %2125
        %v2129 = vsel %vm918, %v2114, 0
        %v2132 = vsel %vm918, %v2115, 0
        %v2135 = vsel %vm918, %v2082, 0
        %v2138 = vsel %vm918, %v2083, 0
        %v2141 = vsel %vm918, %v2084, 0
        %v2144 = vsel %vm918, %v2085, 0
        %v2147 = vsel %vm918, %v2086, 0
        %v2150 = vsel %vm918, %v2087, 0
        %v2153 = vsel %vm918, %v2088, 0
        %v2156 = vsel %vm918, %v2089, 0
        %v2159 = vsel %vm918, %v2090, 0
        %v2162 = vsel %vm918, %v2091, 0
        %v2165 = vsel %vm918, %v2092, 0
        %v2168 = vsel %vm918, %v2093, 0
        %v2171 = vsel %vm918, %v2094, 0
        %v2174 = vsel %vm918, %v2095, 0
        %v2177 = vsel %vm918, %v2096, 0
        %v2180 = vsel %vm918, %v2097, 0
        %v2183 = vsel %vm918, %v2098, 0
        %v2186 = vsel %vm918, %v2099, 0
        %v2189 = vsel %vm918, %v2100, 0
        %v2192 = vsel %vm918, %v2101, 0
        %v2195 = vsel %vm918, %v2102, 0
        %v2198 = vsel %vm918, %v2103, 0
        %v2201 = vsel %vm918, %v2104, 0
        %v2204 = vsel %vm918, %v2105, 0
        %v2207 = vsel %vm918, %v2106, 0
        %v2210 = vsel %vm918, %v2107, 0
        %v2213 = vsel %vm918, %v2108, 0
        %v2216 = vsel %vm918, %v2109, 0
        %v2219 = vsel %vm918, %v2110, 0
        %v2222 = vsel %vm918, %v2111, 0
        %v2225 = vsel %vm918, %v2112, 0
        %v2228 = vsel %vm918, %v2113, 0
        %2230 = vmatprep.subr.mxu0 0.0
        %2231 = vmatpush1.xpose.msra.mxu0 %v2135
        %2232 = vmatprep.subr.mxu0 0.0
        %2233 = vmatpush1.xpose.msra.mxu0 %v2138
        %2234 = vmatprep.subr.mxu0 0.0
        %2235 = vmatpush1.xpose.msra.mxu0 %v2141
        %2236 = vmatprep.subr.mxu0 0.0
        %2237 = vmatpush1.xpose.msra.mxu0 %v2144
        %2238 = vmatprep.subr.mxu0 0.0
        %2239 = vmatpush1.xpose.msra.mxu0 %v2147
        %2240 = vmatprep.subr.mxu0 0.0
        %2241 = vmatpush1.xpose.msra.mxu0 %v2150
        %2242 = vmatprep.subr.mxu0 0.0
        %2243 = vmatpush1.xpose.msra.mxu0 %v2153
        %2244 = vmatprep.subr.mxu0 0.0
        %2245 = vmatpush1.xpose.msra.mxu0 %v2156
        %2246 = vmatprep.subr.mxu0 0.0
        %2247 = vmatpush1.xpose.msra.mxu0 %v2159
        %2248 = vmatprep.subr.mxu0 0.0
        %2249 = vmatpush1.xpose.msra.mxu0 %v2162
        %2250 = vmatprep.subr.mxu0 0.0
        %2251 = vmatpush1.xpose.msra.mxu0 %v2165
        %2252 = vmatprep.subr.mxu0 0.0
        %2253 = vmatpush1.xpose.msra.mxu0 %v2168
        %2254 = vmatprep.subr.mxu0 0.0
        %2255 = vmatpush1.xpose.msra.mxu0 %v2171
        %2256 = vmatprep.subr.mxu0 0.0
        %2257 = vmatpush1.xpose.msra.mxu0 %v2174
        %2258 = vmatprep.subr.mxu0 0.0
        %2259 = vmatpush1.xpose.msra.mxu0 %v2177
        %2260 = vmatprep.subr.mxu0 0.0
        %2261 = vmatpush1.xpose.msra.mxu0 %v2180
        %2262 = vmatprep.subr.mxu0 0.0
        %2263 = vmatpush1.xpose.msra.mxu0 %v2183
        %2264 = vmatprep.subr.mxu0 0.0
        %2265 = vmatpush1.xpose.msra.mxu0 %v2186
        %2266 = vmatprep.subr.mxu0 0.0
        %2267 = vmatpush1.xpose.msra.mxu0 %v2189
        %2268 = vmatprep.subr.mxu0 0.0
        %2269 = vmatpush1.xpose.msra.mxu0 %v2192
        %2270 = vmatprep.subr.mxu0 0.0
        %2271 = vmatpush1.xpose.msra.mxu0 %v2195
        %2272 = vmatprep.subr.mxu0 0.0
        %2273 = vmatpush1.xpose.msra.mxu0 %v2198
        %2274 = vmatprep.subr.mxu0 0.0
        %2275 = vmatpush1.xpose.msra.mxu0 %v2201
        %2276 = vmatprep.subr.mxu0 0.0
        %2277 = vmatpush1.xpose.msra.mxu0 %v2204
        %2278 = vmatprep.subr.mxu0 0.0
        %2279 = vmatpush1.xpose.msra.mxu0 %v2207
        %2280 = vmatprep.subr.mxu0 0.0
        %2281 = vmatpush1.xpose.msra.mxu0 %v2210
        %2282 = vmatprep.subr.mxu0 0.0
        %2283 = vmatpush1.xpose.msra.mxu0 %v2213
        %2284 = vmatprep.subr.mxu0 0.0
        %2285 = vmatpush1.xpose.msra.mxu0 %v2216
        %2286 = vmatprep.subr.mxu0 0.0
        %2287 = vmatpush1.xpose.msra.mxu0 %v2219
        %2288 = vmatprep.subr.mxu0 0.0
        %2289 = vmatpush1.xpose.msra.mxu0 %v2222
        %2290 = vmatprep.subr.mxu0 0.0
        %2291 = vmatpush1.xpose.msra.mxu0 %v2225
        %2292 = vmatprep.subr.mxu0 0.0
        %2293 = vmatpush1.xpose.msra.mxu0 %v2228
        %2294 = vmatprep.mubr.f32.mxu0 0.0
        %2295 = vmatmul.mubr.f32.gmra.mrb[0].mxu0 %v2129
        %v2296 = vpop.f32.mrb[0].mxu0
        %v2297 = vadd.f32 %v2121, %v2296
        %v2298 = vpop.f32.mrb[0].mxu0
        %v2299 = vadd.f32 %v2121, %v2298
        %2300 = vmatprep.mubr.f32.mxu0 0.0
        %2301 = vmatmul.mubr.f32.gmra.mrb[0].mxu0 %v2132
        %v2302 = vpop.f32.mrb[0].mxu0
        %v2303 = vadd.f32 %v2126, %v2302
        %v2304 = vpop.f32.mrb[0].mxu0
        %v2305 = vadd.f32 %v2126, %v2304
        %2306 = vdwg.mxu0
        %v2309 = vunpack.c.l.s4 1966171168
        %v2310 = vunpack.c.0.s8 %v2309
        %v2311 = vlaneseq
        %v2312 = vshrl.u32 %v2311, 7
        %v2313 = vsub.s32 %v2310, %v2312
        %v2314 = vrot.slane %v2297, %v2313
        %v2315 = vcombine.high %v2314, %v2314
        %v2317 = vunpack.c.l.s4 1966171168
        %v2318 = vunpack.c.0.s8 %v2317
        %v2319 = vlaneseq
        %v2320 = vshrl.u32 %v2319, 7
        %v2321 = vsub.s32 %v2318, %v2320
        %v2322 = vrot.slane %v2314, %v2321
        %v2324 = vunpack.c.l.s4 1966171168
        %v2325 = vunpack.c.0.s8 %v2324
        %v2326 = vlaneseq
        %v2327 = vshrl.u32 %v2326, 7
        %v2328 = vsub.s32 %v2325, %v2327
        %v2329 = vrot.slane %v2315, %v2328
        %v2330 = vcombine.high %v2322, %v2322
        %vm2334 = vcmask 122880
        %2335 = vst.msk [vmem:[%s414] sm:$0x1] %vm2334, %v2322
        %2336 = vst.msk [vmem:[%s414 + $0x10] sm:$0x1] %vm2334, %v2329
        %2337 = vst.msk [vmem:[%s414 + $0x20] sm:$0x1] %vm2334, %v2330
        %v2339 = vcombine.high %v2297, %v2297
        %v2341 = vunpack.c.l.s4 1966171168
        %v2342 = vunpack.c.0.s8 %v2341
        %v2343 = vlaneseq
        %v2344 = vshrl.u32 %v2343, 7
        %v2345 = vsub.s32 %v2342, %v2344
        %v2346 = vrot.slane %v2339, %v2345
        %v2347 = vcombine.high %v2346, %v2346
        %v2349 = vunpack.c.l.s4 1966171168
        %v2350 = vunpack.c.0.s8 %v2349
        %v2351 = vlaneseq
        %v2352 = vshrl.u32 %v2351, 7
        %v2353 = vsub.s32 %v2350, %v2352
        %v2354 = vrot.slane %v2346, %v2353
        %v2356 = vunpack.c.l.s4 1966171168
        %v2357 = vunpack.c.0.s8 %v2356
        %v2358 = vlaneseq
        %v2359 = vshrl.u32 %v2358, 7
        %v2360 = vsub.s32 %v2357, %v2359
        %v2361 = vrot.slane %v2347, %v2360
        %v2362 = vcombine.high %v2354, %v2354
        %v2363 = vcombine.high %v2329, %v2329
        %v2364 = vcombine.high %v2361, %v2361
        %v2365 = vcombine.high %v2303, %v2303
        %v2367 = vunpack.c.l.s4 1966171168
        %v2368 = vunpack.c.0.s8 %v2367
        %v2369 = vlaneseq
        %v2370 = vshrl.u32 %v2369, 7
        %v2371 = vsub.s32 %v2368, %v2370
        %v2372 = vrot.slane %v2303, %v2371
        %v2374 = vunpack.c.l.s4 1966171168
        %v2375 = vunpack.c.0.s8 %v2374
        %v2376 = vlaneseq
        %v2377 = vshrl.u32 %v2376, 7
        %v2378 = vsub.s32 %v2375, %v2377
        %v2379 = vrot.slane %v2365, %v2378
        %v2380 = vcombine.high %v2372, %v2372
        %v2381 = vcombine.high %v2379, %v2379
        %v2383 = vunpack.c.l.s4 1966171168
        %v2384 = vunpack.c.0.s8 %v2383
        %v2385 = vlaneseq
        %v2386 = vshrl.u32 %v2385, 7
        %v2387 = vsub.s32 %v2384, %v2386
        %v2388 = vrot.slane %v2372, %v2387
        %v2390 = vunpack.c.l.s4 1966171168
        %v2391 = vunpack.c.0.s8 %v2390
        %v2392 = vlaneseq
        %v2393 = vshrl.u32 %v2392, 7
        %v2394 = vsub.s32 %v2391, %v2393
        %v2395 = vrot.slane %v2379, %v2394
        %v2397 = vunpack.c.l.s4 1966171168
        %v2398 = vunpack.c.0.s8 %v2397
        %v2399 = vlaneseq
        %v2400 = vshrl.u32 %v2399, 7
        %v2401 = vsub.s32 %v2398, %v2400
        %v2402 = vrot.slane %v2380, %v2401
        %v2404 = vunpack.c.l.s4 1966171168
        %v2405 = vunpack.c.0.s8 %v2404
        %v2406 = vlaneseq
        %v2407 = vshrl.u32 %v2406, 7
        %v2408 = vsub.s32 %v2405, %v2407
        %v2409 = vrot.slane %v2381, %v2408
        %v2410 = vcombine.high %v2388, %v2388
        %v2411 = vcombine.high %v2395, %v2395
        %v2412 = vcombine.high %v2402, %v2402
        %2425 = vst.msk [vmem:[%s420] sm:$0x1] %vm2334, %v2363
        %2426 = vst.msk [vmem:[%s420 + $0x10] sm:$0x1] %vm2334, %v2354
        %2427 = vst.msk [vmem:[%s420 + $0x20] sm:$0x1] %vm2334, %v2361
        %2428 = vst.msk [vmem:[%s420 + $0x30] sm:$0x1] %vm2334, %v2362
        %2429 = vst.msk [vmem:[%s420 + $0x40] sm:$0x1] %vm2334, %v2364
        %2430 = vst.msk [vmem:[%s420 + $0x50] sm:$0x1] %vm2334, %v2388
        %2431 = vst.msk [vmem:[%s420 + $0x60] sm:$0x1] %vm2334, %v2402
        %2432 = vst.msk [vmem:[%s420 + $0x70] sm:$0x1] %vm2334, %v2410
        %2433 = vst.msk [vmem:[%s420 + $0x80] sm:$0x1] %vm2334, %v2412
        %2434 = vst.msk [vmem:[%s420 + $0x90] sm:$0x1] %vm2334, %v2395
        %2435 = vst.msk [vmem:[%s420 + $0xa0] sm:$0x1] %vm2334, %v2409
        %2436 = vst.msk [vmem:[%s420 + $0xb0] sm:$0x1] %vm2334, %v2411
        %v2437 = vlaneseq
        %v2438 = vshrl.u32 %v2437, 7
        %v2439 = vsub.s32 0, %v2438
        %v2440 = vrot.slane %v2322, %v2439
        %v2441 = vlaneseq
        %v2442 = vshrl.u32 %v2441, 7
        %v2443 = vsub.s32 0, %v2442
        %v2444 = vrot.slane %v2329, %v2443
        %v2445 = vlaneseq
        %v2446 = vshrl.u32 %v2445, 7
        %v2447 = vsub.s32 0, %v2446
        %v2448 = vrot.slane %v2330, %v2447
        %2449 = vrot.lane.b32.xlu0 %v2440, 112
        %v2450 = vpop.permute.xlu0 %2449
        %2451 = vrot.lane.b32.xlu0 %v2444, 112
        %v2452 = vpop.permute.xlu0 %2451
        %2453 = vrot.lane.b32.xlu0 %v2448, 112
        %v2454 = vpop.permute.xlu0 %2453
        %2458 = vst.msk [vmem:[%s414 + $0x1] sm:$0x1] %vm2334, %v2450
        %2459 = vst.msk [vmem:[%s414 + $0x11] sm:$0x1] %vm2334, %v2452
        %2460 = vst.msk [vmem:[%s414 + $0x21] sm:$0x1] %vm2334, %v2454
        %v2461 = vlaneseq
        %v2462 = vshrl.u32 %v2461, 7
        %v2463 = vsub.s32 0, %v2462
        %v2464 = vrot.slane %v2363, %v2463
        %v2465 = vlaneseq
        %v2466 = vshrl.u32 %v2465, 7
        %v2467 = vsub.s32 0, %v2466
        %v2468 = vrot.slane %v2354, %v2467
        %v2469 = vlaneseq
        %v2470 = vshrl.u32 %v2469, 7
        %v2471 = vsub.s32 0, %v2470
        %v2472 = vrot.slane %v2361, %v2471
        %v2473 = vlaneseq
        %v2474 = vshrl.u32 %v2473, 7
        %v2475 = vsub.s32 0, %v2474
        %v2476 = vrot.slane %v2362, %v2475
        %v2477 = vlaneseq
        %v2478 = vshrl.u32 %v2477, 7
        %v2479 = vsub.s32 0, %v2478
        %v2480 = vrot.slane %v2364, %v2479
        %v2481 = vlaneseq
        %v2482 = vshrl.u32 %v2481, 7
        %v2483 = vsub.s32 0, %v2482
        %v2484 = vrot.slane %v2388, %v2483
        %v2485 = vlaneseq
        %v2486 = vshrl.u32 %v2485, 7
        %v2487 = vsub.s32 0, %v2486
        %v2488 = vrot.slane %v2402, %v2487
        %v2489 = vlaneseq
        %v2490 = vshrl.u32 %v2489, 7
        %v2491 = vsub.s32 0, %v2490
        %v2492 = vrot.slane %v2410, %v2491
        %v2493 = vlaneseq
        %v2494 = vshrl.u32 %v2493, 7
        %v2495 = vsub.s32 0, %v2494
        %v2496 = vrot.slane %v2412, %v2495
        %v2497 = vlaneseq
        %v2498 = vshrl.u32 %v2497, 7
        %v2499 = vsub.s32 0, %v2498
        %v2500 = vrot.slane %v2395, %v2499
        %v2501 = vlaneseq
        %v2502 = vshrl.u32 %v2501, 7
        %v2503 = vsub.s32 0, %v2502
        %v2504 = vrot.slane %v2409, %v2503
        %v2505 = vlaneseq
        %v2506 = vshrl.u32 %v2505, 7
        %v2507 = vsub.s32 0, %v2506
        %v2508 = vrot.slane %v2411, %v2507
        %2509 = vrot.lane.b32.xlu0 %v2464, 112
        %v2510 = vpop.permute.xlu0 %2509
        %2511 = vrot.lane.b32.xlu0 %v2468, 112
        %v2512 = vpop.permute.xlu0 %2511
        %2513 = vrot.lane.b32.xlu0 %v2472, 112
        %v2514 = vpop.permute.xlu0 %2513
        %2515 = vrot.lane.b32.xlu0 %v2476, 112
        %v2516 = vpop.permute.xlu0 %2515
        %2517 = vrot.lane.b32.xlu0 %v2480, 112
        %v2518 = vpop.permute.xlu0 %2517
        %2519 = vrot.lane.b32.xlu0 %v2484, 112
        %v2520 = vpop.permute.xlu0 %2519
        %2521 = vrot.lane.b32.xlu0 %v2488, 112
        %v2522 = vpop.permute.xlu0 %2521
        %2523 = vrot.lane.b32.xlu0 %v2492, 112
        %v2524 = vpop.permute.xlu0 %2523
        %2525 = vrot.lane.b32.xlu0 %v2496, 112
        %v2526 = vpop.permute.xlu0 %2525
        %2527 = vrot.lane.b32.xlu0 %v2500, 112
        %v2528 = vpop.permute.xlu0 %2527
        %2529 = vrot.lane.b32.xlu0 %v2504, 112
        %v2530 = vpop.permute.xlu0 %2529
        %2531 = vrot.lane.b32.xlu0 %v2508, 112
        %v2532 = vpop.permute.xlu0 %2531
        %2545 = vst.msk [vmem:[%s420 + $0x1] sm:$0x1] %vm2334, %v2510
        %2546 = vst.msk [vmem:[%s420 + $0x11] sm:$0x1] %vm2334, %v2512
        %2547 = vst.msk [vmem:[%s420 + $0x21] sm:$0x1] %vm2334, %v2514
        %2548 = vst.msk [vmem:[%s420 + $0x31] sm:$0x1] %vm2334, %v2516
        %2549 = vst.msk [vmem:[%s420 + $0x41] sm:$0x1] %vm2334, %v2518
        %2550 = vst.msk [vmem:[%s420 + $0x51] sm:$0x1] %vm2334, %v2520
        %2551 = vst.msk [vmem:[%s420 + $0x61] sm:$0x1] %vm2334, %v2522
        %2552 = vst.msk [vmem:[%s420 + $0x71] sm:$0x1] %vm2334, %v2524
        %2553 = vst.msk [vmem:[%s420 + $0x81] sm:$0x1] %vm2334, %v2526
        %2554 = vst.msk [vmem:[%s420 + $0x91] sm:$0x1] %vm2334, %v2528
        %2555 = vst.msk [vmem:[%s420 + $0xa1] sm:$0x1] %vm2334, %v2530
        %2556 = vst.msk [vmem:[%s420 + $0xb1] sm:$0x1] %vm2334, %v2532
        %2557 = vrot.lane.b32.xlu0 %v2440, 96
        %v2558 = vpop.permute.xlu0 %2557
        %2559 = vrot.lane.b32.xlu0 %v2444, 96
        %v2560 = vpop.permute.xlu0 %2559
        %2561 = vrot.lane.b32.xlu0 %v2448, 96
        %v2562 = vpop.permute.xlu0 %2561
        %2566 = vst.msk [vmem:[%s414 + $0x2] sm:$0x1] %vm2334, %v2558
        %2567 = vst.msk [vmem:[%s414 + $0x12] sm:$0x1] %vm2334, %v2560
        %2568 = vst.msk [vmem:[%s414 + $0x22] sm:$0x1] %vm2334, %v2562
        %2569 = vrot.lane.b32.xlu0 %v2464, 96
        %v2570 = vpop.permute.xlu0 %2569
        %2571 = vrot.lane.b32.xlu0 %v2468, 96
        %v2572 = vpop.permute.xlu0 %2571
        %2573 = vrot.lane.b32.xlu0 %v2472, 96
        %v2574 = vpop.permute.xlu0 %2573
        %2575 = vrot.lane.b32.xlu0 %v2476, 96
        %v2576 = vpop.permute.xlu0 %2575
        %2577 = vrot.lane.b32.xlu0 %v2480, 96
        %v2578 = vpop.permute.xlu0 %2577
        %2579 = vrot.lane.b32.xlu0 %v2484, 96
        %v2580 = vpop.permute.xlu0 %2579
        %2581 = vrot.lane.b32.xlu0 %v2488, 96
        %v2582 = vpop.permute.xlu0 %2581
        %2583 = vrot.lane.b32.xlu0 %v2492, 96
        %v2584 = vpop.permute.xlu0 %2583
        %2585 = vrot.lane.b32.xlu0 %v2496, 96
        %v2586 = vpop.permute.xlu0 %2585
        %2587 = vrot.lane.b32.xlu0 %v2500, 96
        %v2588 = vpop.permute.xlu0 %2587
        %2589 = vrot.lane.b32.xlu0 %v2504, 96
        %v2590 = vpop.permute.xlu0 %2589
        %2591 = vrot.lane.b32.xlu0 %v2508, 96
        %v2592 = vpop.permute.xlu0 %2591
        %2605 = vst.msk [vmem:[%s420 + $0x2] sm:$0x1] %vm2334, %v2570
        %2606 = vst.msk [vmem:[%s420 + $0x12] sm:$0x1] %vm2334, %v2572
        %2607 = vst.msk [vmem:[%s420 + $0x22] sm:$0x1] %vm2334, %v2574
        %2608 = vst.msk [vmem:[%s420 + $0x32] sm:$0x1] %vm2334, %v2576
        %2609 = vst.msk [vmem:[%s420 + $0x42] sm:$0x1] %vm2334, %v2578
        %2610 = vst.msk [vmem:[%s420 + $0x52] sm:$0x1] %vm2334, %v2580
        %2611 = vst.msk [vmem:[%s420 + $0x62] sm:$0x1] %vm2334, %v2582
        %2612 = vst.msk [vmem:[%s420 + $0x72] sm:$0x1] %vm2334, %v2584
        %2613 = vst.msk [vmem:[%s420 + $0x82] sm:$0x1] %vm2334, %v2586
        %2614 = vst.msk [vmem:[%s420 + $0x92] sm:$0x1] %vm2334, %v2588
        %2615 = vst.msk [vmem:[%s420 + $0xa2] sm:$0x1] %vm2334, %v2590
        %2616 = vst.msk [vmem:[%s420 + $0xb2] sm:$0x1] %vm2334, %v2592
        %2617 = vrot.lane.b32.xlu0 %v2440, 80
        %v2618 = vpop.permute.xlu0 %2617
        %2619 = vrot.lane.b32.xlu0 %v2444, 80
        %v2620 = vpop.permute.xlu0 %2619
        %2621 = vrot.lane.b32.xlu0 %v2448, 80
        %v2622 = vpop.permute.xlu0 %2621
        %2626 = vst.msk [vmem:[%s414 + $0x3] sm:$0x1] %vm2334, %v2618
        %2627 = vst.msk [vmem:[%s414 + $0x13] sm:$0x1] %vm2334, %v2620
        %2628 = vst.msk [vmem:[%s414 + $0x23] sm:$0x1] %vm2334, %v2622
        %2629 = vrot.lane.b32.xlu0 %v2464, 80
        %v2630 = vpop.permute.xlu0 %2629
        %2631 = vrot.lane.b32.xlu0 %v2468, 80
        %v2632 = vpop.permute.xlu0 %2631
        %2633 = vrot.lane.b32.xlu0 %v2472, 80
        %v2634 = vpop.permute.xlu0 %2633
        %2635 = vrot.lane.b32.xlu0 %v2476, 80
        %v2636 = vpop.permute.xlu0 %2635
        %2637 = vrot.lane.b32.xlu0 %v2480, 80
        %v2638 = vpop.permute.xlu0 %2637
        %2639 = vrot.lane.b32.xlu0 %v2484, 80
        %v2640 = vpop.permute.xlu0 %2639
        %2641 = vrot.lane.b32.xlu0 %v2488, 80
        %v2642 = vpop.permute.xlu0 %2641
        %2643 = vrot.lane.b32.xlu0 %v2492, 80
        %v2644 = vpop.permute.xlu0 %2643
        %2645 = vrot.lane.b32.xlu0 %v2496, 80
        %v2646 = vpop.permute.xlu0 %2645
        %2647 = vrot.lane.b32.xlu0 %v2500, 80
        %v2648 = vpop.permute.xlu0 %2647
        %2649 = vrot.lane.b32.xlu0 %v2504, 80
        %v2650 = vpop.permute.xlu0 %2649
        %2651 = vrot.lane.b32.xlu0 %v2508, 80
        %v2652 = vpop.permute.xlu0 %2651
        %2665 = vst.msk [vmem:[%s420 + $0x3] sm:$0x1] %vm2334, %v2630
        %2666 = vst.msk [vmem:[%s420 + $0x13] sm:$0x1] %vm2334, %v2632
        %2667 = vst.msk [vmem:[%s420 + $0x23] sm:$0x1] %vm2334, %v2634
        %2668 = vst.msk [vmem:[%s420 + $0x33] sm:$0x1] %vm2334, %v2636
        %2669 = vst.msk [vmem:[%s420 + $0x43] sm:$0x1] %vm2334, %v2638
        %2670 = vst.msk [vmem:[%s420 + $0x53] sm:$0x1] %vm2334, %v2640
        %2671 = vst.msk [vmem:[%s420 + $0x63] sm:$0x1] %vm2334, %v2642
        %2672 = vst.msk [vmem:[%s420 + $0x73] sm:$0x1] %vm2334, %v2644
        %2673 = vst.msk [vmem:[%s420 + $0x83] sm:$0x1] %vm2334, %v2646
        %2674 = vst.msk [vmem:[%s420 + $0x93] sm:$0x1] %vm2334, %v2648
        %2675 = vst.msk [vmem:[%s420 + $0xa3] sm:$0x1] %vm2334, %v2650
        %2676 = vst.msk [vmem:[%s420 + $0xb3] sm:$0x1] %vm2334, %v2652
        %2677 = vrot.lane.b32.xlu0 %v2440, 64
        %v2678 = vpop.permute.xlu0 %2677
        %2679 = vrot.lane.b32.xlu0 %v2444, 64
        %v2680 = vpop.permute.xlu0 %2679
        %2681 = vrot.lane.b32.xlu0 %v2448, 64
        %v2682 = vpop.permute.xlu0 %2681
        %2686 = vst.msk [vmem:[%s414 + $0x4] sm:$0x1] %vm2334, %v2678
        %2687 = vst.msk [vmem:[%s414 + $0x14] sm:$0x1] %vm2334, %v2680
        %2688 = vst.msk [vmem:[%s414 + $0x24] sm:$0x1] %vm2334, %v2682
        %2689 = vrot.lane.b32.xlu0 %v2464, 64
        %v2690 = vpop.permute.xlu0 %2689
        %2691 = vrot.lane.b32.xlu0 %v2468, 64
        %v2692 = vpop.permute.xlu0 %2691
        %2693 = vrot.lane.b32.xlu0 %v2472, 64
        %v2694 = vpop.permute.xlu0 %2693
        %2695 = vrot.lane.b32.xlu0 %v2476, 64
        %v2696 = vpop.permute.xlu0 %2695
        %2697 = vrot.lane.b32.xlu0 %v2480, 64
        %v2698 = vpop.permute.xlu0 %2697
        %2699 = vrot.lane.b32.xlu0 %v2484, 64
        %v2700 = vpop.permute.xlu0 %2699
        %2701 = vrot.lane.b32.xlu0 %v2488, 64
        %v2702 = vpop.permute.xlu0 %2701
        %2703 = vrot.lane.b32.xlu0 %v2492, 64
        %v2704 = vpop.permute.xlu0 %2703
        %2705 = vrot.lane.b32.xlu0 %v2496, 64
        %v2706 = vpop.permute.xlu0 %2705
        %2707 = vrot.lane.b32.xlu0 %v2500, 64
        %v2708 = vpop.permute.xlu0 %2707
        %2709 = vrot.lane.b32.xlu0 %v2504, 64
        %v2710 = vpop.permute.xlu0 %2709
        %2711 = vrot.lane.b32.xlu0 %v2508, 64
        %v2712 = vpop.permute.xlu0 %2711
        %2725 = vst.msk [vmem:[%s420 + $0x4] sm:$0x1] %vm2334, %v2690
        %2726 = vst.msk [vmem:[%s420 + $0x14] sm:$0x1] %vm2334, %v2692
        %2727 = vst.msk [vmem:[%s420 + $0x24] sm:$0x1] %vm2334, %v2694
        %2728 = vst.msk [vmem:[%s420 + $0x34] sm:$0x1] %vm2334, %v2696
        %2729 = vst.msk [vmem:[%s420 + $0x44] sm:$0x1] %vm2334, %v2698
        %2730 = vst.msk [vmem:[%s420 + $0x54] sm:$0x1] %vm2334, %v2700
        %2731 = vst.msk [vmem:[%s420 + $0x64] sm:$0x1] %vm2334, %v2702
        %2732 = vst.msk [vmem:[%s420 + $0x74] sm:$0x1] %vm2334, %v2704
        %2733 = vst.msk [vmem:[%s420 + $0x84] sm:$0x1] %vm2334, %v2706
        %2734 = vst.msk [vmem:[%s420 + $0x94] sm:$0x1] %vm2334, %v2708
        %2735 = vst.msk [vmem:[%s420 + $0xa4] sm:$0x1] %vm2334, %v2710
        %2736 = vst.msk [vmem:[%s420 + $0xb4] sm:$0x1] %vm2334, %v2712
        %2737 = vrot.lane.b32.xlu0 %v2440, 48
        %v2738 = vpop.permute.xlu0 %2737
        %2739 = vrot.lane.b32.xlu0 %v2444, 48
        %v2740 = vpop.permute.xlu0 %2739
        %2741 = vrot.lane.b32.xlu0 %v2448, 48
        %v2742 = vpop.permute.xlu0 %2741
        %2746 = vst.msk [vmem:[%s414 + $0x5] sm:$0x1] %vm2334, %v2738
        %2747 = vst.msk [vmem:[%s414 + $0x15] sm:$0x1] %vm2334, %v2740
        %2748 = vst.msk [vmem:[%s414 + $0x25] sm:$0x1] %vm2334, %v2742
        %2749 = vrot.lane.b32.xlu0 %v2464, 48
        %v2750 = vpop.permute.xlu0 %2749
        %2751 = vrot.lane.b32.xlu0 %v2468, 48
        %v2752 = vpop.permute.xlu0 %2751
        %2753 = vrot.lane.b32.xlu0 %v2472, 48
        %v2754 = vpop.permute.xlu0 %2753
        %2755 = vrot.lane.b32.xlu0 %v2476, 48
        %v2756 = vpop.permute.xlu0 %2755
        %2757 = vrot.lane.b32.xlu0 %v2480, 48
        %v2758 = vpop.permute.xlu0 %2757
        %2759 = vrot.lane.b32.xlu0 %v2484, 48
        %v2760 = vpop.permute.xlu0 %2759
        %2761 = vrot.lane.b32.xlu0 %v2488, 48
        %v2762 = vpop.permute.xlu0 %2761
        %2763 = vrot.lane.b32.xlu0 %v2492, 48
        %v2764 = vpop.permute.xlu0 %2763
        %2765 = vrot.lane.b32.xlu0 %v2496, 48
        %v2766 = vpop.permute.xlu0 %2765
        %2767 = vrot.lane.b32.xlu0 %v2500, 48
        %v2768 = vpop.permute.xlu0 %2767
        %2769 = vrot.lane.b32.xlu0 %v2504, 48
        %v2770 = vpop.permute.xlu0 %2769
        %2771 = vrot.lane.b32.xlu0 %v2508, 48
        %v2772 = vpop.permute.xlu0 %2771
        %2785 = vst.msk [vmem:[%s420 + $0x5] sm:$0x1] %vm2334, %v2750
        %2786 = vst.msk [vmem:[%s420 + $0x15] sm:$0x1] %vm2334, %v2752
        %2787 = vst.msk [vmem:[%s420 + $0x25] sm:$0x1] %vm2334, %v2754
        %2788 = vst.msk [vmem:[%s420 + $0x35] sm:$0x1] %vm2334, %v2756
        %2789 = vst.msk [vmem:[%s420 + $0x45] sm:$0x1] %vm2334, %v2758
        %2790 = vst.msk [vmem:[%s420 + $0x55] sm:$0x1] %vm2334, %v2760
        %2791 = vst.msk [vmem:[%s420 + $0x65] sm:$0x1] %vm2334, %v2762
        %2792 = vst.msk [vmem:[%s420 + $0x75] sm:$0x1] %vm2334, %v2764
        %2793 = vst.msk [vmem:[%s420 + $0x85] sm:$0x1] %vm2334, %v2766
        %2794 = vst.msk [vmem:[%s420 + $0x95] sm:$0x1] %vm2334, %v2768
        %2795 = vst.msk [vmem:[%s420 + $0xa5] sm:$0x1] %vm2334, %v2770
        %2796 = vst.msk [vmem:[%s420 + $0xb5] sm:$0x1] %vm2334, %v2772
        %2797 = vrot.lane.b32.xlu0 %v2440, 32
        %v2798 = vpop.permute.xlu0 %2797
        %2799 = vrot.lane.b32.xlu0 %v2444, 32
        %v2800 = vpop.permute.xlu0 %2799
        %2801 = vrot.lane.b32.xlu0 %v2448, 32
        %v2802 = vpop.permute.xlu0 %2801
        %2806 = vst.msk [vmem:[%s414 + $0x6] sm:$0x1] %vm2334, %v2798
        %2807 = vst.msk [vmem:[%s414 + $0x16] sm:$0x1] %vm2334, %v2800
        %2808 = vst.msk [vmem:[%s414 + $0x26] sm:$0x1] %vm2334, %v2802
        %2809 = vrot.lane.b32.xlu0 %v2464, 32
        %v2810 = vpop.permute.xlu0 %2809
        %2811 = vrot.lane.b32.xlu0 %v2468, 32
        %v2812 = vpop.permute.xlu0 %2811
        %2813 = vrot.lane.b32.xlu0 %v2472, 32
        %v2814 = vpop.permute.xlu0 %2813
        %2815 = vrot.lane.b32.xlu0 %v2476, 32
        %v2816 = vpop.permute.xlu0 %2815
        %2817 = vrot.lane.b32.xlu0 %v2480, 32
        %v2818 = vpop.permute.xlu0 %2817
        %2819 = vrot.lane.b32.xlu0 %v2484, 32
        %v2820 = vpop.permute.xlu0 %2819
        %2821 = vrot.lane.b32.xlu0 %v2488, 32
        %v2822 = vpop.permute.xlu0 %2821
        %2823 = vrot.lane.b32.xlu0 %v2492, 32
        %v2824 = vpop.permute.xlu0 %2823
        %2825 = vrot.lane.b32.xlu0 %v2496, 32
        %v2826 = vpop.permute.xlu0 %2825
        %2827 = vrot.lane.b32.xlu0 %v2500, 32
        %v2828 = vpop.permute.xlu0 %2827
        %2829 = vrot.lane.b32.xlu0 %v2504, 32
        %v2830 = vpop.permute.xlu0 %2829
        %2831 = vrot.lane.b32.xlu0 %v2508, 32
        %v2832 = vpop.permute.xlu0 %2831
        %2845 = vst.msk [vmem:[%s420 + $0x6] sm:$0x1] %vm2334, %v2810
        %2846 = vst.msk [vmem:[%s420 + $0x16] sm:$0x1] %vm2334, %v2812
        %2847 = vst.msk [vmem:[%s420 + $0x26] sm:$0x1] %vm2334, %v2814
        %2848 = vst.msk [vmem:[%s420 + $0x36] sm:$0x1] %vm2334, %v2816
        %2849 = vst.msk [vmem:[%s420 + $0x46] sm:$0x1] %vm2334, %v2818
        %2850 = vst.msk [vmem:[%s420 + $0x56] sm:$0x1] %vm2334, %v2820
        %2851 = vst.msk [vmem:[%s420 + $0x66] sm:$0x1] %vm2334, %v2822
        %2852 = vst.msk [vmem:[%s420 + $0x76] sm:$0x1] %vm2334, %v2824
        %2853 = vst.msk [vmem:[%s420 + $0x86] sm:$0x1] %vm2334, %v2826
        %2854 = vst.msk [vmem:[%s420 + $0x96] sm:$0x1] %vm2334, %v2828
        %2855 = vst.msk [vmem:[%s420 + $0xa6] sm:$0x1] %vm2334, %v2830
        %2856 = vst.msk [vmem:[%s420 + $0xb6] sm:$0x1] %vm2334, %v2832
        %2857 = vrot.lane.b32.xlu0 %v2440, 16
        %v2858 = vpop.permute.xlu0 %2857
        %2859 = vrot.lane.b32.xlu0 %v2444, 16
        %v2860 = vpop.permute.xlu0 %2859
        %2861 = vrot.lane.b32.xlu0 %v2448, 16
        %v2862 = vpop.permute.xlu0 %2861
        %2866 = vst.msk [vmem:[%s414 + $0x7] sm:$0x1] %vm2334, %v2858
        %2867 = vst.msk [vmem:[%s414 + $0x17] sm:$0x1] %vm2334, %v2860
        %2868 = vst.msk [vmem:[%s414 + $0x27] sm:$0x1] %vm2334, %v2862
        %2869 = vrot.lane.b32.xlu0 %v2464, 16
        %v2870 = vpop.permute.xlu0 %2869
        %2871 = vrot.lane.b32.xlu0 %v2468, 16
        %v2872 = vpop.permute.xlu0 %2871
        %2873 = vrot.lane.b32.xlu0 %v2472, 16
        %v2874 = vpop.permute.xlu0 %2873
        %2875 = vrot.lane.b32.xlu0 %v2476, 16
        %v2876 = vpop.permute.xlu0 %2875
        %2877 = vrot.lane.b32.xlu0 %v2480, 16
        %v2878 = vpop.permute.xlu0 %2877
        %2879 = vrot.lane.b32.xlu0 %v2484, 16
        %v2880 = vpop.permute.xlu0 %2879
        %2881 = vrot.lane.b32.xlu0 %v2488, 16
        %v2882 = vpop.permute.xlu0 %2881
        %2883 = vrot.lane.b32.xlu0 %v2492, 16
        %v2884 = vpop.permute.xlu0 %2883
        %2885 = vrot.lane.b32.xlu0 %v2496, 16
        %v2886 = vpop.permute.xlu0 %2885
        %2887 = vrot.lane.b32.xlu0 %v2500, 16
        %v2888 = vpop.permute.xlu0 %2887
        %2889 = vrot.lane.b32.xlu0 %v2504, 16
        %v2890 = vpop.permute.xlu0 %2889
        %2891 = vrot.lane.b32.xlu0 %v2508, 16
        %v2892 = vpop.permute.xlu0 %2891
        %2905 = vst.msk [vmem:[%s420 + $0x7] sm:$0x1] %vm2334, %v2870
        %2906 = vst.msk [vmem:[%s420 + $0x17] sm:$0x1] %vm2334, %v2872
        %2907 = vst.msk [vmem:[%s420 + $0x27] sm:$0x1] %vm2334, %v2874
        %2908 = vst.msk [vmem:[%s420 + $0x37] sm:$0x1] %vm2334, %v2876
        %2909 = vst.msk [vmem:[%s420 + $0x47] sm:$0x1] %vm2334, %v2878
        %2910 = vst.msk [vmem:[%s420 + $0x57] sm:$0x1] %vm2334, %v2880
        %2911 = vst.msk [vmem:[%s420 + $0x67] sm:$0x1] %vm2334, %v2882
        %2912 = vst.msk [vmem:[%s420 + $0x77] sm:$0x1] %vm2334, %v2884
        %2913 = vst.msk [vmem:[%s420 + $0x87] sm:$0x1] %vm2334, %v2886
        %2914 = vst.msk [vmem:[%s420 + $0x97] sm:$0x1] %vm2334, %v2888
        %2915 = vst.msk [vmem:[%s420 + $0xa7] sm:$0x1] %vm2334, %v2890
        %2916 = vst.msk [vmem:[%s420 + $0xb7] sm:$0x1] %vm2334, %v2892
        %v2919 = vunpack.c.l.s4 1966171168
        %v2920 = vunpack.c.0.s8 %v2919
        %v2921 = vlaneseq
        %v2922 = vshrl.u32 %v2921, 7
        %v2923 = vsub.s32 %v2920, %v2922
        %v2924 = vrot.slane %v2299, %v2923
        %v2925 = vcombine.high %v2924, %v2924
        %v2927 = vunpack.c.l.s4 1966171168
        %v2928 = vunpack.c.0.s8 %v2927
        %v2929 = vlaneseq
        %v2930 = vshrl.u32 %v2929, 7
        %v2931 = vsub.s32 %v2928, %v2930
        %v2932 = vrot.slane %v2924, %v2931
        %v2934 = vunpack.c.l.s4 1966171168
        %v2935 = vunpack.c.0.s8 %v2934
        %v2936 = vlaneseq
        %v2937 = vshrl.u32 %v2936, 7
        %v2938 = vsub.s32 %v2935, %v2937
        %v2939 = vrot.slane %v2925, %v2938
        %v2940 = vcombine.high %v2932, %v2932
        %2944 = vst.msk [vmem:[%s414 + $0x8] sm:$0x1] %vm2334, %v2932
        %2945 = vst.msk [vmem:[%s414 + $0x18] sm:$0x1] %vm2334, %v2939
        %2946 = vst.msk [vmem:[%s414 + $0x28] sm:$0x1] %vm2334, %v2940
        %v2948 = vcombine.high %v2299, %v2299
        %v2950 = vunpack.c.l.s4 1966171168
        %v2951 = vunpack.c.0.s8 %v2950
        %v2952 = vlaneseq
        %v2953 = vshrl.u32 %v2952, 7
        %v2954 = vsub.s32 %v2951, %v2953
        %v2955 = vrot.slane %v2948, %v2954
        %v2956 = vcombine.high %v2955, %v2955
        %v2958 = vunpack.c.l.s4 1966171168
        %v2959 = vunpack.c.0.s8 %v2958
        %v2960 = vlaneseq
        %v2961 = vshrl.u32 %v2960, 7
        %v2962 = vsub.s32 %v2959, %v2961
        %v2963 = vrot.slane %v2955, %v2962
        %v2965 = vunpack.c.l.s4 1966171168
        %v2966 = vunpack.c.0.s8 %v2965
        %v2967 = vlaneseq
        %v2968 = vshrl.u32 %v2967, 7
        %v2969 = vsub.s32 %v2966, %v2968
        %v2970 = vrot.slane %v2956, %v2969
        %v2971 = vcombine.high %v2963, %v2963
        %v2972 = vcombine.high %v2939, %v2939
        %v2973 = vcombine.high %v2970, %v2970
        %v2974 = vcombine.high %v2305, %v2305
        %v2976 = vunpack.c.l.s4 1966171168
        %v2977 = vunpack.c.0.s8 %v2976
        %v2978 = vlaneseq
        %v2979 = vshrl.u32 %v2978, 7
        %v2980 = vsub.s32 %v2977, %v2979
        %v2981 = vrot.slane %v2305, %v2980
        %v2983 = vunpack.c.l.s4 1966171168
        %v2984 = vunpack.c.0.s8 %v2983
        %v2985 = vlaneseq
        %v2986 = vshrl.u32 %v2985, 7
        %v2987 = vsub.s32 %v2984, %v2986
        %v2988 = vrot.slane %v2974, %v2987
        %v2989 = vcombine.high %v2981, %v2981
        %v2990 = vcombine.high %v2988, %v2988
        %v2992 = vunpack.c.l.s4 1966171168
        %v2993 = vunpack.c.0.s8 %v2992
        %v2994 = vlaneseq
        %v2995 = vshrl.u32 %v2994, 7
        %v2996 = vsub.s32 %v2993, %v2995
        %v2997 = vrot.slane %v2981, %v2996
        %v2999 = vunpack.c.l.s4 1966171168
        %v3000 = vunpack.c.0.s8 %v2999
        %v3001 = vlaneseq
        %v3002 = vshrl.u32 %v3001, 7
        %v3003 = vsub.s32 %v3000, %v3002
        %v3004 = vrot.slane %v2988, %v3003
        %v3006 = vunpack.c.l.s4 1966171168
        %v3007 = vunpack.c.0.s8 %v3006
        %v3008 = vlaneseq
        %v3009 = vshrl.u32 %v3008, 7
        %v3010 = vsub.s32 %v3007, %v3009
        %v3011 = vrot.slane %v2989, %v3010
        %v3013 = vunpack.c.l.s4 1966171168
        %v3014 = vunpack.c.0.s8 %v3013
        %v3015 = vlaneseq
        %v3016 = vshrl.u32 %v3015, 7
        %v3017 = vsub.s32 %v3014, %v3016
        %v3018 = vrot.slane %v2990, %v3017
        %v3019 = vcombine.high %v2997, %v2997
        %v3020 = vcombine.high %v3004, %v3004
        %v3021 = vcombine.high %v3011, %v3011
        %3034 = vst.msk [vmem:[%s420 + $0x8] sm:$0x1] %vm2334, %v2972
        %3035 = vst.msk [vmem:[%s420 + $0x18] sm:$0x1] %vm2334, %v2963
        %3036 = vst.msk [vmem:[%s420 + $0x28] sm:$0x1] %vm2334, %v2970
        %3037 = vst.msk [vmem:[%s420 + $0x38] sm:$0x1] %vm2334, %v2971
        %3038 = vst.msk [vmem:[%s420 + $0x48] sm:$0x1] %vm2334, %v2973
        %3039 = vst.msk [vmem:[%s420 + $0x58] sm:$0x1] %vm2334, %v2997
        %3040 = vst.msk [vmem:[%s420 + $0x68] sm:$0x1] %vm2334, %v3011
        %3041 = vst.msk [vmem:[%s420 + $0x78] sm:$0x1] %vm2334, %v3019
        %3042 = vst.msk [vmem:[%s420 + $0x88] sm:$0x1] %vm2334, %v3021
        %3043 = vst.msk [vmem:[%s420 + $0x98] sm:$0x1] %vm2334, %v3004
        %3044 = vst.msk [vmem:[%s420 + $0xa8] sm:$0x1] %vm2334, %v3018
        %3045 = vst.msk [vmem:[%s420 + $0xb8] sm:$0x1] %vm2334, %v3020
        %v3046 = vlaneseq
        %v3047 = vshrl.u32 %v3046, 7
        %v3048 = vsub.s32 0, %v3047
        %v3049 = vrot.slane %v2932, %v3048
        %v3050 = vlaneseq
        %v3051 = vshrl.u32 %v3050, 7
        %v3052 = vsub.s32 0, %v3051
        %v3053 = vrot.slane %v2939, %v3052
        %v3054 = vlaneseq
        %v3055 = vshrl.u32 %v3054, 7
        %v3056 = vsub.s32 0, %v3055
        %v3057 = vrot.slane %v2940, %v3056
        %3058 = vrot.lane.b32.xlu0 %v3049, 112
        %v3059 = vpop.permute.xlu0 %3058
        %3060 = vrot.lane.b32.xlu0 %v3053, 112
        %v3061 = vpop.permute.xlu0 %3060
        %3062 = vrot.lane.b32.xlu0 %v3057, 112
        %v3063 = vpop.permute.xlu0 %3062
        %3067 = vst.msk [vmem:[%s414 + $0x9] sm:$0x1] %vm2334, %v3059
        %3068 = vst.msk [vmem:[%s414 + $0x19] sm:$0x1] %vm2334, %v3061
        %3069 = vst.msk [vmem:[%s414 + $0x29] sm:$0x1] %vm2334, %v3063
        %v3070 = vlaneseq
        %v3071 = vshrl.u32 %v3070, 7
        %v3072 = vsub.s32 0, %v3071
        %v3073 = vrot.slane %v2972, %v3072
        %v3074 = vlaneseq
        %v3075 = vshrl.u32 %v3074, 7
        %v3076 = vsub.s32 0, %v3075
        %v3077 = vrot.slane %v2963, %v3076
        %v3078 = vlaneseq
        %v3079 = vshrl.u32 %v3078, 7
        %v3080 = vsub.s32 0, %v3079
        %v3081 = vrot.slane %v2970, %v3080
        %v3082 = vlaneseq
        %v3083 = vshrl.u32 %v3082, 7
        %v3084 = vsub.s32 0, %v3083
        %v3085 = vrot.slane %v2971, %v3084
        %v3086 = vlaneseq
        %v3087 = vshrl.u32 %v3086, 7
        %v3088 = vsub.s32 0, %v3087
        %v3089 = vrot.slane %v2973, %v3088
        %v3090 = vlaneseq
        %v3091 = vshrl.u32 %v3090, 7
        %v3092 = vsub.s32 0, %v3091
        %v3093 = vrot.slane %v2997, %v3092
        %v3094 = vlaneseq
        %v3095 = vshrl.u32 %v3094, 7
        %v3096 = vsub.s32 0, %v3095
        %v3097 = vrot.slane %v3011, %v3096
        %v3098 = vlaneseq
        %v3099 = vshrl.u32 %v3098, 7
        %v3100 = vsub.s32 0, %v3099
        %v3101 = vrot.slane %v3019, %v3100
        %v3102 = vlaneseq
        %v3103 = vshrl.u32 %v3102, 7
        %v3104 = vsub.s32 0, %v3103
        %v3105 = vrot.slane %v3021, %v3104
        %v3106 = vlaneseq
        %v3107 = vshrl.u32 %v3106, 7
        %v3108 = vsub.s32 0, %v3107
        %v3109 = vrot.slane %v3004, %v3108
        %v3110 = vlaneseq
        %v3111 = vshrl.u32 %v3110, 7
        %v3112 = vsub.s32 0, %v3111
        %v3113 = vrot.slane %v3018, %v3112
        %v3114 = vlaneseq
        %v3115 = vshrl.u32 %v3114, 7
        %v3116 = vsub.s32 0, %v3115
        %v3117 = vrot.slane %v3020, %v3116
        %3118 = vrot.lane.b32.xlu0 %v3073, 112
        %v3119 = vpop.permute.xlu0 %3118
        %3120 = vrot.lane.b32.xlu0 %v3077, 112
        %v3121 = vpop.permute.xlu0 %3120
        %3122 = vrot.lane.b32.xlu0 %v3081, 112
        %v3123 = vpop.permute.xlu0 %3122
        %3124 = vrot.lane.b32.xlu0 %v3085, 112
        %v3125 = vpop.permute.xlu0 %3124
        %3126 = vrot.lane.b32.xlu0 %v3089, 112
        %v3127 = vpop.permute.xlu0 %3126
        %3128 = vrot.lane.b32.xlu0 %v3093, 112
        %v3129 = vpop.permute.xlu0 %3128
        %3130 = vrot.lane.b32.xlu0 %v3097, 112
        %v3131 = vpop.permute.xlu0 %3130
        %3132 = vrot.lane.b32.xlu0 %v3101, 112
        %v3133 = vpop.permute.xlu0 %3132
        %3134 = vrot.lane.b32.xlu0 %v3105, 112
        %v3135 = vpop.permute.xlu0 %3134
        %3136 = vrot.lane.b32.xlu0 %v3109, 112
        %v3137 = vpop.permute.xlu0 %3136
        %3138 = vrot.lane.b32.xlu0 %v3113, 112
        %v3139 = vpop.permute.xlu0 %3138
        %3140 = vrot.lane.b32.xlu0 %v3117, 112
        %v3141 = vpop.permute.xlu0 %3140
        %3154 = vst.msk [vmem:[%s420 + $0x9] sm:$0x1] %vm2334, %v3119
        %3155 = vst.msk [vmem:[%s420 + $0x19] sm:$0x1] %vm2334, %v3121
        %3156 = vst.msk [vmem:[%s420 + $0x29] sm:$0x1] %vm2334, %v3123
        %3157 = vst.msk [vmem:[%s420 + $0x39] sm:$0x1] %vm2334, %v3125
        %3158 = vst.msk [vmem:[%s420 + $0x49] sm:$0x1] %vm2334, %v3127
        %3159 = vst.msk [vmem:[%s420 + $0x59] sm:$0x1] %vm2334, %v3129
        %3160 = vst.msk [vmem:[%s420 + $0x69] sm:$0x1] %vm2334, %v3131
        %3161 = vst.msk [vmem:[%s420 + $0x79] sm:$0x1] %vm2334, %v3133
        %3162 = vst.msk [vmem:[%s420 + $0x89] sm:$0x1] %vm2334, %v3135
        %3163 = vst.msk [vmem:[%s420 + $0x99] sm:$0x1] %vm2334, %v3137
        %3164 = vst.msk [vmem:[%s420 + $0xa9] sm:$0x1] %vm2334, %v3139
        %3165 = vst.msk [vmem:[%s420 + $0xb9] sm:$0x1] %vm2334, %v3141
        %3166 = vrot.lane.b32.xlu0 %v3049, 96
        %v3167 = vpop.permute.xlu0 %3166
        %3168 = vrot.lane.b32.xlu0 %v3053, 96
        %v3169 = vpop.permute.xlu0 %3168
        %3170 = vrot.lane.b32.xlu0 %v3057, 96
        %v3171 = vpop.permute.xlu0 %3170
        %3175 = vst.msk [vmem:[%s414 + $0xa] sm:$0x1] %vm2334, %v3167
        %3176 = vst.msk [vmem:[%s414 + $0x1a] sm:$0x1] %vm2334, %v3169
        %3177 = vst.msk [vmem:[%s414 + $0x2a] sm:$0x1] %vm2334, %v3171
        %3178 = vrot.lane.b32.xlu0 %v3073, 96
        %v3179 = vpop.permute.xlu0 %3178
        %3180 = vrot.lane.b32.xlu0 %v3077, 96
        %v3181 = vpop.permute.xlu0 %3180
        %3182 = vrot.lane.b32.xlu0 %v3081, 96
        %v3183 = vpop.permute.xlu0 %3182
        %3184 = vrot.lane.b32.xlu0 %v3085, 96
        %v3185 = vpop.permute.xlu0 %3184
        %3186 = vrot.lane.b32.xlu0 %v3089, 96
        %v3187 = vpop.permute.xlu0 %3186
        %3188 = vrot.lane.b32.xlu0 %v3093, 96
        %v3189 = vpop.permute.xlu0 %3188
        %3190 = vrot.lane.b32.xlu0 %v3097, 96
        %v3191 = vpop.permute.xlu0 %3190
        %3192 = vrot.lane.b32.xlu0 %v3101, 96
        %v3193 = vpop.permute.xlu0 %3192
        %3194 = vrot.lane.b32.xlu0 %v3105, 96
        %v3195 = vpop.permute.xlu0 %3194
        %3196 = vrot.lane.b32.xlu0 %v3109, 96
        %v3197 = vpop.permute.xlu0 %3196
        %3198 = vrot.lane.b32.xlu0 %v3113, 96
        %v3199 = vpop.permute.xlu0 %3198
        %3200 = vrot.lane.b32.xlu0 %v3117, 96
        %v3201 = vpop.permute.xlu0 %3200
        %3214 = vst.msk [vmem:[%s420 + $0xa] sm:$0x1] %vm2334, %v3179
        %3215 = vst.msk [vmem:[%s420 + $0x1a] sm:$0x1] %vm2334, %v3181
        %3216 = vst.msk [vmem:[%s420 + $0x2a] sm:$0x1] %vm2334, %v3183
        %3217 = vst.msk [vmem:[%s420 + $0x3a] sm:$0x1] %vm2334, %v3185
        %3218 = vst.msk [vmem:[%s420 + $0x4a] sm:$0x1] %vm2334, %v3187
        %3219 = vst.msk [vmem:[%s420 + $0x5a] sm:$0x1] %vm2334, %v3189
        %3220 = vst.msk [vmem:[%s420 + $0x6a] sm:$0x1] %vm2334, %v3191
        %3221 = vst.msk [vmem:[%s420 + $0x7a] sm:$0x1] %vm2334, %v3193
        %3222 = vst.msk [vmem:[%s420 + $0x8a] sm:$0x1] %vm2334, %v3195
        %3223 = vst.msk [vmem:[%s420 + $0x9a] sm:$0x1] %vm2334, %v3197
        %3224 = vst.msk [vmem:[%s420 + $0xaa] sm:$0x1] %vm2334, %v3199
        %3225 = vst.msk [vmem:[%s420 + $0xba] sm:$0x1] %vm2334, %v3201
        %3226 = vrot.lane.b32.xlu0 %v3049, 80
        %v3227 = vpop.permute.xlu0 %3226
        %3228 = vrot.lane.b32.xlu0 %v3053, 80
        %v3229 = vpop.permute.xlu0 %3228
        %3230 = vrot.lane.b32.xlu0 %v3057, 80
        %v3231 = vpop.permute.xlu0 %3230
        %3235 = vst.msk [vmem:[%s414 + $0xb] sm:$0x1] %vm2334, %v3227
        %3236 = vst.msk [vmem:[%s414 + $0x1b] sm:$0x1] %vm2334, %v3229
        %3237 = vst.msk [vmem:[%s414 + $0x2b] sm:$0x1] %vm2334, %v3231
        %3238 = vrot.lane.b32.xlu0 %v3073, 80
        %v3239 = vpop.permute.xlu0 %3238
        %3240 = vrot.lane.b32.xlu0 %v3077, 80
        %v3241 = vpop.permute.xlu0 %3240
        %3242 = vrot.lane.b32.xlu0 %v3081, 80
        %v3243 = vpop.permute.xlu0 %3242
        %3244 = vrot.lane.b32.xlu0 %v3085, 80
        %v3245 = vpop.permute.xlu0 %3244
        %3246 = vrot.lane.b32.xlu0 %v3089, 80
        %v3247 = vpop.permute.xlu0 %3246
        %3248 = vrot.lane.b32.xlu0 %v3093, 80
        %v3249 = vpop.permute.xlu0 %3248
        %3250 = vrot.lane.b32.xlu0 %v3097, 80
        %v3251 = vpop.permute.xlu0 %3250
        %3252 = vrot.lane.b32.xlu0 %v3101, 80
        %v3253 = vpop.permute.xlu0 %3252
        %3254 = vrot.lane.b32.xlu0 %v3105, 80
        %v3255 = vpop.permute.xlu0 %3254
        %3256 = vrot.lane.b32.xlu0 %v3109, 80
        %v3257 = vpop.permute.xlu0 %3256
        %3258 = vrot.lane.b32.xlu0 %v3113, 80
        %v3259 = vpop.permute.xlu0 %3258
        %3260 = vrot.lane.b32.xlu0 %v3117, 80
        %v3261 = vpop.permute.xlu0 %3260
        %3274 = vst.msk [vmem:[%s420 + $0xb] sm:$0x1] %vm2334, %v3239
        %3275 = vst.msk [vmem:[%s420 + $0x1b] sm:$0x1] %vm2334, %v3241
        %3276 = vst.msk [vmem:[%s420 + $0x2b] sm:$0x1] %vm2334, %v3243
        %3277 = vst.msk [vmem:[%s420 + $0x3b] sm:$0x1] %vm2334, %v3245
        %3278 = vst.msk [vmem:[%s420 + $0x4b] sm:$0x1] %vm2334, %v3247
        %3279 = vst.msk [vmem:[%s420 + $0x5b] sm:$0x1] %vm2334, %v3249
        %3280 = vst.msk [vmem:[%s420 + $0x6b] sm:$0x1] %vm2334, %v3251
        %3281 = vst.msk [vmem:[%s420 + $0x7b] sm:$0x1] %vm2334, %v3253
        %3282 = vst.msk [vmem:[%s420 + $0x8b] sm:$0x1] %vm2334, %v3255
        %3283 = vst.msk [vmem:[%s420 + $0x9b] sm:$0x1] %vm2334, %v3257
        %3284 = vst.msk [vmem:[%s420 + $0xab] sm:$0x1] %vm2334, %v3259
        %3285 = vst.msk [vmem:[%s420 + $0xbb] sm:$0x1] %vm2334, %v3261
        %3286 = vrot.lane.b32.xlu0 %v3049, 64
        %v3287 = vpop.permute.xlu0 %3286
        %3288 = vrot.lane.b32.xlu0 %v3053, 64
        %v3289 = vpop.permute.xlu0 %3288
        %3290 = vrot.lane.b32.xlu0 %v3057, 64
        %v3291 = vpop.permute.xlu0 %3290
        %3295 = vst.msk [vmem:[%s414 + $0xc] sm:$0x1] %vm2334, %v3287
        %3296 = vst.msk [vmem:[%s414 + $0x1c] sm:$0x1] %vm2334, %v3289
        %3297 = vst.msk [vmem:[%s414 + $0x2c] sm:$0x1] %vm2334, %v3291
        %3298 = vrot.lane.b32.xlu0 %v3073, 64
        %v3299 = vpop.permute.xlu0 %3298
        %3300 = vrot.lane.b32.xlu0 %v3077, 64
        %v3301 = vpop.permute.xlu0 %3300
        %3302 = vrot.lane.b32.xlu0 %v3081, 64
        %v3303 = vpop.permute.xlu0 %3302
        %3304 = vrot.lane.b32.xlu0 %v3085, 64
        %v3305 = vpop.permute.xlu0 %3304
        %3306 = vrot.lane.b32.xlu0 %v3089, 64
        %v3307 = vpop.permute.xlu0 %3306
        %3308 = vrot.lane.b32.xlu0 %v3093, 64
        %v3309 = vpop.permute.xlu0 %3308
        %3310 = vrot.lane.b32.xlu0 %v3097, 64
        %v3311 = vpop.permute.xlu0 %3310
        %3312 = vrot.lane.b32.xlu0 %v3101, 64
        %v3313 = vpop.permute.xlu0 %3312
        %3314 = vrot.lane.b32.xlu0 %v3105, 64
        %v3315 = vpop.permute.xlu0 %3314
        %3316 = vrot.lane.b32.xlu0 %v3109, 64
        %v3317 = vpop.permute.xlu0 %3316
        %3318 = vrot.lane.b32.xlu0 %v3113, 64
        %v3319 = vpop.permute.xlu0 %3318
        %3320 = vrot.lane.b32.xlu0 %v3117, 64
        %v3321 = vpop.permute.xlu0 %3320
        %3334 = vst.msk [vmem:[%s420 + $0xc] sm:$0x1] %vm2334, %v3299
        %3335 = vst.msk [vmem:[%s420 + $0x1c] sm:$0x1] %vm2334, %v3301
        %3336 = vst.msk [vmem:[%s420 + $0x2c] sm:$0x1] %vm2334, %v3303
        %3337 = vst.msk [vmem:[%s420 + $0x3c] sm:$0x1] %vm2334, %v3305
        %3338 = vst.msk [vmem:[%s420 + $0x4c] sm:$0x1] %vm2334, %v3307
        %3339 = vst.msk [vmem:[%s420 + $0x5c] sm:$0x1] %vm2334, %v3309
        %3340 = vst.msk [vmem:[%s420 + $0x6c] sm:$0x1] %vm2334, %v3311
        %3341 = vst.msk [vmem:[%s420 + $0x7c] sm:$0x1] %vm2334, %v3313
        %3342 = vst.msk [vmem:[%s420 + $0x8c] sm:$0x1] %vm2334, %v3315
        %3343 = vst.msk [vmem:[%s420 + $0x9c] sm:$0x1] %vm2334, %v3317
        %3344 = vst.msk [vmem:[%s420 + $0xac] sm:$0x1] %vm2334, %v3319
        %3345 = vst.msk [vmem:[%s420 + $0xbc] sm:$0x1] %vm2334, %v3321
        %3346 = vrot.lane.b32.xlu0 %v3049, 48
        %v3347 = vpop.permute.xlu0 %3346
        %3348 = vrot.lane.b32.xlu0 %v3053, 48
        %v3349 = vpop.permute.xlu0 %3348
        %3350 = vrot.lane.b32.xlu0 %v3057, 48
        %v3351 = vpop.permute.xlu0 %3350
        %3355 = vst.msk [vmem:[%s414 + $0xd] sm:$0x1] %vm2334, %v3347
        %3356 = vst.msk [vmem:[%s414 + $0x1d] sm:$0x1] %vm2334, %v3349
        %3357 = vst.msk [vmem:[%s414 + $0x2d] sm:$0x1] %vm2334, %v3351
        %3358 = vrot.lane.b32.xlu0 %v3073, 48
        %v3359 = vpop.permute.xlu0 %3358
        %3360 = vrot.lane.b32.xlu0 %v3077, 48
        %v3361 = vpop.permute.xlu0 %3360
        %3362 = vrot.lane.b32.xlu0 %v3081, 48
        %v3363 = vpop.permute.xlu0 %3362
        %3364 = vrot.lane.b32.xlu0 %v3085, 48
        %v3365 = vpop.permute.xlu0 %3364
        %3366 = vrot.lane.b32.xlu0 %v3089, 48
        %v3367 = vpop.permute.xlu0 %3366
        %3368 = vrot.lane.b32.xlu0 %v3093, 48
        %v3369 = vpop.permute.xlu0 %3368
        %3370 = vrot.lane.b32.xlu0 %v3097, 48
        %v3371 = vpop.permute.xlu0 %3370
        %3372 = vrot.lane.b32.xlu0 %v3101, 48
        %v3373 = vpop.permute.xlu0 %3372
        %3374 = vrot.lane.b32.xlu0 %v3105, 48
        %v3375 = vpop.permute.xlu0 %3374
        %3376 = vrot.lane.b32.xlu0 %v3109, 48
        %v3377 = vpop.permute.xlu0 %3376
        %3378 = vrot.lane.b32.xlu0 %v3113, 48
        %v3379 = vpop.permute.xlu0 %3378
        %3380 = vrot.lane.b32.xlu0 %v3117, 48
        %v3381 = vpop.permute.xlu0 %3380
        %3394 = vst.msk [vmem:[%s420 + $0xd] sm:$0x1] %vm2334, %v3359
        %3395 = vst.msk [vmem:[%s420 + $0x1d] sm:$0x1] %vm2334, %v3361
        %3396 = vst.msk [vmem:[%s420 + $0x2d] sm:$0x1] %vm2334, %v3363
        %3397 = vst.msk [vmem:[%s420 + $0x3d] sm:$0x1] %vm2334, %v3365
        %3398 = vst.msk [vmem:[%s420 + $0x4d] sm:$0x1] %vm2334, %v3367
        %3399 = vst.msk [vmem:[%s420 + $0x5d] sm:$0x1] %vm2334, %v3369
        %3400 = vst.msk [vmem:[%s420 + $0x6d] sm:$0x1] %vm2334, %v3371
        %3401 = vst.msk [vmem:[%s420 + $0x7d] sm:$0x1] %vm2334, %v3373
        %3402 = vst.msk [vmem:[%s420 + $0x8d] sm:$0x1] %vm2334, %v3375
        %3403 = vst.msk [vmem:[%s420 + $0x9d] sm:$0x1] %vm2334, %v3377
        %3404 = vst.msk [vmem:[%s420 + $0xad] sm:$0x1] %vm2334, %v3379
        %3405 = vst.msk [vmem:[%s420 + $0xbd] sm:$0x1] %vm2334, %v3381
        %3406 = vrot.lane.b32.xlu0 %v3049, 32
        %v3407 = vpop.permute.xlu0 %3406
        %3408 = vrot.lane.b32.xlu0 %v3053, 32
        %v3409 = vpop.permute.xlu0 %3408
        %3410 = vrot.lane.b32.xlu0 %v3057, 32
        %v3411 = vpop.permute.xlu0 %3410
        %3415 = vst.msk [vmem:[%s414 + $0xe] sm:$0x1] %vm2334, %v3407
        %3416 = vst.msk [vmem:[%s414 + $0x1e] sm:$0x1] %vm2334, %v3409
        %3417 = vst.msk [vmem:[%s414 + $0x2e] sm:$0x1] %vm2334, %v3411
        %3418 = vrot.lane.b32.xlu0 %v3073, 32
        %v3419 = vpop.permute.xlu0 %3418
        %3420 = vrot.lane.b32.xlu0 %v3077, 32
        %v3421 = vpop.permute.xlu0 %3420
        %3422 = vrot.lane.b32.xlu0 %v3081, 32
        %v3423 = vpop.permute.xlu0 %3422
        %3424 = vrot.lane.b32.xlu0 %v3085, 32
        %v3425 = vpop.permute.xlu0 %3424
        %3426 = vrot.lane.b32.xlu0 %v3089, 32
        %v3427 = vpop.permute.xlu0 %3426
        %3428 = vrot.lane.b32.xlu0 %v3093, 32
        %v3429 = vpop.permute.xlu0 %3428
        %3430 = vrot.lane.b32.xlu0 %v3097, 32
        %v3431 = vpop.permute.xlu0 %3430
        %3432 = vrot.lane.b32.xlu0 %v3101, 32
        %v3433 = vpop.permute.xlu0 %3432
        %3434 = vrot.lane.b32.xlu0 %v3105, 32
        %v3435 = vpop.permute.xlu0 %3434
        %3436 = vrot.lane.b32.xlu0 %v3109, 32
        %v3437 = vpop.permute.xlu0 %3436
        %3438 = vrot.lane.b32.xlu0 %v3113, 32
        %v3439 = vpop.permute.xlu0 %3438
        %3440 = vrot.lane.b32.xlu0 %v3117, 32
        %v3441 = vpop.permute.xlu0 %3440
        %3454 = vst.msk [vmem:[%s420 + $0xe] sm:$0x1] %vm2334, %v3419
        %3455 = vst.msk [vmem:[%s420 + $0x1e] sm:$0x1] %vm2334, %v3421
        %3456 = vst.msk [vmem:[%s420 + $0x2e] sm:$0x1] %vm2334, %v3423
        %3457 = vst.msk [vmem:[%s420 + $0x3e] sm:$0x1] %vm2334, %v3425
        %3458 = vst.msk [vmem:[%s420 + $0x4e] sm:$0x1] %vm2334, %v3427
        %3459 = vst.msk [vmem:[%s420 + $0x5e] sm:$0x1] %vm2334, %v3429
        %3460 = vst.msk [vmem:[%s420 + $0x6e] sm:$0x1] %vm2334, %v3431
        %3461 = vst.msk [vmem:[%s420 + $0x7e] sm:$0x1] %vm2334, %v3433
        %3462 = vst.msk [vmem:[%s420 + $0x8e] sm:$0x1] %vm2334, %v3435
        %3463 = vst.msk [vmem:[%s420 + $0x9e] sm:$0x1] %vm2334, %v3437
        %3464 = vst.msk [vmem:[%s420 + $0xae] sm:$0x1] %vm2334, %v3439
        %3465 = vst.msk [vmem:[%s420 + $0xbe] sm:$0x1] %vm2334, %v3441
        %3466 = vrot.lane.b32.xlu0 %v3049, 16
        %v3467 = vpop.permute.xlu0 %3466
        %3468 = vrot.lane.b32.xlu0 %v3053, 16
        %v3469 = vpop.permute.xlu0 %3468
        %3470 = vrot.lane.b32.xlu0 %v3057, 16
        %v3471 = vpop.permute.xlu0 %3470
        %3475 = vst.msk [vmem:[%s414 + $0xf] sm:$0x1] %vm2334, %v3467
        %3476 = vst.msk [vmem:[%s414 + $0x1f] sm:$0x1] %vm2334, %v3469
        %3477 = vst.msk [vmem:[%s414 + $0x2f] sm:$0x1] %vm2334, %v3471
        %3478 = vrot.lane.b32.xlu0 %v3073, 16
        %v3479 = vpop.permute.xlu0 %3478
        %3480 = vrot.lane.b32.xlu0 %v3077, 16
        %v3481 = vpop.permute.xlu0 %3480
        %3482 = vrot.lane.b32.xlu0 %v3081, 16
        %v3483 = vpop.permute.xlu0 %3482
        %3484 = vrot.lane.b32.xlu0 %v3085, 16
        %v3485 = vpop.permute.xlu0 %3484
        %3486 = vrot.lane.b32.xlu0 %v3089, 16
        %v3487 = vpop.permute.xlu0 %3486
        %3488 = vrot.lane.b32.xlu0 %v3093, 16
        %v3489 = vpop.permute.xlu0 %3488
        %3490 = vrot.lane.b32.xlu0 %v3097, 16
        %v3491 = vpop.permute.xlu0 %3490
        %3492 = vrot.lane.b32.xlu0 %v3101, 16
        %v3493 = vpop.permute.xlu0 %3492
        %3494 = vrot.lane.b32.xlu0 %v3105, 16
        %v3495 = vpop.permute.xlu0 %3494
        %3496 = vrot.lane.b32.xlu0 %v3109, 16
        %v3497 = vpop.permute.xlu0 %3496
        %3498 = vrot.lane.b32.xlu0 %v3113, 16
        %v3499 = vpop.permute.xlu0 %3498
        %3500 = vrot.lane.b32.xlu0 %v3117, 16
        %v3501 = vpop.permute.xlu0 %3500
        %3514 = vst.msk [vmem:[%s420 + $0xf] sm:$0x1] %vm2334, %v3479
        %3515 = vst.msk [vmem:[%s420 + $0x1f] sm:$0x1] %vm2334, %v3481
        %3516 = vst.msk [vmem:[%s420 + $0x2f] sm:$0x1] %vm2334, %v3483
        %3517 = vst.msk [vmem:[%s420 + $0x3f] sm:$0x1] %vm2334, %v3485
        %3518 = vst.msk [vmem:[%s420 + $0x4f] sm:$0x1] %vm2334, %v3487
        %3519 = vst.msk [vmem:[%s420 + $0x5f] sm:$0x1] %vm2334, %v3489
        %3520 = vst.msk [vmem:[%s420 + $0x6f] sm:$0x1] %vm2334, %v3491
        %3521 = vst.msk [vmem:[%s420 + $0x7f] sm:$0x1] %vm2334, %v3493
        %3522 = vst.msk [vmem:[%s420 + $0x8f] sm:$0x1] %vm2334, %v3495
        %3523 = vst.msk [vmem:[%s420 + $0x9f] sm:$0x1] %vm2334, %v3497
        %3524 = vst.msk [vmem:[%s420 + $0xaf] sm:$0x1] %vm2334, %v3499
        %3525 = vst.msk [vmem:[%s420 + $0xbf] sm:$0x1] %vm2334, %v3501
        %s3526 = sand.u32 %s226, 1
        %s3527 = sand.u32 %s226, 1
        %s3528 = smul.addr %s3527, 48
        %s3529 = scalar_lea.vmem [#allocation3], %s3528
        %s3530 = sand.u32 %s254, 1
        %s3531 = sand.u32 %s254, 1
        %s3532 = smul.addr %s3531, 192
        %s3533 = scalar_lea.vmem [#allocation4], %s3532
        // Predicated region
        $region65: #{rpn_head_forward.1} parent=47 // pred_check
          %p3534 = pneg %p236
        $region66: #{rpn_head_forward.1} parent=47 // pred_check_branch
          %3536 = sbr.rel (%p3534) target = $region68
        $region67: #{rpn_head_forward.1} parent=47 // pred_region
          %s3537 = smul.u32 2, %s25
          %s3538 = smul.addr %s24, 12
          %s3539 = sadd.s32 %s3537, %s3538
          %s3540 = smul.addr %s3539, 8
          %s3541 = scalar_lea.vmem %s7, %s3540
          // Predicated region
          $region69: #{rpn_head_forward.1} parent=67 // pred_check
            _
          $region70: #{rpn_head_forward.1} parent=67 // pred_check_branch
            %3543 = sbr.rel (0) target = $region72
          $region71: #{rpn_head_forward.1} parent=67 // pred_region
            // Predicated region
            $region73: #{rpn_head_forward.1} parent=71 // pred_check
              _
            $region74: #{rpn_head_forward.1} parent=71 // pred_check_branch
              %3545 = sbr.rel (0) target = $region76
            $region75: #{rpn_head_forward.1} parent=71 // pred_region
              // Predicated region
              $region88: #{rpn_head_forward.1} parent=75 // pred_check
                _
              $region89: #{rpn_head_forward.1} parent=75 // pred_check_branch
                %3570 = sbr.rel (0) target = $region91
              $region90: #{rpn_head_forward.1} parent=75 // pred_region
                loop: start=0, step=1, limit=1
                $region92: #{rpn_head_forward.1} parent=90 // loop_pre_header
                  _
                $region93: #{rpn_head_forward.1} parent=90 // loop_header
                  %s3572 = sphi 0, %s3576
                  %p3573 = scmp.ge.s32.totalorder %s3572, 1
                  %s3577 = sphi %s3529, %s3529
                  %s3578 = sphi %s3541, %s3541
                $region94: #{rpn_head_forward.1} parent=90 // loop_header_branch
                  %3575 = sbr.rel (%p3573) target = $region98
                $region95: #{rpn_head_forward.1} parent=90 // loop_body
                  %v3579 = vld [vmem:[%s3577] sm:$0xff]
                  %3580 = vst [vmem:[%s3578] sm:$0xff] %v3579
                  %v3581 = vld [vmem:[%s3577 + $0x8] sm:$0xff]
                  %3582 = vst [vmem:[%s3578 + $0x8] sm:$0xff] %v3581
                  %v3583 = vld [vmem:[%s3577 + $0x10] sm:$0xff]
                  %3584 = vst [vmem:[%s3578 + $0x20] sm:$0xff] %v3583
                  %v3585 = vld [vmem:[%s3577 + $0x18] sm:$0xff]
                  %3586 = vst [vmem:[%s3578 + $0x28] sm:$0xff] %v3585
                  %v3587 = vld [vmem:[%s3577 + $0x20] sm:$0xff]
                  %3588 = vst [vmem:[%s3578 + $0x40] sm:$0xff] %v3587
                  %v3589 = vld [vmem:[%s3577 + $0x28] sm:$0xff]
                  %3590 = vst [vmem:[%s3578 + $0x48] sm:$0xff] %v3589
                $region96: #{rpn_head_forward.1} parent=90 // loop_footer
                  %s3576 = sadd.s32 1, %s3572
                $region97: #{rpn_head_forward.1} parent=90 // loop_footer_branch
                  %3571 = sbr.rel target = $region93
                $region98: #{rpn_head_forward.1} parent=90 // loop_exit
                  _
              $region91: #{rpn_head_forward.1} parent=75 // pred_fallthru
                _
              // Predicated region
              $region99: #{rpn_head_forward.1} parent=75 // pred_check
                _
              $region100: #{rpn_head_forward.1} parent=75 // pred_check_branch
                %3592 = sbr.rel target = $region102
              $region101: #{rpn_head_forward.1} parent=75 // pred_region
                _
              $region102: #{rpn_head_forward.1} parent=75 // pred_fallthru
                _
            $region76: #{rpn_head_forward.1} parent=71 // pred_fallthru
              _
            // Predicated region
            $region77: #{rpn_head_forward.1} parent=71 // pred_check
              _
            $region78: #{rpn_head_forward.1} parent=71 // pred_check_branch
              %3547 = sbr.rel target = $region80
            $region79: #{rpn_head_forward.1} parent=71 // pred_region
              loop: start=0, step=1, limit=1
              $region81: #{rpn_head_forward.1} parent=79 // loop_pre_header
                _
              $region82: #{rpn_head_forward.1} parent=79 // loop_header
                %s3550 = sphi 0, %s3554
                %p3551 = scmp.ge.s32.totalorder %s3550, 1
                %s3555 = sphi %s3529, %s3529
                %s3556 = sphi %s3541, %s3541
              $region83: #{rpn_head_forward.1} parent=79 // loop_header_branch
                %3553 = sbr.rel (%p3551) target = $region87
              $region84: #{rpn_head_forward.1} parent=79 // loop_body
                %v3557 = vld [vmem:[%s3555] sm:$0xff]
                %3558 = vst [vmem:[%s3556] sm:$0xff] %v3557
                %v3559 = vld [vmem:[%s3555 + $0x8] sm:$0xff]
                %3560 = vst [vmem:[%s3556 + $0x8] sm:$0xff] %v3559
                %v3561 = vld [vmem:[%s3555 + $0x10] sm:$0xff]
                %3562 = vst [vmem:[%s3556 + $0x20] sm:$0xff] %v3561
                %v3563 = vld [vmem:[%s3555 + $0x18] sm:$0xff]
                %3564 = vst [vmem:[%s3556 + $0x28] sm:$0xff] %v3563
                %v3565 = vld [vmem:[%s3555 + $0x20] sm:$0xff]
                %3566 = vst [vmem:[%s3556 + $0x40] sm:$0xff] %v3565
                %v3567 = vld [vmem:[%s3555 + $0x28] sm:$0xff]
                %3568 = vst [vmem:[%s3556 + $0x48] sm:$0xff] %v3567
              $region85: #{rpn_head_forward.1} parent=79 // loop_footer
                %s3554 = sadd.s32 1, %s3550
              $region86: #{rpn_head_forward.1} parent=79 // loop_footer_branch
                %3549 = sbr.rel target = $region82
              $region87: #{rpn_head_forward.1} parent=79 // loop_exit
                _
            $region80: #{rpn_head_forward.1} parent=71 // pred_fallthru
              _
          $region72: #{rpn_head_forward.1} parent=67 // pred_fallthru
            _
          %3593 = vnop
        $region68: #{rpn_head_forward.1} parent=47 // pred_fallthru
          _
        // Predicated region
        $region103: #{rpn_head_forward.1} parent=47 // pred_check
          %p3594 = pneg %p264
        $region104: #{rpn_head_forward.1} parent=47 // pred_check_branch
          %3596 = sbr.rel (%p3594) target = $region106
        $region105: #{rpn_head_forward.1} parent=47 // pred_region
          %s3597 = smul.u32 2, %s25
          %s3598 = smul.addr %s24, 48
          %s3599 = sadd.s32 %s3597, %s3598
          %s3600 = smul.addr %s3599, 8
          %s3601 = scalar_lea.vmem %s8, %s3600
          // Predicated region
          $region107: #{rpn_head_forward.1} parent=105 // pred_check
            _
          $region108: #{rpn_head_forward.1} parent=105 // pred_check_branch
            %3603 = sbr.rel (0) target = $region110
          $region109: #{rpn_head_forward.1} parent=105 // pred_region
            // Predicated region
            $region111: #{rpn_head_forward.1} parent=109 // pred_check
              _
            $region112: #{rpn_head_forward.1} parent=109 // pred_check_branch
              %3605 = sbr.rel (0) target = $region114
            $region113: #{rpn_head_forward.1} parent=109 // pred_region
              // Predicated region
              $region126: #{rpn_head_forward.1} parent=113 // pred_check
                _
              $region127: #{rpn_head_forward.1} parent=113 // pred_check_branch
                %3666 = sbr.rel (0) target = $region129
              $region128: #{rpn_head_forward.1} parent=113 // pred_region
                loop: start=0, step=1, limit=1
                $region130: #{rpn_head_forward.1} parent=128 // loop_pre_header
                  _
                $region131: #{rpn_head_forward.1} parent=128 // loop_header
                  %s3668 = sphi 0, %s3672
                  %p3669 = scmp.ge.s32.totalorder %s3668, 1
                  %s3673 = sphi %s3533, %s3533
                  %s3674 = sphi %s3601, %s3601
                $region132: #{rpn_head_forward.1} parent=128 // loop_header_branch
                  %3671 = sbr.rel (%p3669) target = $region136
                $region133: #{rpn_head_forward.1} parent=128 // loop_body
                  %v3675 = vld [vmem:[%s3673] sm:$0xff]
                  %3676 = vst [vmem:[%s3674] sm:$0xff] %v3675
                  %v3677 = vld [vmem:[%s3673 + $0x8] sm:$0xff]
                  %3678 = vst [vmem:[%s3674 + $0x8] sm:$0xff] %v3677
                  %v3679 = vld [vmem:[%s3673 + $0x10] sm:$0xff]
                  %3680 = vst [vmem:[%s3674 + $0x20] sm:$0xff] %v3679
                  %v3681 = vld [vmem:[%s3673 + $0x18] sm:$0xff]
                  %3682 = vst [vmem:[%s3674 + $0x28] sm:$0xff] %v3681
                  %v3683 = vld [vmem:[%s3673 + $0x20] sm:$0xff]
                  %3684 = vst [vmem:[%s3674 + $0x40] sm:$0xff] %v3683
                  %v3685 = vld [vmem:[%s3673 + $0x28] sm:$0xff]
                  %3686 = vst [vmem:[%s3674 + $0x48] sm:$0xff] %v3685
                  %v3687 = vld [vmem:[%s3673 + $0x30] sm:$0xff]
                  %3688 = vst [vmem:[%s3674 + $0x60] sm:$0xff] %v3687
                  %v3689 = vld [vmem:[%s3673 + $0x38] sm:$0xff]
                  %3690 = vst [vmem:[%s3674 + $0x68] sm:$0xff] %v3689
                  %v3691 = vld [vmem:[%s3673 + $0x40] sm:$0xff]
                  %3692 = vst [vmem:[%s3674 + $0x80] sm:$0xff] %v3691
                  %v3693 = vld [vmem:[%s3673 + $0x48] sm:$0xff]
                  %3694 = vst [vmem:[%s3674 + $0x88] sm:$0xff] %v3693
                  %v3695 = vld [vmem:[%s3673 + $0x50] sm:$0xff]
                  %3696 = vst [vmem:[%s3674 + $0xa0] sm:$0xff] %v3695
                  %v3697 = vld [vmem:[%s3673 + $0x58] sm:$0xff]
                  %3698 = vst [vmem:[%s3674 + $0xa8] sm:$0xff] %v3697
                  %v3699 = vld [vmem:[%s3673 + $0x60] sm:$0xff]
                  %3700 = vst [vmem:[%s3674 + $0xc0] sm:$0xff] %v3699
                  %v3701 = vld [vmem:[%s3673 + $0x68] sm:$0xff]
                  %3702 = vst [vmem:[%s3674 + $0xc8] sm:$0xff] %v3701
                  %v3703 = vld [vmem:[%s3673 + $0x70] sm:$0xff]
                  %3704 = vst [vmem:[%s3674 + $0xe0] sm:$0xff] %v3703
                  %v3705 = vld [vmem:[%s3673 + $0x78] sm:$0xff]
                  %3706 = vst [vmem:[%s3674 + $0xe8] sm:$0xff] %v3705
                  %v3707 = vld [vmem:[%s3673 + $0x80] sm:$0xff]
                  %3708 = vst [vmem:[%s3674 + $0x100] sm:$0xff] %v3707
                  %v3709 = vld [vmem:[%s3673 + $0x88] sm:$0xff]
                  %3710 = vst [vmem:[%s3674 + $0x108] sm:$0xff] %v3709
                  %v3711 = vld [vmem:[%s3673 + $0x90] sm:$0xff]
                  %3712 = vst [vmem:[%s3674 + $0x120] sm:$0xff] %v3711
                  %v3713 = vld [vmem:[%s3673 + $0x98] sm:$0xff]
                  %3714 = vst [vmem:[%s3674 + $0x128] sm:$0xff] %v3713
                  %v3715 = vld [vmem:[%s3673 + $0xa0] sm:$0xff]
                  %3716 = vst [vmem:[%s3674 + $0x140] sm:$0xff] %v3715
                  %v3717 = vld [vmem:[%s3673 + $0xa8] sm:$0xff]
                  %3718 = vst [vmem:[%s3674 + $0x148] sm:$0xff] %v3717
                  %v3719 = vld [vmem:[%s3673 + $0xb0] sm:$0xff]
                  %3720 = vst [vmem:[%s3674 + $0x160] sm:$0xff] %v3719
                  %v3721 = vld [vmem:[%s3673 + $0xb8] sm:$0xff]
                  %3722 = vst [vmem:[%s3674 + $0x168] sm:$0xff] %v3721
                $region134: #{rpn_head_forward.1} parent=128 // loop_footer
                  %s3672 = sadd.s32 1, %s3668
                $region135: #{rpn_head_forward.1} parent=128 // loop_footer_branch
                  %3667 = sbr.rel target = $region131
                $region136: #{rpn_head_forward.1} parent=128 // loop_exit
                  _
              $region129: #{rpn_head_forward.1} parent=113 // pred_fallthru
                _
              // Predicated region
              $region137: #{rpn_head_forward.1} parent=113 // pred_check
                _
              $region138: #{rpn_head_forward.1} parent=113 // pred_check_branch
                %3724 = sbr.rel target = $region140
              $region139: #{rpn_head_forward.1} parent=113 // pred_region
                _
              $region140: #{rpn_head_forward.1} parent=113 // pred_fallthru
                _
            $region114: #{rpn_head_forward.1} parent=109 // pred_fallthru
              _
            // Predicated region
            $region115: #{rpn_head_forward.1} parent=109 // pred_check
              _
            $region116: #{rpn_head_forward.1} parent=109 // pred_check_branch
              %3607 = sbr.rel target = $region118
            $region117: #{rpn_head_forward.1} parent=109 // pred_region
              loop: start=0, step=1, limit=1
              $region119: #{rpn_head_forward.1} parent=117 // loop_pre_header
                _
              $region120: #{rpn_head_forward.1} parent=117 // loop_header
                %s3610 = sphi 0, %s3614
                %p3611 = scmp.ge.s32.totalorder %s3610, 1
                %s3615 = sphi %s3533, %s3533
                %s3616 = sphi %s3601, %s3601
              $region121: #{rpn_head_forward.1} parent=117 // loop_header_branch
                %3613 = sbr.rel (%p3611) target = $region125
              $region122: #{rpn_head_forward.1} parent=117 // loop_body
                %v3617 = vld [vmem:[%s3615] sm:$0xff]
                %3618 = vst [vmem:[%s3616] sm:$0xff] %v3617
                %v3619 = vld [vmem:[%s3615 + $0x8] sm:$0xff]
                %3620 = vst [vmem:[%s3616 + $0x8] sm:$0xff] %v3619
                %v3621 = vld [vmem:[%s3615 + $0x10] sm:$0xff]
                %3622 = vst [vmem:[%s3616 + $0x20] sm:$0xff] %v3621
                %v3623 = vld [vmem:[%s3615 + $0x18] sm:$0xff]
                %3624 = vst [vmem:[%s3616 + $0x28] sm:$0xff] %v3623
                %v3625 = vld [vmem:[%s3615 + $0x20] sm:$0xff]
                %3626 = vst [vmem:[%s3616 + $0x40] sm:$0xff] %v3625
                %v3627 = vld [vmem:[%s3615 + $0x28] sm:$0xff]
                %3628 = vst [vmem:[%s3616 + $0x48] sm:$0xff] %v3627
                %v3629 = vld [vmem:[%s3615 + $0x30] sm:$0xff]
                %3630 = vst [vmem:[%s3616 + $0x60] sm:$0xff] %v3629
                %v3631 = vld [vmem:[%s3615 + $0x38] sm:$0xff]
                %3632 = vst [vmem:[%s3616 + $0x68] sm:$0xff] %v3631
                %v3633 = vld [vmem:[%s3615 + $0x40] sm:$0xff]
                %3634 = vst [vmem:[%s3616 + $0x80] sm:$0xff] %v3633
                %v3635 = vld [vmem:[%s3615 + $0x48] sm:$0xff]
                %3636 = vst [vmem:[%s3616 + $0x88] sm:$0xff] %v3635
                %v3637 = vld [vmem:[%s3615 + $0x50] sm:$0xff]
                %3638 = vst [vmem:[%s3616 + $0xa0] sm:$0xff] %v3637
                %v3639 = vld [vmem:[%s3615 + $0x58] sm:$0xff]
                %3640 = vst [vmem:[%s3616 + $0xa8] sm:$0xff] %v3639
                %v3641 = vld [vmem:[%s3615 + $0x60] sm:$0xff]
                %3642 = vst [vmem:[%s3616 + $0xc0] sm:$0xff] %v3641
                %v3643 = vld [vmem:[%s3615 + $0x68] sm:$0xff]
                %3644 = vst [vmem:[%s3616 + $0xc8] sm:$0xff] %v3643
                %v3645 = vld [vmem:[%s3615 + $0x70] sm:$0xff]
                %3646 = vst [vmem:[%s3616 + $0xe0] sm:$0xff] %v3645
                %v3647 = vld [vmem:[%s3615 + $0x78] sm:$0xff]
                %3648 = vst [vmem:[%s3616 + $0xe8] sm:$0xff] %v3647
                %v3649 = vld [vmem:[%s3615 + $0x80] sm:$0xff]
                %3650 = vst [vmem:[%s3616 + $0x100] sm:$0xff] %v3649
                %v3651 = vld [vmem:[%s3615 + $0x88] sm:$0xff]
                %3652 = vst [vmem:[%s3616 + $0x108] sm:$0xff] %v3651
                %v3653 = vld [vmem:[%s3615 + $0x90] sm:$0xff]
                %3654 = vst [vmem:[%s3616 + $0x120] sm:$0xff] %v3653
                %v3655 = vld [vmem:[%s3615 + $0x98] sm:$0xff]
                %3656 = vst [vmem:[%s3616 + $0x128] sm:$0xff] %v3655
                %v3657 = vld [vmem:[%s3615 + $0xa0] sm:$0xff]
                %3658 = vst [vmem:[%s3616 + $0x140] sm:$0xff] %v3657
                %v3659 = vld [vmem:[%s3615 + $0xa8] sm:$0xff]
                %3660 = vst [vmem:[%s3616 + $0x148] sm:$0xff] %v3659
                %v3661 = vld [vmem:[%s3615 + $0xb0] sm:$0xff]
                %3662 = vst [vmem:[%s3616 + $0x160] sm:$0xff] %v3661
                %v3663 = vld [vmem:[%s3615 + $0xb8] sm:$0xff]
                %3664 = vst [vmem:[%s3616 + $0x168] sm:$0xff] %v3663
              $region123: #{rpn_head_forward.1} parent=117 // loop_footer
                %s3614 = sadd.s32 1, %s3610
              $region124: #{rpn_head_forward.1} parent=117 // loop_footer_branch
                %3609 = sbr.rel target = $region120
              $region125: #{rpn_head_forward.1} parent=117 // loop_exit
                _
            $region118: #{rpn_head_forward.1} parent=109 // pred_fallthru
              _
          $region110: #{rpn_head_forward.1} parent=105 // pred_fallthru
            _
          %3725 = vnop
        $region106: #{rpn_head_forward.1} parent=47 // pred_fallthru
          _
      $region48: #{rpn_head_forward.1} parent=5 // pred_fallthru
        _
      %p3726 = scmp.le.s32.totalorder 2, %s15
      // Predicated region
      $region141: #{rpn_head_forward.1} parent=5 // pred_check
        %p3727 = pneg %p3726
      $region142: #{rpn_head_forward.1} parent=5 // pred_check_branch
        %3729 = sbr.rel (%p3727) target = $region144
      $region143: #{rpn_head_forward.1} parent=5 // pred_region
        %s3730 = ssub.s32 %s15, 2
        // Predicated region
        $region145: #{rpn_head_forward.1} parent=143 // pred_check
          %p3731 = pneg %p242
        $region146: #{rpn_head_forward.1} parent=143 // pred_check_branch
          %3733 = sbr.rel (%p3731) target = $region148
        $region147: #{rpn_head_forward.1} parent=143 // pred_region
          %s3734 = sand.u32 %s227, 1
          %s3735 = sand.u32 %s227, 1
          %s3736 = smul.addr %s3735, 48
          %s3737 = scalar_lea.vmem [#allocation3], %s3736
        $region148: #{rpn_head_forward.1} parent=143 // pred_fallthru
          _
        // Predicated region
        $region149: #{rpn_head_forward.1} parent=143 // pred_check
          %p3738 = pneg %p270
        $region150: #{rpn_head_forward.1} parent=143 // pred_check_branch
          %3740 = sbr.rel (%p3738) target = $region152
        $region151: #{rpn_head_forward.1} parent=143 // pred_region
          %s3741 = sand.u32 %s255, 1
          %s3742 = sand.u32 %s255, 1
          %s3743 = smul.addr %s3742, 192
          %s3744 = scalar_lea.vmem [#allocation4], %s3743
        $region152: #{rpn_head_forward.1} parent=143 // pred_fallthru
          _
      $region144: #{rpn_head_forward.1} parent=5 // pred_fallthru
        _
    $region6: #{rpn_head_forward.1} parent=1 // loop_footer
      %s19 = sadd.s32 1, %s15
    $region7: #{rpn_head_forward.1} parent=1 // loop_footer_branch
      %14 = sbr.rel target = $region3
    $region8: #{rpn_head_forward.1} parent=1 // loop_exit
      _

</llo_original>
